<compile_context>
chip_gen: v6e
topology: v6e:2x2x1
jax: 0.10.0
libtpu: 0.0.40
codegen_flags: <defaults>
</compile_context>

<pallas_src>
import math
import functools

import jax
import jax.numpy as jnp
from jax.experimental import pallas as pl
from jax.experimental.pallas import tpu as pltpu

GATE_DIM = 128
NUM_BRANCHES = 3            # moe / sparse / performer stand-ins


def _vmem_limit_bytes():
    """Scoped-VMEM budget derived per generation (v5e/v6e: 96 MiB, v7x: 48 MiB)."""
    try:
        cap = pltpu.get_tpu_info().vmem_capacity_bytes
    except Exception:
        cap = 64 * 1024 * 1024
    return int(min(96 * 1024 * 1024, cap * 3 // 4))


VMEM_LIMIT = _vmem_limit_bytes()


def _pick_tile(dim, max_tile, aligns=(256, 128, 8)):
    """Largest tile <= max_tile dividing `dim`, multiple of one of `aligns`
    (tried in order); falls back to the full extent (always legal)."""
    if dim <= max_tile:
        return dim
    for align in aligns:
        t = (max_tile // align) * align
        while t >= align:
            if dim % t == 0:
                return t
            t -= align
    return dim


# ------------------------- tiled matmul kernels -------------------------

def _matmul_bias_kernel(x_ref, w_ref, b_ref, o_ref, acc_ref):
    k = pl.program_id(2)

    @pl.when(k == 0)
    def _():
        acc_ref[...] = jnp.zeros_like(acc_ref)

    acc_ref[...] += jnp.dot(x_ref[...], w_ref[...],
                            preferred_element_type=jnp.float32)

    @pl.when(k == pl.num_programs(2) - 1)
    def _():
        o_ref[...] = (acc_ref[...] + b_ref[...]).astype(o_ref.dtype)


def _matmul_kernel(x_ref, w_ref, o_ref, acc_ref):
    k = pl.program_id(2)

    @pl.when(k == 0)
    def _():
        acc_ref[...] = jnp.zeros_like(acc_ref)

    acc_ref[...] += jnp.dot(x_ref[...], w_ref[...],
                            preferred_element_type=jnp.float32)

    @pl.when(k == pl.num_programs(2) - 1)
    def _():
        o_ref[...] = acc_ref[...].astype(o_ref.dtype)


def linear(x2d, w, b=None, out_dtype=jnp.float32,
           tm_max=512, tn_max=512, tk_max=1024):
    """(M, K) @ (K, N) [+ (N,)] -> (M, N).  bf16 MXU inputs, f32 accumulation.
    Weights are expected to already be bf16 masters (cast below is a no-op)."""
    M, K = x2d.shape
    K2, N = w.shape
    assert K == K2
    x2d = x2d.astype(jnp.bfloat16)
    w = w.astype(jnp.bfloat16)

    tm = _pick_tile(M, tm_max, (128, 8))
    tn = _pick_tile(N, tn_max, (256, 128, 8))
    tk = _pick_tile(K, tk_max, (256, 128, 8))
    grid = (M // tm, N // tn, K // tk)

    cost = pl.CostEstimate(
        flops=2 * M * N * K,
        transcendentals=0,
        bytes_accessed=2 * (M * K + K * N) + jnp.dtype(out_dtype).itemsize * M * N)

    x_spec = pl.BlockSpec((tm, tk), lambda i, j, k: (i, k))
    w_spec = pl.BlockSpec((tk, tn), lambda i, j, k: (k, j))
    o_spec = pl.BlockSpec((tm, tn), lambda i, j, k: (i, j))
    params = pltpu.CompilerParams(
        dimension_semantics=("parallel", "parallel", "arbitrary"),
        vmem_limit_bytes=VMEM_LIMIT)
    scratch = [pltpu.VMEM((tm, tn), jnp.float32)]

    if b is None:
        return pl.pallas_call(
            _matmul_kernel,
            out_shape=jax.ShapeDtypeStruct((M, N), out_dtype),
            grid=grid,
            in_specs=[x_spec, w_spec],
            out_specs=o_spec,
            scratch_shapes=scratch,
            compiler_params=params,
            cost_estimate=cost,
        )(x2d, w)

    b2 = b.astype(jnp.float32).reshape(1, N)
    b_spec = pl.BlockSpec((1, tn), lambda i, j, k: (0, j))
    return pl.pallas_call(
        _matmul_bias_kernel,
        out_shape=jax.ShapeDtypeStruct((M, N), out_dtype),
        grid=grid,
        in_specs=[x_spec, w_spec, b_spec],
        out_specs=o_spec,
        scratch_shapes=scratch,
        compiler_params=params,
        cost_estimate=cost,
    )(x2d, w, b2)


# ------------------------- fused residual + LayerNorm kernels -------------------------

def _row_stats(x, eps):
    """One-pass mean / rsqrt(var) (sum & sum-of-squares -> single XLU pass each)."""
    d = x.shape[-1]
    s1 = jnp.sum(x, axis=-1, keepdims=True)
    s2 = jnp.sum(x * x, axis=-1, keepdims=True)
    mu = s1 * (1.0 / d)
    var = jnp.maximum(s2 * (1.0 / d) - mu * mu, 0.0)   # biased, as in torch
    return mu, jax.lax.rsqrt(var + eps)


def _ln_kernel(x_ref, g_ref, b_ref, o_ref, *, eps):
    x = x_ref[...]
    mu, rstd = _row_stats(x, eps)
    o_ref[...] = ((x - mu) * rstd * g_ref[...] + b_ref[...]).astype(o_ref.dtype)


def _add_ln_kernel(x_ref, y_ref, g_ref, b_ref, o_ref, *, eps):
    h = x_ref[...] + y_ref[...]
    mu, rstd = _row_stats(h, eps)
    o_ref[...] = ((h - mu) * rstd * g_ref[...] + b_ref[...]).astype(o_ref.dtype)


def _add_double_ln_kernel(x_ref, y_ref, g2_ref, b2_ref, g3_ref, b3_ref,
                          o_ref, *, eps):
    h = x_ref[...] + y_ref[...]
    mu, rstd = _row_stats(h, eps)
    h = (h - mu) * rstd * g2_ref[...] + b2_ref[...]
    mu, rstd = _row_stats(h, eps)
    o_ref[...] = ((h - mu) * rstd * g3_ref[...] + b3_ref[...]).astype(o_ref.dtype)


def _ln_call(kernel, row_inputs, vec_params, rows, D, eps):
    tr = _pick_tile(rows, 512, (8,))        # capped for v7x VMEM headroom
    row_spec = pl.BlockSpec((tr, D), lambda i: (i, 0))
    vec_spec = pl.BlockSpec((1, D), lambda i: (0, 0))
    return pl.pallas_call(
        functools.partial(kernel, eps=eps),
        out_shape=jax.ShapeDtypeStruct((rows, D), jnp.float32),
        grid=(rows // tr,),
        in_specs=[row_spec] * len(row_inputs) + [vec_spec] * len(vec_params),
        out_specs=row_spec,
        compiler_params=pltpu.CompilerParams(
            dimension_semantics=("parallel",),
            vmem_limit_bytes=VMEM_LIMIT),
    )(*row_inputs, *[p.reshape(1, D) for p in vec_params])


def layernorm(x, g, b, eps=1e-5):
    B, S, D = x.shape
    out = _ln_call(_ln_kernel, [x.reshape(B * S, D)], [g, b], B * S, D, eps)
    return out.reshape(B, S, D)


def add_layernorm(x, y, g, b, eps=1e-5):
    B, S, D = x.shape
    out = _ln_call(_add_ln_kernel,
                   [x.reshape(B * S, D), y.reshape(B * S, D)],
                   [g, b], B * S, D, eps)
    return out.reshape(B, S, D)


def add_double_layernorm(x, y, g2, b2, g3, b3, eps=1e-5):
    B, S, D = x.shape
    out = _ln_call(_add_double_ln_kernel,
                   [x.reshape(B * S, D), y.reshape(B * S, D)],
                   [g2, b2, g3, b3], B * S, D, eps)
    return out.reshape(B, S, D)


# ------------------------- fused multi-branch flash attention -------------------------

def _mba_kernel(gates_ref, q_ref, kv_ref, o_ref, m_scr, l_scr, acc_scr, *,
                num_heads, head_dim, embed_dim, num_branches):
    # gates_ref : SMEM (B, num_branches) f32 branch weights (incl. depth factor)
    # q_ref     : (tq,  num_branches*D)  bf16, packed [q_moe | q_sp | q_pf]
    # kv_ref    : (tkv, 2*num_branches*D) bf16, packed [k_br | v_br] per branch
    # o_ref     : (tq,  num_branches*D)  bf16 gate-scaled contexts
    # m/l/acc   : f32 VMEM scratch (num_branches, H, tq, {1,1,dh}) online-softmax state
    b = pl.program_id(0)
    ki = pl.program_id(2)
    D, H, dh = embed_dim, num_heads, head_dim
    scale = 1.0 / math.sqrt(dh)
    tq = q_ref.shape[0]
    tkv = kv_ref.shape[0]

    @pl.when(ki == 0)
    def _():
        m_scr[...] = jnp.full_like(m_scr, -jnp.inf)
        l_scr[...] = jnp.zeros_like(l_scr)
        acc_scr[...] = jnp.zeros_like(acc_scr)

    for br in range(num_branches):
        # head-leading layout so the einsums are plain leading-batch matmuls
        q = jnp.transpose(
            q_ref[:, br * D:(br + 1) * D].reshape(tq, H, dh), (1, 0, 2))
        k = jnp.transpose(
            kv_ref[:, br * 2 * D: br * 2 * D + D].reshape(tkv, H, dh), (1, 0, 2))
        v = jnp.transpose(
            kv_ref[:, br * 2 * D + D:(br + 1) * 2 * D].reshape(tkv, H, dh), (1, 0, 2))

        s = jnp.einsum('hqd,hkd->hqk', q, k,
                       preferred_element_type=jnp.float32) * scale   # (H, tq, tkv)

        m_prev = m_scr[br]                                           # (H, tq, 1)
        l_prev = l_scr[br]
        acc_prev = acc_scr[br]                                       # (H, tq, dh)

        m_new = jnp.maximum(m_prev, jnp.max(s, axis=-1, keepdims=True))
        alpha = jnp.exp(m_prev - m_new)
        p = jnp.exp(s - m_new)
        l_new = alpha * l_prev + jnp.sum(p, axis=-1, keepdims=True)
        ctx = jnp.einsum('hqk,hkd->hqd', p.astype(jnp.bfloat16), v,
                         preferred_element_type=jnp.float32)

        m_scr[br] = m_new
        l_scr[br] = l_new
        acc_scr[br] = alpha * acc_prev + ctx

    @pl.when(ki == pl.num_programs(2) - 1)
    def _():
        outs = []
        for br in range(num_branches):
            w = gates_ref[b, br]
            out = acc_scr[br] * pl.reciprocal(l_scr[br], approx=True) * w
            outs.append(jnp.transpose(out, (1, 0, 2)).reshape(tq, H * dh))
        # single lane-dense (tq, num_branches*D) store
        o_ref[...] = jnp.concatenate(outs, axis=-1).astype(o_ref.dtype)


def multi_branch_attention(gates, q_proj, kv_proj, num_heads,
                           num_branches=NUM_BRANCHES, tq_max=256, tkv_max=512):
    """gates: (B, num_branches) f32 branch weights (incl. depth factor).
    q_proj: (B, S, num_branches*D) bf16; kv_proj: (B, S, 2*num_branches*D) bf16.
    Returns (B, S, num_branches*D) bf16 gate-scaled attention contexts."""
    B, S, QP = q_proj.shape
    D = QP // num_branches
    dh = D // num_heads
    tq = _pick_tile(S, tq_max, (128, 8))
    tkv = _pick_tile(S, tkv_max, (128, 8))
    grid = (B, S // tq, S // tkv)

    cost = pl.CostEstimate(
        flops=4 * B * num_branches * num_heads * S * S * dh,
        transcendentals=2 * B * num_branches * num_heads * S * S,
        bytes_accessed=2 * (q_proj.size + kv_proj.size + B * S * num_branches * D))

    kern = functools.partial(_mba_kernel, num_heads=num_heads, head_dim=dh,
                             embed_dim=D, num_branches=num_branches)
    return pl.pallas_call(
        kern,
        out_shape=jax.ShapeDtypeStruct((B, S, num_branches * D), jnp.bfloat16),
        grid=grid,
        in_specs=[
            pl.BlockSpec(memory_space=pltpu.MemorySpace.SMEM),
            pl.BlockSpec((None, tq, num_branches * D),
                         lambda b, qi, ki: (b, qi, 0)),
            pl.BlockSpec((None, tkv, 2 * num_branches * D),
                         lambda b, qi, ki: (b, ki, 0)),
        ],
        out_specs=pl.BlockSpec((None, tq, num_branches * D),
                               lambda b, qi, ki: (b, qi, 0)),
        scratch_shapes=[
            pltpu.VMEM((num_branches, num_heads, tq, 1), jnp.float32),   # m
            pltpu.VMEM((num_branches, num_heads, tq, 1), jnp.float32),   # l
            pltpu.VMEM((num_branches, num_heads, tq, dh), jnp.float32),  # acc
        ],
        compiler_params=pltpu.CompilerParams(
            dimension_semantics=("parallel", "parallel", "arbitrary"),
            vmem_limit_bytes=VMEM_LIMIT),
        cost_estimate=cost,
    )(gates, q_proj, kv_proj)


# ------------------------- model glue (plain JAX) -------------------------

def gelu(x):
    return jax.nn.gelu(x, approximate=False)   # matches torch nn.GELU() (erf)


def layer_forward(x, lp, layer_idx, num_layers, num_heads):
    """VishwamAITransformerLayer.forward (dropout = identity, eval mode)."""
    B, S, D = x.shape
    depth_factor = 1.0 + layer_idx / num_layers * 0.5
    x2 = x.reshape(B * S, D)

    # ---- tiny gate heads: plain JAX (lane widths 132 / 2 not worth a kernel) ----
    avg = jnp.mean(x, axis=1)                                          # (B, D)
    gate_stack = avg @ lp['gate_stack_w'] + lp['gate_stack_b']         # (B, 132)
    arg_h = gelu(gate_stack[:, :GATE_DIM])
    arg = jax.nn.sigmoid(arg_h @ lp['arg_w2'] + lp['arg_b2'])          # (B, 2)
    # arg[:, 0] (attn_weight) is computed but unused in the reference forward.
    ffn_weight = arg[:, 1]                                             # (B,)
    tg = jax.nn.softmax(gate_stack[:, GATE_DIM:GATE_DIM + 2], axis=-1)
    ag = jax.nn.softmax(gate_stack[:, GATE_DIM + 2:GATE_DIM + 4], axis=-1)
    w_moe = ag[:, 0] * depth_factor
    w_sp = ag[:, 1] * tg[:, 0] * depth_factor
    w_pf = ag[:, 1] * tg[:, 1] * depth_factor
    branch_gates = jnp.stack([w_moe, w_sp, w_pf], axis=-1).astype(jnp.float32)

    # ---- attention: fused Q and fused K/V projections for the three branches
    # TODO(synk): OptimizedMoEAttention / DynamicSparseAttention /
    # LearnedPerformerAttention definitions not provided; dense MHA stand-ins.
    q_proj = linear(x2, lp['q_w'], lp['q_b'], out_dtype=jnp.bfloat16)      # (BS, 3D)
    kv_proj = linear(x2, lp['kv_w'], lp['kv_b'], out_dtype=jnp.bfloat16)   # (BS, 6D)
    ctx = multi_branch_attention(branch_gates,
                                 q_proj.reshape(B, S, 3 * D),
                                 kv_proj.reshape(B, S, 6 * D),
                                 num_heads)                                # (B, S, 3D) bf16

    # stacked output projection: sum_br  w_br * (ctx_br @ Wo_br)
    attn = linear(ctx.reshape(B * S, 3 * D), lp['o_w'])                    # (BS, D)
    b_weighted = (w_moe[:, None] * lp['bo_moe'][None, :] +
                  w_sp[:, None] * lp['bo_sp'][None, :] +
                  w_pf[:, None] * lp['bo_pf'][None, :])                    # (B, D)
    attn_out = attn.reshape(B, S, D) + b_weighted[:, None, :]

    x = add_layernorm(x, attn_out, lp['ln1_g'], lp['ln1_b'])

    # ---- FeedForward: Linear -> GELU -> Linear
    # TODO(synk): exact FeedForward definition not provided.
    h = gelu(linear(x.reshape(B * S, D), lp['ffn_w1'], lp['ffn_b1']))
    ffn_o = linear(h, lp['ffn_w2'], lp['ffn_b2']).reshape(B, S, D)
    ffn_o = ffn_o * (ffn_weight * depth_factor)[:, None, None]

    # norm2(x + ffn_o) followed by norm3, fused into one kernel
    return add_double_layernorm(x, ffn_o, lp['ln2_g'], lp['ln2_b'],
                                lp['ln3_g'], lp['ln3_b'])


def forward(params, tokens, *, num_heads, num_layers):
    B, S = tokens.shape
    D = params['emb'].shape[1]
    # TODO(synk): TokenEmbedding definition not provided; assuming emb * sqrt(D).
    x = params['emb'][tokens] * math.sqrt(D)
    x = x + params['pe'][:S][None, :, :]
    # TODO(synk): all dropout layers treated as identity (eval mode).
    for idx in range(num_layers):
        x = layer_forward(x, params['layers'][idx], idx, num_layers, num_heads)
    x = layernorm(x, params['norm_g'], params['norm_b'])
    logits = linear(x.reshape(B * S, D), params['out_w'], params['out_b'])
    return logits.reshape(B, S, -1)


# ------------------------- deterministic parameter init -------------------------

def _init_layer(key, D, ff_dim, gate_dim=GATE_DIM):
    ks = jax.random.split(key, 7)

    def w(k, shape, dtype=jnp.bfloat16):
        return (jax.random.normal(k, shape, jnp.float32) * 0.02).astype(dtype)

    p = {
        # fused Q for branches [moe | sparse | performer]: (D, 3D), bf16 master
        'q_w': w(ks[0], (D, 3 * D)),
        'q_b': jnp.zeros((3 * D,), jnp.float32),
        # fused K/V packed [k_moe|v_moe|k_sp|v_sp|k_pf|v_pf]: (D, 6D), bf16 master
        'kv_w': w(ks[1], (D, 6 * D)),
        'kv_b': jnp.zeros((6 * D,), jnp.float32),
        # stacked output projections [Wo_moe; Wo_sparse; Wo_perf]: (3D, D)
        'o_w': w(ks[2], (3 * D, D)),
        'bo_moe': jnp.zeros((D,), jnp.float32),
        'bo_sp': jnp.zeros((D,), jnp.float32),
        'bo_pf': jnp.zeros((D,), jnp.float32),
        # tiny gate heads kept f32 (plain-JAX path): [ARG layer1 | TAA gate | attn gate]
        'gate_stack_w': w(ks[3], (D, gate_dim + 4), jnp.float32),
        'gate_stack_b': jnp.zeros((gate_dim + 4,), jnp.float32),
        'arg_w2': w(ks[4], (gate_dim, 2), jnp.float32),
        'arg_b2': jnp.zeros((2,), jnp.float32),
        'ffn_w1': w(ks[5], (D, ff_dim)),
        'ffn_b1': jnp.zeros((ff_dim,), jnp.float32),
        'ffn_w2': w(ks[6], (ff_dim, D)),
        'ffn_b2': jnp.zeros((D,), jnp.float32),
    }
    for n in ('ln1', 'ln2', 'ln3'):
        p[n + '_g'] = jnp.ones((D,), jnp.float32)
        p[n + '_b'] = jnp.zeros((D,), jnp.float32)
    return p


def _sinusoidal_pe(max_len, D):
    pos = jnp.arange(max_len, dtype=jnp.float32)[:, None]
    div = jnp.exp(jnp.arange(0, D, 2, dtype=jnp.float32) * (-math.log(10000.0) / D))
    pe = jnp.zeros((max_len, D), jnp.float32)
    pe = pe.at[:, 0::2].set(jnp.sin(pos * div))
    pe = pe.at[:, 1::2].set(jnp.cos(pos * div))
    return pe


def init_params(key, vocab_size, embed_dim, num_layers, ff_dim, max_seq_len):
    keys = jax.random.split(key, num_layers + 2)
    params = {
        'emb': jax.random.normal(keys[0], (vocab_size, embed_dim), jnp.float32) * 0.02,
        'pe': _sinusoidal_pe(max_seq_len, embed_dim),
        'layers': [_init_layer(keys[1 + i], embed_dim, ff_dim) for i in range(num_layers)],
        'norm_g': jnp.ones((embed_dim,), jnp.float32),
        'norm_b': jnp.zeros((embed_dim,), jnp.float32),
        'out_w': (jax.random.normal(keys[-1], (embed_dim, vocab_size), jnp.float32)
                  * 0.02).astype(jnp.bfloat16),
        'out_b': jnp.zeros((vocab_size,), jnp.float32),
    }
    return params


# ------------------------- main -------------------------

if __name__ == "__main__":
    vocab_size = 32
    embed_dim = 32
    num_layers = 2
    num_heads = 4
    ff_dim = 64
    max_seq_len = 16
    B, S = 2, 8

    key = jax.random.PRNGKey(0)
    pkey, tkey = jax.random.split(key)
    params = init_params(pkey, vocab_size, embed_dim, num_layers, ff_dim, max_seq_len)
    tokens = jax.random.randint(tkey, (B, S), 0, vocab_size, dtype=jnp.int32)

    fwd = jax.jit(functools.partial(forward, num_heads=num_heads, num_layers=num_layers))
    logits = fwd(params, tokens)
    jax.block_until_ready(logits)

    assert logits.shape == (B, S, vocab_size), logits.shape
    assert logits.dtype == jnp.float32
    print("KERNEL_OK")
</pallas_src>

<mosaic_0001>
module attributes {stable_mosaic.version = 11 : i64} {
  func.func @_matmul_bias_kernel(%arg0: i32, %arg1: i32, %arg2: i32, %arg3: memref<16x32xbf16, #tpu.memory_space<vmem>>, %arg4: memref<32x96xbf16, #tpu.memory_space<vmem>>, %arg5: memref<1x96xf32, #tpu.memory_space<vmem>>, %arg6: memref<16x96xbf16, #tpu.memory_space<vmem>>, %arg7: memref<16x96xf32, #tpu.memory_space<vmem>>) attributes {dimension_semantics = [#tpu.dimension_semantics<parallel>, #tpu.dimension_semantics<parallel>, #tpu.dimension_semantics<arbitrary>], iteration_bounds = array<i64: 1, 1, 1>, scalar_prefetch = 0 : i64, scratch_operands = 1 : i64, tpu.core_type = #tpu.core_type<tc>, window_params = [{transform_indices = @transform_0, window_bounds = array<i64: 16, 32>}, {transform_indices = @transform_1, window_bounds = array<i64: 32, 96>}, {transform_indices = @transform_2, window_bounds = array<i64: 1, 96>}, {transform_indices = @transform_3, window_bounds = array<i64: 16, 96>}]} {
    %c0_i32 = arith.constant 0 : i32
    %0 = arith.cmpi eq, %arg2, %c0_i32 : i32
    %1 = arith.extui %0 : i1 to i32
    %c0_i32_0 = arith.constant 0 : i32
    %2 = arith.cmpi ne, %1, %c0_i32_0 : i32
    scf.if %2 {
      %cst_10 = arith.constant 0.000000e+00 : f32
      %12 = vector.broadcast %cst_10 : f32 to vector<16x96xf32>
      %c0_11 = arith.constant 0 : index
      %c0_12 = arith.constant 0 : index
      %13 = vector.load %arg7[%c0_11, %c0_12] : memref<16x96xf32, #tpu.memory_space<vmem>>, vector<16x96xf32>
      tpu.vector_store %arg7[%c0_11, %c0_12], %12 {strides = array<i32>} : memref<16x96xf32, #tpu.memory_space<vmem>>, vector<16x96xf32>,
    } else {
    }
    %c0 = arith.constant 0 : index
    %c0_1 = arith.constant 0 : index
    %3 = vector.load %arg7[%c0, %c0_1] : memref<16x96xf32, #tpu.memory_space<vmem>>, vector<16x96xf32>
    %c0_2 = arith.constant 0 : index
    %c0_3 = arith.constant 0 : index
    %4 = vector.load %arg3[%c0_2, %c0_3] : memref<16x32xbf16, #tpu.memory_space<vmem>>, vector<16x32xbf16>
    %c0_4 = arith.constant 0 : index
    %c0_5 = arith.constant 0 : index
    %5 = vector.load %arg4[%c0_4, %c0_5] : memref<32x96xbf16, #tpu.memory_space<vmem>>, vector<32x96xbf16>
    %cst = arith.constant dense<0.000000e+00> : vector<16x96xf32>
    %6 = tpu.matmul %4, %5, %cst {dimension_numbers = #tpu.dot_dimension_numbers<[1], [0], [0], [1], [0, 0, 1, 1], [], []>} : vector<16x32xbf16>, vector<32x96xbf16>, vector<16x96xf32> -> vector<16x96xf32>
    %7 = arith.addf %3, %6 : vector<16x96xf32>
    %c0_6 = arith.constant 0 : index
    %c0_7 = arith.constant 0 : index
    %8 = vector.load %arg7[%c0_6, %c0_7] : memref<16x96xf32, #tpu.memory_space<vmem>>, vector<16x96xf32>
    tpu.vector_store %arg7[%c0_6, %c0_7], %7 {strides = array<i32>} : memref<16x96xf32, #tpu.memory_space<vmem>>, vector<16x96xf32>,
    %c0_i32_8 = arith.constant 0 : i32
    %9 = arith.cmpi eq, %arg2, %c0_i32_8 : i32
    %10 = arith.extui %9 : i1 to i32
    %c0_i32_9 = arith.constant 0 : i32
    %11 = arith.cmpi ne, %10, %c0_i32_9 : i32
    scf.if %11 {
      %c0_10 = arith.constant 0 : index
      %c0_11 = arith.constant 0 : index
      %12 = vector.load %arg7[%c0_10, %c0_11] : memref<16x96xf32, #tpu.memory_space<vmem>>, vector<16x96xf32>
      %c0_12 = arith.constant 0 : index
      %c0_13 = arith.constant 0 : index
      %13 = vector.load %arg5[%c0_12, %c0_13] : memref<1x96xf32, #tpu.memory_space<vmem>>, vector<1x96xf32>
      %14 = vector.broadcast %13 : vector<1x96xf32> to vector<16x96xf32>
      %15 = arith.addf %12, %14 : vector<16x96xf32>
      %16 = arith.truncf %15 : vector<16x96xf32> to vector<16x96xbf16>
      %c0_14 = arith.constant 0 : index
      %c0_15 = arith.constant 0 : index
      %17 = vector.load %arg6[%c0_14, %c0_15] : memref<16x96xbf16, #tpu.memory_space<vmem>>, vector<16x96xbf16>
      tpu.vector_store %arg6[%c0_14, %c0_15], %16 {strides = array<i32>} : memref<16x96xbf16, #tpu.memory_space<vmem>>, vector<16x96xbf16>,
    } else {
    }
    return
  }
  func.func @transform_0(%arg0: i32, %arg1: i32, %arg2: i32) -> (i32, i32) {
    %c0_i32 = arith.constant 0 : i32
    return %arg0, %arg2 : i32, i32
  }
  func.func @transform_1(%arg0: i32, %arg1: i32, %arg2: i32) -> (i32, i32) {
    %c0_i32 = arith.constant 0 : i32
    return %arg2, %arg1 : i32, i32
  }
  func.func @transform_2(%arg0: i32, %arg1: i32, %arg2: i32) -> (i32, i32) {
    %c0_i32 = arith.constant 0 : i32
    %c0_i32_0 = arith.constant 0 : i32
    return %c0_i32, %arg1 : i32, i32
  }
  func.func @transform_3(%arg0: i32, %arg1: i32, %arg2: i32) -> (i32, i32) {
    %c0_i32 = arith.constant 0 : i32
    return %arg0, %arg1 : i32, i32
  }
}

module attributes {stable_mosaic.version = 11 : i64} {
  func.func @_matmul_kernel(%arg0: i32, %arg1: i32, %arg2: i32, %arg3: memref<16x96xbf16, #tpu.memory_space<vmem>>, %arg4: memref<96x32xbf16, #tpu.memory_space<vmem>>, %arg5: memref<16x32xf32, #tpu.memory_space<vmem>>, %arg6: memref<16x32xf32, #tpu.memory_space<vmem>>) attributes {dimension_semantics = [#tpu.dimension_semantics<parallel>, #tpu.dimension_semantics<parallel>, #tpu.dimension_semantics<arbitrary>], iteration_bounds = array<i64: 1, 1, 1>, scalar_prefetch = 0 : i64, scratch_operands = 1 : i64, tpu.core_type = #tpu.core_type<tc>, window_params = [{transform_indices = @transform_0, window_bounds = array<i64: 16, 96>}, {transform_indices = @transform_1, window_bounds = array<i64: 96, 32>}, {transform_indices = @transform_2, window_bounds = array<i64: 16, 32>}]} {
    %c0_i32 = arith.constant 0 : i32
    %0 = arith.cmpi eq, %arg2, %c0_i32 : i32
    %1 = arith.extui %0 : i1 to i32
    %c0_i32_0 = arith.constant 0 : i32
    %2 = arith.cmpi ne, %1, %c0_i32_0 : i32
    scf.if %2 {
      %cst_10 = arith.constant 0.000000e+00 : f32
      %12 = vector.broadcast %cst_10 : f32 to vector<16x32xf32>
      %c0_11 = arith.constant 0 : index
      %c0_12 = arith.constant 0 : index
      %13 = vector.load %arg6[%c0_11, %c0_12] : memref<16x32xf32, #tpu.memory_space<vmem>>, vector<16x32xf32>
      tpu.vector_store %arg6[%c0_11, %c0_12], %12 {strides = array<i32>} : memref<16x32xf32, #tpu.memory_space<vmem>>, vector<16x32xf32>,
    } else {
    }
    %c0 = arith.constant 0 : index
    %c0_1 = arith.constant 0 : index
    %3 = vector.load %arg6[%c0, %c0_1] : memref<16x32xf32, #tpu.memory_space<vmem>>, vector<16x32xf32>
    %c0_2 = arith.constant 0 : index
    %c0_3 = arith.constant 0 : index
    %4 = vector.load %arg3[%c0_2, %c0_3] : memref<16x96xbf16, #tpu.memory_space<vmem>>, vector<16x96xbf16>
    %c0_4 = arith.constant 0 : index
    %c0_5 = arith.constant 0 : index
    %5 = vector.load %arg4[%c0_4, %c0_5] : memref<96x32xbf16, #tpu.memory_space<vmem>>, vector<96x32xbf16>
    %cst = arith.constant dense<0.000000e+00> : vector<16x32xf32>
    %6 = tpu.matmul %4, %5, %cst {dimension_numbers = #tpu.dot_dimension_numbers<[1], [0], [0], [1], [0, 0, 1, 1], [], []>} : vector<16x96xbf16>, vector<96x32xbf16>, vector<16x32xf32> -> vector<16x32xf32>
    %7 = arith.addf %3, %6 : vector<16x32xf32>
    %c0_6 = arith.constant 0 : index
    %c0_7 = arith.constant 0 : index
    %8 = vector.load %arg6[%c0_6, %c0_7] : memref<16x32xf32, #tpu.memory_space<vmem>>, vector<16x32xf32>
    tpu.vector_store %arg6[%c0_6, %c0_7], %7 {strides = array<i32>} : memref<16x32xf32, #tpu.memory_space<vmem>>, vector<16x32xf32>,
    %c0_i32_8 = arith.constant 0 : i32
    %9 = arith.cmpi eq, %arg2, %c0_i32_8 : i32
    %10 = arith.extui %9 : i1 to i32
    %c0_i32_9 = arith.constant 0 : i32
    %11 = arith.cmpi ne, %10, %c0_i32_9 : i32
    scf.if %11 {
      %c0_10 = arith.constant 0 : index
      %c0_11 = arith.constant 0 : index
      %12 = vector.load %arg6[%c0_10, %c0_11] : memref<16x32xf32, #tpu.memory_space<vmem>>, vector<16x32xf32>
      %c0_12 = arith.constant 0 : index
      %c0_13 = arith.constant 0 : index
      %13 = vector.load %arg5[%c0_12, %c0_13] : memref<16x32xf32, #tpu.memory_space<vmem>>, vector<16x32xf32>
      tpu.vector_store %arg5[%c0_12, %c0_13], %12 {strides = array<i32>} : memref<16x32xf32, #tpu.memory_space<vmem>>, vector<16x32xf32>,
    } else {
    }
    return
  }
  func.func @transform_0(%arg0: i32, %arg1: i32, %arg2: i32) -> (i32, i32) {
    %c0_i32 = arith.constant 0 : i32
    return %arg0, %arg2 : i32, i32
  }
  func.func @transform_1(%arg0: i32, %arg1: i32, %arg2: i32) -> (i32, i32) {
    %c0_i32 = arith.constant 0 : i32
    return %arg2, %arg1 : i32, i32
  }
  func.func @transform_2(%arg0: i32, %arg1: i32, %arg2: i32) -> (i32, i32) {
    %c0_i32 = arith.constant 0 : i32
    return %arg0, %arg1 : i32, i32
  }
}

module attributes {stable_mosaic.version = 11 : i64} {
  func.func @_matmul_bias_kernel(%arg0: i32, %arg1: i32, %arg2: i32, %arg3: memref<16x32xbf16, #tpu.memory_space<vmem>>, %arg4: memref<32x192xbf16, #tpu.memory_space<vmem>>, %arg5: memref<1x192xf32, #tpu.memory_space<vmem>>, %arg6: memref<16x192xbf16, #tpu.memory_space<vmem>>, %arg7: memref<16x192xf32, #tpu.memory_space<vmem>>) attributes {dimension_semantics = [#tpu.dimension_semantics<parallel>, #tpu.dimension_semantics<parallel>, #tpu.dimension_semantics<arbitrary>], iteration_bounds = array<i64: 1, 1, 1>, scalar_prefetch = 0 : i64, scratch_operands = 1 : i64, tpu.core_type = #tpu.core_type<tc>, window_params = [{transform_indices = @transform_0, window_bounds = array<i64: 16, 32>}, {transform_indices = @transform_1, window_bounds = array<i64: 32, 192>}, {transform_indices = @transform_2, window_bounds = array<i64: 1, 192>}, {transform_indices = @transform_3, window_bounds = array<i64: 16, 192>}]} {
    %c0_i32 = arith.constant 0 : i32
    %0 = arith.cmpi eq, %arg2, %c0_i32 : i32
    %1 = arith.extui %0 : i1 to i32
    %c0_i32_0 = arith.constant 0 : i32
    %2 = arith.cmpi ne, %1, %c0_i32_0 : i32
    scf.if %2 {
      %cst_10 = arith.constant 0.000000e+00 : f32
      %12 = vector.broadcast %cst_10 : f32 to vector<16x192xf32>
      %c0_11 = arith.constant 0 : index
      %c0_12 = arith.constant 0 : index
      %13 = vector.load %arg7[%c0_11, %c0_12] : memref<16x192xf32, #tpu.memory_space<vmem>>, vector<16x192xf32>
      tpu.vector_store %arg7[%c0_11, %c0_12], %12 {strides = array<i32>} : memref<16x192xf32, #tpu.memory_space<vmem>>, vector<16x192xf32>,
    } else {
    }
    %c0 = arith.constant 0 : index
    %c0_1 = arith.constant 0 : index
    %3 = vector.load %arg7[%c0, %c0_1] : memref<16x192xf32, #tpu.memory_space<vmem>>, vector<16x192xf32>
    %c0_2 = arith.constant 0 : index
    %c0_3 = arith.constant 0 : index
    %4 = vector.load %arg3[%c0_2, %c0_3] : memref<16x32xbf16, #tpu.memory_space<vmem>>, vector<16x32xbf16>
    %c0_4 = arith.constant 0 : index
    %c0_5 = arith.constant 0 : index
    %5 = vector.load %arg4[%c0_4, %c0_5] : memref<32x192xbf16, #tpu.memory_space<vmem>>, vector<32x192xbf16>
    %cst = arith.constant dense<0.000000e+00> : vector<16x192xf32>
    %6 = tpu.matmul %4, %5, %cst {dimension_numbers = #tpu.dot_dimension_numbers<[1], [0], [0], [1], [0, 0, 1, 1], [], []>} : vector<16x32xbf16>, vector<32x192xbf16>, vector<16x192xf32> -> vector<16x192xf32>
    %7 = arith.addf %3, %6 : vector<16x192xf32>
    %c0_6 = arith.constant 0 : index
    %c0_7 = arith.constant 0 : index
    %8 = vector.load %arg7[%c0_6, %c0_7] : memref<16x192xf32, #tpu.memory_space<vmem>>, vector<16x192xf32>
    tpu.vector_store %arg7[%c0_6, %c0_7], %7 {strides = array<i32>} : memref<16x192xf32, #tpu.memory_space<vmem>>, vector<16x192xf32>,
    %c0_i32_8 = arith.constant 0 : i32
    %9 = arith.cmpi eq, %arg2, %c0_i32_8 : i32
    %10 = arith.extui %9 : i1 to i32
    %c0_i32_9 = arith.constant 0 : i32
    %11 = arith.cmpi ne, %10, %c0_i32_9 : i32
    scf.if %11 {
      %c0_10 = arith.constant 0 : index
      %c0_11 = arith.constant 0 : index
      %12 = vector.load %arg7[%c0_10, %c0_11] : memref<16x192xf32, #tpu.memory_space<vmem>>, vector<16x192xf32>
      %c0_12 = arith.constant 0 : index
      %c0_13 = arith.constant 0 : index
      %13 = vector.load %arg5[%c0_12, %c0_13] : memref<1x192xf32, #tpu.memory_space<vmem>>, vector<1x192xf32>
      %14 = vector.broadcast %13 : vector<1x192xf32> to vector<16x192xf32>
      %15 = arith.addf %12, %14 : vector<16x192xf32>
      %16 = arith.truncf %15 : vector<16x192xf32> to vector<16x192xbf16>
      %c0_14 = arith.constant 0 : index
      %c0_15 = arith.constant 0 : index
      %17 = vector.load %arg6[%c0_14, %c0_15] : memref<16x192xbf16, #tpu.memory_space<vmem>>, vector<16x192xbf16>
      tpu.vector_store %arg6[%c0_14, %c0_15], %16 {strides = array<i32>} : memref<16x192xbf16, #tpu.memory_space<vmem>>, vector<16x192xbf16>,
    } else {
    }
    return
  }
  func.func @transform_0(%arg0: i32, %arg1: i32, %arg2: i32) -> (i32, i32) {
    %c0_i32 = arith.constant 0 : i32
    return %arg0, %arg2 : i32, i32
  }
  func.func @transform_1(%arg0: i32, %arg1: i32, %arg2: i32) -> (i32, i32) {
    %c0_i32 = arith.constant 0 : i32
    return %arg2, %arg1 : i32, i32
  }
  func.func @transform_2(%arg0: i32, %arg1: i32, %arg2: i32) -> (i32, i32) {
    %c0_i32 = arith.constant 0 : i32
    %c0_i32_0 = arith.constant 0 : i32
    return %c0_i32, %arg1 : i32, i32
  }
  func.func @transform_3(%arg0: i32, %arg1: i32, %arg2: i32) -> (i32, i32) {
    %c0_i32 = arith.constant 0 : i32
    return %arg0, %arg1 : i32, i32
  }
}

module attributes {stable_mosaic.version = 11 : i64} {
  func.func @_mba_kernel(%arg0: i32, %arg1: i32, %arg2: i32, %arg3: memref<2x3xf32, #tpu.memory_space<smem>>, %arg4: memref<1x8x96xbf16, #tpu.memory_space<vmem>>, %arg5: memref<1x8x192xbf16, #tpu.memory_space<vmem>>, %arg6: memref<1x8x96xbf16, #tpu.memory_space<vmem>>, %arg7: memref<3x4x8x1xf32, #tpu.memory_space<vmem>>, %arg8: memref<3x4x8x1xf32, #tpu.memory_space<vmem>>, %arg9: memref<3x4x8x8xf32, #tpu.memory_space<vmem>>) attributes {dimension_semantics = [#tpu.dimension_semantics<parallel>, #tpu.dimension_semantics<parallel>, #tpu.dimension_semantics<arbitrary>], iteration_bounds = array<i64: 2, 1, 1>, scalar_prefetch = 0 : i64, scratch_operands = 3 : i64, tpu.core_type = #tpu.core_type<tc>, window_params = [{transform_indices = @transform_0, window_bounds = array<i64: 2, 3>}, {transform_indices = @transform_1, window_bounds = array<i64: 1, 8, 96>}, {transform_indices = @transform_2, window_bounds = array<i64: 1, 8, 192>}, {transform_indices = @transform_3, window_bounds = array<i64: 1, 8, 96>}]} {
    %c0_i32 = arith.constant 0 : i32
    %0 = arith.cmpi eq, %arg2, %c0_i32 : i32
    %1 = arith.extui %0 : i1 to i32
    %c0_i32_0 = arith.constant 0 : i32
    %2 = arith.cmpi ne, %1, %c0_i32_0 : i32
    scf.if %2 {
      %cst_108 = arith.constant 0xFF800000 : f32
      %147 = vector.broadcast %cst_108 : f32 to vector<3x4x8x1xf32>
      %c0_109 = arith.constant 0 : index
      %c0_110 = arith.constant 0 : index
      %c0_111 = arith.constant 0 : index
      %c0_112 = arith.constant 0 : index
      %148 = vector.load %arg7[%c0_109, %c0_110, %c0_111, %c0_112] : memref<3x4x8x1xf32, #tpu.memory_space<vmem>>, vector<3x4x8x1xf32>
      tpu.vector_store %arg7[%c0_109, %c0_110, %c0_111, %c0_112], %147 {strides = array<i32>} : memref<3x4x8x1xf32, #tpu.memory_space<vmem>>, vector<3x4x8x1xf32>,
      %cst_113 = arith.constant 0.000000e+00 : f32
      %149 = vector.broadcast %cst_113 : f32 to vector<3x4x8x1xf32>
      %c0_114 = arith.constant 0 : index
      %c0_115 = arith.constant 0 : index
      %c0_116 = arith.constant 0 : index
      %c0_117 = arith.constant 0 : index
      %150 = vector.load %arg8[%c0_114, %c0_115, %c0_116, %c0_117] : memref<3x4x8x1xf32, #tpu.memory_space<vmem>>, vector<3x4x8x1xf32>
      tpu.vector_store %arg8[%c0_114, %c0_115, %c0_116, %c0_117], %149 {strides = array<i32>} : memref<3x4x8x1xf32, #tpu.memory_space<vmem>>, vector<3x4x8x1xf32>,
      %cst_118 = arith.constant 0.000000e+00 : f32
      %151 = vector.broadcast %cst_118 : f32 to vector<3x4x8x8xf32>
      %c0_119 = arith.constant 0 : index
      %c0_120 = arith.constant 0 : index
      %c0_121 = arith.constant 0 : index
      %c0_122 = arith.constant 0 : index
      %152 = vector.load %arg9[%c0_119, %c0_120, %c0_121, %c0_122] : memref<3x4x8x8xf32, #tpu.memory_space<vmem>>, vector<3x4x8x8xf32>
      tpu.vector_store %arg9[%c0_119, %c0_120, %c0_121, %c0_122], %151 {strides = array<i32>} : memref<3x4x8x8xf32, #tpu.memory_space<vmem>>, vector<3x4x8x8xf32>,
    } else {
    }
    %c0 = arith.constant 0 : index
    %c0_1 = arith.constant 0 : index
    %c0_2 = arith.constant 0 : index
    %3 = vector.load %arg4[%c0, %c0_1, %c0_2] : memref<1x8x96xbf16, #tpu.memory_space<vmem>>, vector<1x8x32xbf16>
    %4 = vector.shape_cast %3 : vector<1x8x32xbf16> to vector<8x32xbf16>
    %5 = vector.shape_cast %4 : vector<8x32xbf16> to vector<8x4x8xbf16>
    %6 = tpu.transpose %5, [1, 0, 2] : vector<8x4x8xbf16> -> vector<4x8x8xbf16>
    %c0_3 = arith.constant 0 : index
    %c0_4 = arith.constant 0 : index
    %c0_5 = arith.constant 0 : index
    %7 = vector.load %arg5[%c0_3, %c0_4, %c0_5] : memref<1x8x192xbf16, #tpu.memory_space<vmem>>, vector<1x8x32xbf16>
    %8 = vector.shape_cast %7 : vector<1x8x32xbf16> to vector<8x32xbf16>
    %9 = vector.shape_cast %8 : vector<8x32xbf16> to vector<8x4x8xbf16>
    %10 = tpu.transpose %9, [1, 0, 2] : vector<8x4x8xbf16> -> vector<4x8x8xbf16>
    %c0_6 = arith.constant 0 : index
    %c0_7 = arith.constant 0 : index
    %c32 = arith.constant 32 : index
    %11 = vector.load %arg5[%c0_6, %c0_7, %c32] : memref<1x8x192xbf16, #tpu.memory_space<vmem>>, vector<1x8x32xbf16>
    %12 = vector.shape_cast %11 : vector<1x8x32xbf16> to vector<8x32xbf16>
    %13 = vector.shape_cast %12 : vector<8x32xbf16> to vector<8x4x8xbf16>
    %14 = tpu.transpose %13, [1, 0, 2] : vector<8x4x8xbf16> -> vector<4x8x8xbf16>
    "tpu.trace_start"() <{level = 10 : i32, message = "hqd,hkd->hqk"}> : () -> ()
    %cst = arith.constant dense<0.000000e+00> : vector<4x8x8xf32>
    %15 = tpu.matmul %6, %10, %cst {dimension_numbers = #tpu.dot_dimension_numbers<[2], [2], [1], [1], [0, 0, 0, 1, 1, 1], [0], [0]>} : vector<4x8x8xbf16>, vector<4x8x8xbf16>, vector<4x8x8xf32> -> vector<4x8x8xf32>
    "tpu.trace_stop"() : () -> ()
    %cst_8 = arith.constant 0.353553385 : f32
    %16 = vector.broadcast %cst_8 : f32 to vector<4x8x8xf32>
    %17 = arith.mulf %15, %16 : vector<4x8x8xf32>
    %c0_9 = arith.constant 0 : index
    %c0_10 = arith.constant 0 : index
    %c0_11 = arith.constant 0 : index
    %c0_12 = arith.constant 0 : index
    %18 = vector.load %arg7[%c0_9, %c0_10, %c0_11, %c0_12] : memref<3x4x8x1xf32, #tpu.memory_space<vmem>>, vector<1x4x8x1xf32>
    %19 = vector.shape_cast %18 : vector<1x4x8x1xf32> to vector<4x8x1xf32>
    %c0_13 = arith.constant 0 : index
    %c0_14 = arith.constant 0 : index
    %c0_15 = arith.constant 0 : index
    %c0_16 = arith.constant 0 : index
    %20 = vector.load %arg8[%c0_13, %c0_14, %c0_15, %c0_16] : memref<3x4x8x1xf32, #tpu.memory_space<vmem>>, vector<1x4x8x1xf32>
    %21 = vector.shape_cast %20 : vector<1x4x8x1xf32> to vector<4x8x1xf32>
    %c0_17 = arith.constant 0 : index
    %c0_18 = arith.constant 0 : index
    %c0_19 = arith.constant 0 : index
    %c0_20 = arith.constant 0 : index
    %22 = vector.load %arg9[%c0_17, %c0_18, %c0_19, %c0_20] : memref<3x4x8x8xf32, #tpu.memory_space<vmem>>, vector<1x4x8x8xf32>
    %23 = vector.shape_cast %22 : vector<1x4x8x8xf32> to vector<4x8x8xf32>
    %cst_21 = arith.constant dense<0xFF800000> : vector<4x8xf32>
    %24 = vector.multi_reduction <maximumf>, %17, %cst_21 [2] : vector<4x8x8xf32> to vector<4x8xf32>
    %25 = vector.shape_cast %24 : vector<4x8xf32> to vector<4x8x1xf32>
    %26 = arith.maximumf %19, %25 : vector<4x8x1xf32>
    %27 = arith.subf %19, %26 : vector<4x8x1xf32>
    %28 = math.exp %27 : vector<4x8x1xf32>
    %29 = vector.broadcast %26 : vector<4x8x1xf32> to vector<4x8x8xf32>
    %30 = arith.subf %17, %29 : vector<4x8x8xf32>
    %31 = math.exp %30 : vector<4x8x8xf32>
    %32 = arith.mulf %28, %21 : vector<4x8x1xf32>
    %cst_22 = arith.constant dense<0.000000e+00> : vector<4x8xf32>
    %33 = vector.multi_reduction <add>, %31, %cst_22 [2] : vector<4x8x8xf32> to vector<4x8xf32>
    %34 = vector.shape_cast %33 : vector<4x8xf32> to vector<4x8x1xf32>
    %35 = arith.addf %32, %34 : vector<4x8x1xf32>
    %36 = arith.truncf %31 : vector<4x8x8xf32> to vector<4x8x8xbf16>
    "tpu.trace_start"() <{level = 10 : i32, message = "hqk,hkd->hqd"}> : () -> ()
    %cst_23 = arith.constant dense<0.000000e+00> : vector<4x8x8xf32>
    %37 = tpu.matmul %36, %14, %cst_23 {dimension_numbers = #tpu.dot_dimension_numbers<[2], [1], [1], [2], [0, 0, 0, 1, 1, 2], [0], [0]>} : vector<4x8x8xbf16>, vector<4x8x8xbf16>, vector<4x8x8xf32> -> vector<4x8x8xf32>
    "tpu.trace_stop"() : () -> ()
    %c0_24 = arith.constant 0 : index
    %c0_25 = arith.constant 0 : index
    %c0_26 = arith.constant 0 : index
    %c0_27 = arith.constant 0 : index
    %38 = vector.load %arg7[%c0_24, %c0_25, %c0_26, %c0_27] : memref<3x4x8x1xf32, #tpu.memory_space<vmem>>, vector<1x4x8x1xf32>
    %39 = vector.shape_cast %38 : vector<1x4x8x1xf32> to vector<4x8x1xf32>
    %40 = vector.shape_cast %26 : vector<4x8x1xf32> to vector<1x4x8x1xf32>
    tpu.vector_store %arg7[%c0_24, %c0_25, %c0_26, %c0_27], %40 {strides = array<i32>} : memref<3x4x8x1xf32, #tpu.memory_space<vmem>>, vector<1x4x8x1xf32>,
    %c0_28 = arith.constant 0 : index
    %c0_29 = arith.constant 0 : index
    %c0_30 = arith.constant 0 : index
    %c0_31 = arith.constant 0 : index
    %41 = vector.load %arg8[%c0_28, %c0_29, %c0_30, %c0_31] : memref<3x4x8x1xf32, #tpu.memory_space<vmem>>, vector<1x4x8x1xf32>
    %42 = vector.shape_cast %41 : vector<1x4x8x1xf32> to vector<4x8x1xf32>
    %43 = vector.shape_cast %35 : vector<4x8x1xf32> to vector<1x4x8x1xf32>
    tpu.vector_store %arg8[%c0_28, %c0_29, %c0_30, %c0_31], %43 {strides = array<i32>} : memref<3x4x8x1xf32, #tpu.memory_space<vmem>>, vector<1x4x8x1xf32>,
    %44 = vector.broadcast %28 : vector<4x8x1xf32> to vector<4x8x8xf32>
    %45 = arith.mulf %44, %23 : vector<4x8x8xf32>
    %46 = arith.addf %45, %37 : vector<4x8x8xf32>
    %c0_32 = arith.constant 0 : index
    %c0_33 = arith.constant 0 : index
    %c0_34 = arith.constant 0 : index
    %c0_35 = arith.constant 0 : index
    %47 = vector.load %arg9[%c0_32, %c0_33, %c0_34, %c0_35] : memref<3x4x8x8xf32, #tpu.memory_space<vmem>>, vector<1x4x8x8xf32>
    %48 = vector.shape_cast %47 : vector<1x4x8x8xf32> to vector<4x8x8xf32>
    %49 = vector.shape_cast %46 : vector<4x8x8xf32> to vector<1x4x8x8xf32>
    tpu.vector_store %arg9[%c0_32, %c0_33, %c0_34, %c0_35], %49 {strides = array<i32>} : memref<3x4x8x8xf32, #tpu.memory_space<vmem>>, vector<1x4x8x8xf32>,
    %c0_36 = arith.constant 0 : index
    %c0_37 = arith.constant 0 : index
    %c32_38 = arith.constant 32 : index
    %50 = vector.load %arg4[%c0_36, %c0_37, %c32_38] : memref<1x8x96xbf16, #tpu.memory_space<vmem>>, vector<1x8x32xbf16>
    %51 = vector.shape_cast %50 : vector<1x8x32xbf16> to vector<8x32xbf16>
    %52 = vector.shape_cast %51 : vector<8x32xbf16> to vector<8x4x8xbf16>
    %53 = tpu.transpose %52, [1, 0, 2] : vector<8x4x8xbf16> -> vector<4x8x8xbf16>
    %c0_39 = arith.constant 0 : index
    %c0_40 = arith.constant 0 : index
    %c64 = arith.constant 64 : index
    %54 = vector.load %arg5[%c0_39, %c0_40, %c64] : memref<1x8x192xbf16, #tpu.memory_space<vmem>>, vector<1x8x32xbf16>
    %55 = vector.shape_cast %54 : vector<1x8x32xbf16> to vector<8x32xbf16>
    %56 = vector.shape_cast %55 : vector<8x32xbf16> to vector<8x4x8xbf16>
    %57 = tpu.transpose %56, [1, 0, 2] : vector<8x4x8xbf16> -> vector<4x8x8xbf16>
    %c0_41 = arith.constant 0 : index
    %c0_42 = arith.constant 0 : index
    %c96 = arith.constant 96 : index
    %58 = vector.load %arg5[%c0_41, %c0_42, %c96] : memref<1x8x192xbf16, #tpu.memory_space<vmem>>, vector<1x8x32xbf16>
    %59 = vector.shape_cast %58 : vector<1x8x32xbf16> to vector<8x32xbf16>
    %60 = vector.shape_cast %59 : vector<8x32xbf16> to vector<8x4x8xbf16>
    %61 = tpu.transpose %60, [1, 0, 2] : vector<8x4x8xbf16> -> vector<4x8x8xbf16>
    "tpu.trace_start"() <{level = 10 : i32, message = "hqd,hkd->hqk"}> : () -> ()
    %cst_43 = arith.constant dense<0.000000e+00> : vector<4x8x8xf32>
    %62 = tpu.matmul %53, %57, %cst_43 {dimension_numbers = #tpu.dot_dimension_numbers<[2], [2], [1], [1], [0, 0, 0, 1, 1, 1], [0], [0]>} : vector<4x8x8xbf16>, vector<4x8x8xbf16>, vector<4x8x8xf32> -> vector<4x8x8xf32>
    "tpu.trace_stop"() : () -> ()
    %cst_44 = arith.constant 0.353553385 : f32
    %63 = vector.broadcast %cst_44 : f32 to vector<4x8x8xf32>
    %64 = arith.mulf %62, %63 : vector<4x8x8xf32>
    %c1 = arith.constant 1 : index
    %c0_45 = arith.constant 0 : index
    %c0_46 = arith.constant 0 : index
    %c0_47 = arith.constant 0 : index
    %65 = vector.load %arg7[%c1, %c0_45, %c0_46, %c0_47] : memref<3x4x8x1xf32, #tpu.memory_space<vmem>>, vector<1x4x8x1xf32>
    %66 = vector.shape_cast %65 : vector<1x4x8x1xf32> to vector<4x8x1xf32>
    %c1_48 = arith.constant 1 : index
    %c0_49 = arith.constant 0 : index
    %c0_50 = arith.constant 0 : index
    %c0_51 = arith.constant 0 : index
    %67 = vector.load %arg8[%c1_48, %c0_49, %c0_50, %c0_51] : memref<3x4x8x1xf32, #tpu.memory_space<vmem>>, vector<1x4x8x1xf32>
    %68 = vector.shape_cast %67 : vector<1x4x8x1xf32> to vector<4x8x1xf32>
    %c1_52 = arith.constant 1 : index
    %c0_53 = arith.constant 0 : index
    %c0_54 = arith.constant 0 : index
    %c0_55 = arith.constant 0 : index
    %69 = vector.load %arg9[%c1_52, %c0_53, %c0_54, %c0_55] : memref<3x4x8x8xf32, #tpu.memory_space<vmem>>, vector<1x4x8x8xf32>
    %70 = vector.shape_cast %69 : vector<1x4x8x8xf32> to vector<4x8x8xf32>
    %cst_56 = arith.constant dense<0xFF800000> : vector<4x8xf32>
    %71 = vector.multi_reduction <maximumf>, %64, %cst_56 [2] : vector<4x8x8xf32> to vector<4x8xf32>
    %72 = vector.shape_cast %71 : vector<4x8xf32> to vector<4x8x1xf32>
    %73 = arith.maximumf %66, %72 : vector<4x8x1xf32>
    %74 = arith.subf %66, %73 : vector<4x8x1xf32>
    %75 = math.exp %74 : vector<4x8x1xf32>
    %76 = vector.broadcast %73 : vector<4x8x1xf32> to vector<4x8x8xf32>
    %77 = arith.subf %64, %76 : vector<4x8x8xf32>
    %78 = math.exp %77 : vector<4x8x8xf32>
    %79 = arith.mulf %75, %68 : vector<4x8x1xf32>
    %cst_57 = arith.constant dense<0.000000e+00> : vector<4x8xf32>
    %80 = vector.multi_reduction <add>, %78, %cst_57 [2] : vector<4x8x8xf32> to vector<4x8xf32>
    %81 = vector.shape_cast %80 : vector<4x8xf32> to vector<4x8x1xf32>
    %82 = arith.addf %79, %81 : vector<4x8x1xf32>
    %83 = arith.truncf %78 : vector<4x8x8xf32> to vector<4x8x8xbf16>
    "tpu.trace_start"() <{level = 10 : i32, message = "hqk,hkd->hqd"}> : () -> ()
    %cst_58 = arith.constant dense<0.000000e+00> : vector<4x8x8xf32>
    %84 = tpu.matmul %83, %61, %cst_58 {dimension_numbers = #tpu.dot_dimension_numbers<[2], [1], [1], [2], [0, 0, 0, 1, 1, 2], [0], [0]>} : vector<4x8x8xbf16>, vector<4x8x8xbf16>, vector<4x8x8xf32> -> vector<4x8x8xf32>
    "tpu.trace_stop"() : () -> ()
    %c1_59 = arith.constant 1 : index
    %c0_60 = arith.constant 0 : index
    %c0_61 = arith.constant 0 : index
    %c0_62 = arith.constant 0 : index
    %85 = vector.load %arg7[%c1_59, %c0_60, %c0_61, %c0_62] : memref<3x4x8x1xf32, #tpu.memory_space<vmem>>, vector<1x4x8x1xf32>
    %86 = vector.shape_cast %85 : vector<1x4x8x1xf32> to vector<4x8x1xf32>
    %87 = vector.shape_cast %73 : vector<4x8x1xf32> to vector<1x4x8x1xf32>
    tpu.vector_store %arg7[%c1_59, %c0_60, %c0_61, %c0_62], %87 {strides = array<i32>} : memref<3x4x8x1xf32, #tpu.memory_space<vmem>>, vector<1x4x8x1xf32>,
    %c1_63 = arith.constant 1 : index
    %c0_64 = arith.constant 0 : index
    %c0_65 = arith.constant 0 : index
    %c0_66 = arith.constant 0 : index
    %88 = vector.load %arg8[%c1_63, %c0_64, %c0_65, %c0_66] : memref<3x4x8x1xf32, #tpu.memory_space<vmem>>, vector<1x4x8x1xf32>
    %89 = vector.shape_cast %88 : vector<1x4x8x1xf32> to vector<4x8x1xf32>
    %90 = vector.shape_cast %82 : vector<4x8x1xf32> to vector<1x4x8x1xf32>
    tpu.vector_store %arg8[%c1_63, %c0_64, %c0_65, %c0_66], %90 {strides = array<i32>} : memref<3x4x8x1xf32, #tpu.memory_space<vmem>>, vector<1x4x8x1xf32>,
    %91 = vector.broadcast %75 : vector<4x8x1xf32> to vector<4x8x8xf32>
    %92 = arith.mulf %91, %70 : vector<4x8x8xf32>
    %93 = arith.addf %92, %84 : vector<4x8x8xf32>
    %c1_67 = arith.constant 1 : index
    %c0_68 = arith.constant 0 : index
    %c0_69 = arith.constant 0 : index
    %c0_70 = arith.constant 0 : index
    %94 = vector.load %arg9[%c1_67, %c0_68, %c0_69, %c0_70] : memref<3x4x8x8xf32, #tpu.memory_space<vmem>>, vector<1x4x8x8xf32>
    %95 = vector.shape_cast %94 : vector<1x4x8x8xf32> to vector<4x8x8xf32>
    %96 = vector.shape_cast %93 : vector<4x8x8xf32> to vector<1x4x8x8xf32>
    tpu.vector_store %arg9[%c1_67, %c0_68, %c0_69, %c0_70], %96 {strides = array<i32>} : memref<3x4x8x8xf32, #tpu.memory_space<vmem>>, vector<1x4x8x8xf32>,
    %c0_71 = arith.constant 0 : index
    %c0_72 = arith.constant 0 : index
    %c64_73 = arith.constant 64 : index
    %97 = vector.load %arg4[%c0_71, %c0_72, %c64_73] : memref<1x8x96xbf16, #tpu.memory_space<vmem>>, vector<1x8x32xbf16>
    %98 = vector.shape_cast %97 : vector<1x8x32xbf16> to vector<8x32xbf16>
    %99 = vector.shape_cast %98 : vector<8x32xbf16> to vector<8x4x8xbf16>
    %100 = tpu.transpose %99, [1, 0, 2] : vector<8x4x8xbf16> -> vector<4x8x8xbf16>
    %c0_74 = arith.constant 0 : index
    %c0_75 = arith.constant 0 : index
    %c128 = arith.constant 128 : index
    %101 = vector.load %arg5[%c0_74, %c0_75, %c128] : memref<1x8x192xbf16, #tpu.memory_space<vmem>>, vector<1x8x32xbf16>
    %102 = vector.shape_cast %101 : vector<1x8x32xbf16> to vector<8x32xbf16>
    %103 = vector.shape_cast %102 : vector<8x32xbf16> to vector<8x4x8xbf16>
    %104 = tpu.transpose %103, [1, 0, 2] : vector<8x4x8xbf16> -> vector<4x8x8xbf16>
    %c0_76 = arith.constant 0 : index
    %c0_77 = arith.constant 0 : index
    %c160 = arith.constant 160 : index
    %105 = vector.load %arg5[%c0_76, %c0_77, %c160] : memref<1x8x192xbf16, #tpu.memory_space<vmem>>, vector<1x8x32xbf16>
    %106 = vector.shape_cast %105 : vector<1x8x32xbf16> to vector<8x32xbf16>
    %107 = vector.shape_cast %106 : vector<8x32xbf16> to vector<8x4x8xbf16>
    %108 = tpu.transpose %107, [1, 0, 2] : vector<8x4x8xbf16> -> vector<4x8x8xbf16>
    "tpu.trace_start"() <{level = 10 : i32, message = "hqd,hkd->hqk"}> : () -> ()
    %cst_78 = arith.constant dense<0.000000e+00> : vector<4x8x8xf32>
    %109 = tpu.matmul %100, %104, %cst_78 {dimension_numbers = #tpu.dot_dimension_numbers<[2], [2], [1], [1], [0, 0, 0, 1, 1, 1], [0], [0]>} : vector<4x8x8xbf16>, vector<4x8x8xbf16>, vector<4x8x8xf32> -> vector<4x8x8xf32>
    "tpu.trace_stop"() : () -> ()
    %cst_79 = arith.constant 0.353553385 : f32
    %110 = vector.broadcast %cst_79 : f32 to vector<4x8x8xf32>
    %111 = arith.mulf %109, %110 : vector<4x8x8xf32>
    %c2 = arith.constant 2 : index
    %c0_80 = arith.constant 0 : index
    %c0_81 = arith.constant 0 : index
    %c0_82 = arith.constant 0 : index
    %112 = vector.load %arg7[%c2, %c0_80, %c0_81, %c0_82] : memref<3x4x8x1xf32, #tpu.memory_space<vmem>>, vector<1x4x8x1xf32>
    %113 = vector.shape_cast %112 : vector<1x4x8x1xf32> to vector<4x8x1xf32>
    %c2_83 = arith.constant 2 : index
    %c0_84 = arith.constant 0 : index
    %c0_85 = arith.constant 0 : index
    %c0_86 = arith.constant 0 : index
    %114 = vector.load %arg8[%c2_83, %c0_84, %c0_85, %c0_86] : memref<3x4x8x1xf32, #tpu.memory_space<vmem>>, vector<1x4x8x1xf32>
    %115 = vector.shape_cast %114 : vector<1x4x8x1xf32> to vector<4x8x1xf32>
    %c2_87 = arith.constant 2 : index
    %c0_88 = arith.constant 0 : index
    %c0_89 = arith.constant 0 : index
    %c0_90 = arith.constant 0 : index
    %116 = vector.load %arg9[%c2_87, %c0_88, %c0_89, %c0_90] : memref<3x4x8x8xf32, #tpu.memory_space<vmem>>, vector<1x4x8x8xf32>
    %117 = vector.shape_cast %116 : vector<1x4x8x8xf32> to vector<4x8x8xf32>
    %cst_91 = arith.constant dense<0xFF800000> : vector<4x8xf32>
    %118 = vector.multi_reduction <maximumf>, %111, %cst_91 [2] : vector<4x8x8xf32> to vector<4x8xf32>
    %119 = vector.shape_cast %118 : vector<4x8xf32> to vector<4x8x1xf32>
    %120 = arith.maximumf %113, %119 : vector<4x8x1xf32>
    %121 = arith.subf %113, %120 : vector<4x8x1xf32>
    %122 = math.exp %121 : vector<4x8x1xf32>
    %123 = vector.broadcast %120 : vector<4x8x1xf32> to vector<4x8x8xf32>
    %124 = arith.subf %111, %123 : vector<4x8x8xf32>
    %125 = math.exp %124 : vector<4x8x8xf32>
    %126 = arith.mulf %122, %115 : vector<4x8x1xf32>
    %cst_92 = arith.constant dense<0.000000e+00> : vector<4x8xf32>
    %127 = vector.multi_reduction <add>, %125, %cst_92 [2] : vector<4x8x8xf32> to vector<4x8xf32>
    %128 = vector.shape_cast %127 : vector<4x8xf32> to vector<4x8x1xf32>
    %129 = arith.addf %126, %128 : vector<4x8x1xf32>
    %130 = arith.truncf %125 : vector<4x8x8xf32> to vector<4x8x8xbf16>
    "tpu.trace_start"() <{level = 10 : i32, message = "hqk,hkd->hqd"}> : () -> ()
    %cst_93 = arith.constant dense<0.000000e+00> : vector<4x8x8xf32>
    %131 = tpu.matmul %130, %108, %cst_93 {dimension_numbers = #tpu.dot_dimension_numbers<[2], [1], [1], [2], [0, 0, 0, 1, 1, 2], [0], [0]>} : vector<4x8x8xbf16>, vector<4x8x8xbf16>, vector<4x8x8xf32> -> vector<4x8x8xf32>
    "tpu.trace_stop"() : () -> ()
    %c2_94 = arith.constant 2 : index
    %c0_95 = arith.constant 0 : index
    %c0_96 = arith.constant 0 : index
    %c0_97 = arith.constant 0 : index
    %132 = vector.load %arg7[%c2_94, %c0_95, %c0_96, %c0_97] : memref<3x4x8x1xf32, #tpu.memory_space<vmem>>, vector<1x4x8x1xf32>
    %133 = vector.shape_cast %132 : vector<1x4x8x1xf32> to vector<4x8x1xf32>
    %134 = vector.shape_cast %120 : vector<4x8x1xf32> to vector<1x4x8x1xf32>
    tpu.vector_store %arg7[%c2_94, %c0_95, %c0_96, %c0_97], %134 {strides = array<i32>} : memref<3x4x8x1xf32, #tpu.memory_space<vmem>>, vector<1x4x8x1xf32>,
    %c2_98 = arith.constant 2 : index
    %c0_99 = arith.constant 0 : index
    %c0_100 = arith.constant 0 : index
    %c0_101 = arith.constant 0 : index
    %135 = vector.load %arg8[%c2_98, %c0_99, %c0_100, %c0_101] : memref<3x4x8x1xf32, #tpu.memory_space<vmem>>, vector<1x4x8x1xf32>
    %136 = vector.shape_cast %135 : vector<1x4x8x1xf32> to vector<4x8x1xf32>
    %137 = vector.shape_cast %129 : vector<4x8x1xf32> to vector<1x4x8x1xf32>
    tpu.vector_store %arg8[%c2_98, %c0_99, %c0_100, %c0_101], %137 {strides = array<i32>} : memref<3x4x8x1xf32, #tpu.memory_space<vmem>>, vector<1x4x8x1xf32>,
    %138 = vector.broadcast %122 : vector<4x8x1xf32> to vector<4x8x8xf32>
    %139 = arith.mulf %138, %117 : vector<4x8x8xf32>
    %140 = arith.addf %139, %131 : vector<4x8x8xf32>
    %c2_102 = arith.constant 2 : index
    %c0_103 = arith.constant 0 : index
    %c0_104 = arith.constant 0 : index
    %c0_105 = arith.constant 0 : index
    %141 = vector.load %arg9[%c2_102, %c0_103, %c0_104, %c0_105] : memref<3x4x8x8xf32, #tpu.memory_space<vmem>>, vector<1x4x8x8xf32>
    %142 = vector.shape_cast %141 : vector<1x4x8x8xf32> to vector<4x8x8xf32>
    %143 = vector.shape_cast %140 : vector<4x8x8xf32> to vector<1x4x8x8xf32>
    tpu.vector_store %arg9[%c2_102, %c0_103, %c0_104, %c0_105], %143 {strides = array<i32>} : memref<3x4x8x8xf32, #tpu.memory_space<vmem>>, vector<1x4x8x8xf32>,
    %c0_i32_106 = arith.constant 0 : i32
    %144 = arith.cmpi eq, %arg2, %c0_i32_106 : i32
    %145 = arith.extui %144 : i1 to i32
    %c0_i32_107 = arith.constant 0 : i32
    %146 = arith.cmpi ne, %145, %c0_i32_107 : i32
    scf.if %146 {
      %147 = arith.index_cast %arg0 : i32 to index
      %c0_108 = arith.constant 0 : index
      %148 = memref.load %arg3[%147, %c0_108] : memref<2x3xf32, #tpu.memory_space<smem>>
      %c0_109 = arith.constant 0 : index
      %c0_110 = arith.constant 0 : index
      %c0_111 = arith.constant 0 : index
      %c0_112 = arith.constant 0 : index
      %149 = vector.load %arg9[%c0_109, %c0_110, %c0_111, %c0_112] : memref<3x4x8x8xf32, #tpu.memory_space<vmem>>, vector<1x4x8x8xf32>
      %150 = vector.shape_cast %149 : vector<1x4x8x8xf32> to vector<4x8x8xf32>
      %c0_113 = arith.constant 0 : index
      %c0_114 = arith.constant 0 : index
      %c0_115 = arith.constant 0 : index
      %c0_116 = arith.constant 0 : index
      %151 = vector.load %arg8[%c0_113, %c0_114, %c0_115, %c0_116] : memref<3x4x8x1xf32, #tpu.memory_space<vmem>>, vector<1x4x8x1xf32>
      %152 = vector.shape_cast %151 : vector<1x4x8x1xf32> to vector<4x8x1xf32>
      %153 = tpu.reciprocal %152 {approx = true} : vector<4x8x1xf32> -> vector<4x8x1xf32>
      %154 = vector.broadcast %153 : vector<4x8x1xf32> to vector<4x8x8xf32>
      %155 = arith.mulf %150, %154 : vector<4x8x8xf32>
      %156 = vector.broadcast %148 : f32 to vector<4x8x8xf32>
      %157 = arith.mulf %155, %156 : vector<4x8x8xf32>
      %158 = tpu.transpose %157, [1, 0, 2] : vector<4x8x8xf32> -> vector<8x4x8xf32>
      %159 = vector.shape_cast %158 : vector<8x4x8xf32> to vector<8x32xf32>
      %160 = arith.index_cast %arg0 : i32 to index
      %c1_117 = arith.constant 1 : index
      %161 = memref.load %arg3[%160, %c1_117] : memref<2x3xf32, #tpu.memory_space<smem>>
      %c1_118 = arith.constant 1 : index
      %c0_119 = arith.constant 0 : index
      %c0_120 = arith.constant 0 : index
      %c0_121 = arith.constant 0 : index
      %162 = vector.load %arg9[%c1_118, %c0_119, %c0_120, %c0_121] : memref<3x4x8x8xf32, #tpu.memory_space<vmem>>, vector<1x4x8x8xf32>
      %163 = vector.shape_cast %162 : vector<1x4x8x8xf32> to vector<4x8x8xf32>
      %c1_122 = arith.constant 1 : index
      %c0_123 = arith.constant 0 : index
      %c0_124 = arith.constant 0 : index
      %c0_125 = arith.constant 0 : index
      %164 = vector.load %arg8[%c1_122, %c0_123, %c0_124, %c0_125] : memref<3x4x8x1xf32, #tpu.memory_space<vmem>>, vector<1x4x8x1xf32>
      %165 = vector.shape_cast %164 : vector<1x4x8x1xf32> to vector<4x8x1xf32>
      %166 = tpu.reciprocal %165 {approx = true} : vector<4x8x1xf32> -> vector<4x8x1xf32>
      %167 = vector.broadcast %166 : vector<4x8x1xf32> to vector<4x8x8xf32>
      %168 = arith.mulf %163, %167 : vector<4x8x8xf32>
      %169 = vector.broadcast %161 : f32 to vector<4x8x8xf32>
      %170 = arith.mulf %168, %169 : vector<4x8x8xf32>
      %171 = tpu.transpose %170, [1, 0, 2] : vector<4x8x8xf32> -> vector<8x4x8xf32>
      %172 = vector.shape_cast %171 : vector<8x4x8xf32> to vector<8x32xf32>
      %173 = arith.index_cast %arg0 : i32 to index
      %c2_126 = arith.constant 2 : index
      %174 = memref.load %arg3[%173, %c2_126] : memref<2x3xf32, #tpu.memory_space<smem>>
      %c2_127 = arith.constant 2 : index
      %c0_128 = arith.constant 0 : index
      %c0_129 = arith.constant 0 : index
      %c0_130 = arith.constant 0 : index
      %175 = vector.load %arg9[%c2_127, %c0_128, %c0_129, %c0_130] : memref<3x4x8x8xf32, #tpu.memory_space<vmem>>, vector<1x4x8x8xf32>
      %176 = vector.shape_cast %175 : vector<1x4x8x8xf32> to vector<4x8x8xf32>
      %c2_131 = arith.constant 2 : index
      %c0_132 = arith.constant 0 : index
      %c0_133 = arith.constant 0 : index
      %c0_134 = arith.constant 0 : index
      %177 = vector.load %arg8[%c2_131, %c0_132, %c0_133, %c0_134] : memref<3x4x8x1xf32, #tpu.memory_space<vmem>>, vector<1x4x8x1xf32>
      %178 = vector.shape_cast %177 : vector<1x4x8x1xf32> to vector<4x8x1xf32>
      %179 = tpu.reciprocal %178 {approx = true} : vector<4x8x1xf32> -> vector<4x8x1xf32>
      %180 = vector.broadcast %179 : vector<4x8x1xf32> to vector<4x8x8xf32>
      %181 = arith.mulf %176, %180 : vector<4x8x8xf32>
      %182 = vector.broadcast %174 : f32 to vector<4x8x8xf32>
      %183 = arith.mulf %181, %182 : vector<4x8x8xf32>
      %184 = tpu.transpose %183, [1, 0, 2] : vector<4x8x8xf32> -> vector<8x4x8xf32>
      %185 = vector.shape_cast %184 : vector<8x4x8xf32> to vector<8x32xf32>
      %186 = tpu.concatenate %159, %172, %185 in 1 : vector<8x32xf32>, vector<8x32xf32>, vector<8x32xf32> -> vector<8x96xf32>
      %187 = arith.truncf %186 : vector<8x96xf32> to vector<8x96xbf16>
      %c0_135 = arith.constant 0 : index
      %c0_136 = arith.constant 0 : index
      %c0_137 = arith.constant 0 : index
      %188 = vector.load %arg6[%c0_135, %c0_136, %c0_137] : memref<1x8x96xbf16, #tpu.memory_space<vmem>>, vector<1x8x96xbf16>
      %189 = vector.shape_cast %188 : vector<1x8x96xbf16> to vector<8x96xbf16>
      %190 = vector.shape_cast %187 : vector<8x96xbf16> to vector<1x8x96xbf16>
      tpu.vector_store %arg6[%c0_135, %c0_136, %c0_137], %190 {strides = array<i32>} : memref<1x8x96xbf16, #tpu.memory_space<vmem>>, vector<1x8x96xbf16>,
    } else {
    }
    return
  }
  func.func @transform_0(%arg0: i32, %arg1: i32, %arg2: i32) -> (i32, i32) {
    %c0_i32 = arith.constant 0 : i32
    %c0_i32_0 = arith.constant 0 : i32
    %c0_i32_1 = arith.constant 0 : i32
    return %c0_i32, %c0_i32_0 : i32, i32
  }
  func.func @transform_1(%arg0: i32, %arg1: i32, %arg2: i32) -> (i32, i32, i32) {
    %c0_i32 = arith.constant 0 : i32
    %c0_i32_0 = arith.constant 0 : i32
    return %arg0, %arg1, %c0_i32 : i32, i32, i32
  }
  func.func @transform_2(%arg0: i32, %arg1: i32, %arg2: i32) -> (i32, i32, i32) {
    %c0_i32 = arith.constant 0 : i32
    %c0_i32_0 = arith.constant 0 : i32
    return %arg0, %arg2, %c0_i32 : i32, i32, i32
  }
  func.func @transform_3(%arg0: i32, %arg1: i32, %arg2: i32) -> (i32, i32, i32) {
    %c0_i32 = arith.constant 0 : i32
    %c0_i32_0 = arith.constant 0 : i32
    return %arg0, %arg1, %c0_i32 : i32, i32, i32
  }
}

module attributes {stable_mosaic.version = 11 : i64} {
  func.func @_add_ln_kernel(%arg0: i32, %arg1: memref<16x32xf32, #tpu.memory_space<vmem>>, %arg2: memref<16x32xf32, #tpu.memory_space<vmem>>, %arg3: memref<1x32xf32, #tpu.memory_space<vmem>>, %arg4: memref<1x32xf32, #tpu.memory_space<vmem>>, %arg5: memref<16x32xf32, #tpu.memory_space<vmem>>) attributes {dimension_semantics = [#tpu.dimension_semantics<parallel>], iteration_bounds = array<i64: 1>, scalar_prefetch = 0 : i64, scratch_operands = 0 : i64, tpu.core_type = #tpu.core_type<tc>, window_params = [{transform_indices = @transform_0, window_bounds = array<i64: 16, 32>}, {transform_indices = @transform_1, window_bounds = array<i64: 16, 32>}, {pipeline_mode = #tpu.pipeline_mode<synchronous>, transform_indices = @transform_2, window_bounds = array<i64: 1, 32>}, {pipeline_mode = #tpu.pipeline_mode<synchronous>, transform_indices = @transform_3, window_bounds = array<i64: 1, 32>}, {transform_indices = @transform_4, window_bounds = array<i64: 16, 32>}]} {
    %c0 = arith.constant 0 : index
    %c0_0 = arith.constant 0 : index
    %0 = vector.load %arg1[%c0, %c0_0] : memref<16x32xf32, #tpu.memory_space<vmem>>, vector<16x32xf32>
    %c0_1 = arith.constant 0 : index
    %c0_2 = arith.constant 0 : index
    %1 = vector.load %arg2[%c0_1, %c0_2] : memref<16x32xf32, #tpu.memory_space<vmem>>, vector<16x32xf32>
    %2 = arith.addf %0, %1 : vector<16x32xf32>
    %cst = arith.constant dense<0.000000e+00> : vector<16xf32>
    %3 = vector.multi_reduction <add>, %2, %cst [1] : vector<16x32xf32> to vector<16xf32>
    %4 = vector.shape_cast %3 : vector<16xf32> to vector<16x1xf32>
    %5 = arith.mulf %2, %2 : vector<16x32xf32>
    %cst_3 = arith.constant dense<0.000000e+00> : vector<16xf32>
    %6 = vector.multi_reduction <add>, %5, %cst_3 [1] : vector<16x32xf32> to vector<16xf32>
    %7 = vector.shape_cast %6 : vector<16xf32> to vector<16x1xf32>
    %cst_4 = arith.constant 3.125000e-02 : f32
    %8 = vector.broadcast %cst_4 : f32 to vector<16x1xf32>
    %9 = arith.mulf %4, %8 : vector<16x1xf32>
    %cst_5 = arith.constant 3.125000e-02 : f32
    %10 = vector.broadcast %cst_5 : f32 to vector<16x1xf32>
    %11 = arith.mulf %7, %10 : vector<16x1xf32>
    %12 = arith.mulf %9, %9 : vector<16x1xf32>
    %13 = arith.subf %11, %12 : vector<16x1xf32>
    %cst_6 = arith.constant 0.000000e+00 : f32
    %14 = vector.broadcast %cst_6 : f32 to vector<16x1xf32>
    %15 = arith.maximumf %13, %14 : vector<16x1xf32>
    %cst_7 = arith.constant 9.99999974E-6 : f32
    %16 = vector.broadcast %cst_7 : f32 to vector<16x1xf32>
    %17 = arith.addf %15, %16 : vector<16x1xf32>
    %18 = math.rsqrt %17 : vector<16x1xf32>
    %19 = vector.broadcast %9 : vector<16x1xf32> to vector<16x32xf32>
    %20 = arith.subf %2, %19 : vector<16x32xf32>
    %21 = vector.broadcast %18 : vector<16x1xf32> to vector<16x32xf32>
    %22 = arith.mulf %20, %21 : vector<16x32xf32>
    %c0_8 = arith.constant 0 : index
    %c0_9 = arith.constant 0 : index
    %23 = vector.load %arg3[%c0_8, %c0_9] : memref<1x32xf32, #tpu.memory_space<vmem>>, vector<1x32xf32>
    %24 = vector.broadcast %23 : vector<1x32xf32> to vector<16x32xf32>
    %25 = arith.mulf %22, %24 : vector<16x32xf32>
    %c0_10 = arith.constant 0 : index
    %c0_11 = arith.constant 0 : index
    %26 = vector.load %arg4[%c0_10, %c0_11] : memref<1x32xf32, #tpu.memory_space<vmem>>, vector<1x32xf32>
    %27 = vector.broadcast %26 : vector<1x32xf32> to vector<16x32xf32>
    %28 = arith.addf %25, %27 : vector<16x32xf32>
    %c0_12 = arith.constant 0 : index
    %c0_13 = arith.constant 0 : index
    %29 = vector.load %arg5[%c0_12, %c0_13] : memref<16x32xf32, #tpu.memory_space<vmem>>, vector<16x32xf32>
    tpu.vector_store %arg5[%c0_12, %c0_13], %28 {strides = array<i32>} : memref<16x32xf32, #tpu.memory_space<vmem>>, vector<16x32xf32>,
    return
  }
  func.func @transform_0(%arg0: i32) -> (i32, i32) {
    %c0_i32 = arith.constant 0 : i32
    %c0_i32_0 = arith.constant 0 : i32
    return %arg0, %c0_i32 : i32, i32
  }
  func.func @transform_1(%arg0: i32) -> (i32, i32) {
    %c0_i32 = arith.constant 0 : i32
    %c0_i32_0 = arith.constant 0 : i32
    return %arg0, %c0_i32 : i32, i32
  }
  func.func @transform_2(%arg0: i32) -> (i32, i32) {
    %c0_i32 = arith.constant 0 : i32
    %c0_i32_0 = arith.constant 0 : i32
    %c0_i32_1 = arith.constant 0 : i32
    return %c0_i32, %c0_i32_0 : i32, i32
  }
  func.func @transform_3(%arg0: i32) -> (i32, i32) {
    %c0_i32 = arith.constant 0 : i32
    %c0_i32_0 = arith.constant 0 : i32
    %c0_i32_1 = arith.constant 0 : i32
    return %c0_i32, %c0_i32_0 : i32, i32
  }
  func.func @transform_4(%arg0: i32) -> (i32, i32) {
    %c0_i32 = arith.constant 0 : i32
    %c0_i32_0 = arith.constant 0 : i32
    return %arg0, %c0_i32 : i32, i32
  }
}

module attributes {stable_mosaic.version = 11 : i64} {
  func.func @_matmul_bias_kernel(%arg0: i32, %arg1: i32, %arg2: i32, %arg3: memref<16x32xbf16, #tpu.memory_space<vmem>>, %arg4: memref<32x64xbf16, #tpu.memory_space<vmem>>, %arg5: memref<1x64xf32, #tpu.memory_space<vmem>>, %arg6: memref<16x64xf32, #tpu.memory_space<vmem>>, %arg7: memref<16x64xf32, #tpu.memory_space<vmem>>) attributes {dimension_semantics = [#tpu.dimension_semantics<parallel>, #tpu.dimension_semantics<parallel>, #tpu.dimension_semantics<arbitrary>], iteration_bounds = array<i64: 1, 1, 1>, scalar_prefetch = 0 : i64, scratch_operands = 1 : i64, tpu.core_type = #tpu.core_type<tc>, window_params = [{transform_indices = @transform_0, window_bounds = array<i64: 16, 32>}, {transform_indices = @transform_1, window_bounds = array<i64: 32, 64>}, {transform_indices = @transform_2, window_bounds = array<i64: 1, 64>}, {transform_indices = @transform_3, window_bounds = array<i64: 16, 64>}]} {
    %c0_i32 = arith.constant 0 : i32
    %0 = arith.cmpi eq, %arg2, %c0_i32 : i32
    %1 = arith.extui %0 : i1 to i32
    %c0_i32_0 = arith.constant 0 : i32
    %2 = arith.cmpi ne, %1, %c0_i32_0 : i32
    scf.if %2 {
      %cst_10 = arith.constant 0.000000e+00 : f32
      %12 = vector.broadcast %cst_10 : f32 to vector<16x64xf32>
      %c0_11 = arith.constant 0 : index
      %c0_12 = arith.constant 0 : index
      %13 = vector.load %arg7[%c0_11, %c0_12] : memref<16x64xf32, #tpu.memory_space<vmem>>, vector<16x64xf32>
      tpu.vector_store %arg7[%c0_11, %c0_12], %12 {strides = array<i32>} : memref<16x64xf32, #tpu.memory_space<vmem>>, vector<16x64xf32>,
    } else {
    }
    %c0 = arith.constant 0 : index
    %c0_1 = arith.constant 0 : index
    %3 = vector.load %arg7[%c0, %c0_1] : memref<16x64xf32, #tpu.memory_space<vmem>>, vector<16x64xf32>
    %c0_2 = arith.constant 0 : index
    %c0_3 = arith.constant 0 : index
    %4 = vector.load %arg3[%c0_2, %c0_3] : memref<16x32xbf16, #tpu.memory_space<vmem>>, vector<16x32xbf16>
    %c0_4 = arith.constant 0 : index
    %c0_5 = arith.constant 0 : index
    %5 = vector.load %arg4[%c0_4, %c0_5] : memref<32x64xbf16, #tpu.memory_space<vmem>>, vector<32x64xbf16>
    %cst = arith.constant dense<0.000000e+00> : vector<16x64xf32>
    %6 = tpu.matmul %4, %5, %cst {dimension_numbers = #tpu.dot_dimension_numbers<[1], [0], [0], [1], [0, 0, 1, 1], [], []>} : vector<16x32xbf16>, vector<32x64xbf16>, vector<16x64xf32> -> vector<16x64xf32>
    %7 = arith.addf %3, %6 : vector<16x64xf32>
    %c0_6 = arith.constant 0 : index
    %c0_7 = arith.constant 0 : index
    %8 = vector.load %arg7[%c0_6, %c0_7] : memref<16x64xf32, #tpu.memory_space<vmem>>, vector<16x64xf32>
    tpu.vector_store %arg7[%c0_6, %c0_7], %7 {strides = array<i32>} : memref<16x64xf32, #tpu.memory_space<vmem>>, vector<16x64xf32>,
    %c0_i32_8 = arith.constant 0 : i32
    %9 = arith.cmpi eq, %arg2, %c0_i32_8 : i32
    %10 = arith.extui %9 : i1 to i32
    %c0_i32_9 = arith.constant 0 : i32
    %11 = arith.cmpi ne, %10, %c0_i32_9 : i32
    scf.if %11 {
      %c0_10 = arith.constant 0 : index
      %c0_11 = arith.constant 0 : index
      %12 = vector.load %arg7[%c0_10, %c0_11] : memref<16x64xf32, #tpu.memory_space<vmem>>, vector<16x64xf32>
      %c0_12 = arith.constant 0 : index
      %c0_13 = arith.constant 0 : index
      %13 = vector.load %arg5[%c0_12, %c0_13] : memref<1x64xf32, #tpu.memory_space<vmem>>, vector<1x64xf32>
      %14 = vector.broadcast %13 : vector<1x64xf32> to vector<16x64xf32>
      %15 = arith.addf %12, %14 : vector<16x64xf32>
      %c0_14 = arith.constant 0 : index
      %c0_15 = arith.constant 0 : index
      %16 = vector.load %arg6[%c0_14, %c0_15] : memref<16x64xf32, #tpu.memory_space<vmem>>, vector<16x64xf32>
      tpu.vector_store %arg6[%c0_14, %c0_15], %15 {strides = array<i32>} : memref<16x64xf32, #tpu.memory_space<vmem>>, vector<16x64xf32>,
    } else {
    }
    return
  }
  func.func @transform_0(%arg0: i32, %arg1: i32, %arg2: i32) -> (i32, i32) {
    %c0_i32 = arith.constant 0 : i32
    return %arg0, %arg2 : i32, i32
  }
  func.func @transform_1(%arg0: i32, %arg1: i32, %arg2: i32) -> (i32, i32) {
    %c0_i32 = arith.constant 0 : i32
    return %arg2, %arg1 : i32, i32
  }
  func.func @transform_2(%arg0: i32, %arg1: i32, %arg2: i32) -> (i32, i32) {
    %c0_i32 = arith.constant 0 : i32
    %c0_i32_0 = arith.constant 0 : i32
    return %c0_i32, %arg1 : i32, i32
  }
  func.func @transform_3(%arg0: i32, %arg1: i32, %arg2: i32) -> (i32, i32) {
    %c0_i32 = arith.constant 0 : i32
    return %arg0, %arg1 : i32, i32
  }
}

module attributes {stable_mosaic.version = 11 : i64} {
  func.func @_matmul_bias_kernel(%arg0: i32, %arg1: i32, %arg2: i32, %arg3: memref<16x64xbf16, #tpu.memory_space<vmem>>, %arg4: memref<64x32xbf16, #tpu.memory_space<vmem>>, %arg5: memref<1x32xf32, #tpu.memory_space<vmem>>, %arg6: memref<16x32xf32, #tpu.memory_space<vmem>>, %arg7: memref<16x32xf32, #tpu.memory_space<vmem>>) attributes {dimension_semantics = [#tpu.dimension_semantics<parallel>, #tpu.dimension_semantics<parallel>, #tpu.dimension_semantics<arbitrary>], iteration_bounds = array<i64: 1, 1, 1>, scalar_prefetch = 0 : i64, scratch_operands = 1 : i64, tpu.core_type = #tpu.core_type<tc>, window_params = [{transform_indices = @transform_0, window_bounds = array<i64: 16, 64>}, {transform_indices = @transform_1, window_bounds = array<i64: 64, 32>}, {transform_indices = @transform_2, window_bounds = array<i64: 1, 32>}, {transform_indices = @transform_3, window_bounds = array<i64: 16, 32>}]} {
    %c0_i32 = arith.constant 0 : i32
    %0 = arith.cmpi eq, %arg2, %c0_i32 : i32
    %1 = arith.extui %0 : i1 to i32
    %c0_i32_0 = arith.constant 0 : i32
    %2 = arith.cmpi ne, %1, %c0_i32_0 : i32
    scf.if %2 {
      %cst_10 = arith.constant 0.000000e+00 : f32
      %12 = vector.broadcast %cst_10 : f32 to vector<16x32xf32>
      %c0_11 = arith.constant 0 : index
      %c0_12 = arith.constant 0 : index
      %13 = vector.load %arg7[%c0_11, %c0_12] : memref<16x32xf32, #tpu.memory_space<vmem>>, vector<16x32xf32>
      tpu.vector_store %arg7[%c0_11, %c0_12], %12 {strides = array<i32>} : memref<16x32xf32, #tpu.memory_space<vmem>>, vector<16x32xf32>,
    } else {
    }
    %c0 = arith.constant 0 : index
    %c0_1 = arith.constant 0 : index
    %3 = vector.load %arg7[%c0, %c0_1] : memref<16x32xf32, #tpu.memory_space<vmem>>, vector<16x32xf32>
    %c0_2 = arith.constant 0 : index
    %c0_3 = arith.constant 0 : index
    %4 = vector.load %arg3[%c0_2, %c0_3] : memref<16x64xbf16, #tpu.memory_space<vmem>>, vector<16x64xbf16>
    %c0_4 = arith.constant 0 : index
    %c0_5 = arith.constant 0 : index
    %5 = vector.load %arg4[%c0_4, %c0_5] : memref<64x32xbf16, #tpu.memory_space<vmem>>, vector<64x32xbf16>
    %cst = arith.constant dense<0.000000e+00> : vector<16x32xf32>
    %6 = tpu.matmul %4, %5, %cst {dimension_numbers = #tpu.dot_dimension_numbers<[1], [0], [0], [1], [0, 0, 1, 1], [], []>} : vector<16x64xbf16>, vector<64x32xbf16>, vector<16x32xf32> -> vector<16x32xf32>
    %7 = arith.addf %3, %6 : vector<16x32xf32>
    %c0_6 = arith.constant 0 : index
    %c0_7 = arith.constant 0 : index
    %8 = vector.load %arg7[%c0_6, %c0_7] : memref<16x32xf32, #tpu.memory_space<vmem>>, vector<16x32xf32>
    tpu.vector_store %arg7[%c0_6, %c0_7], %7 {strides = array<i32>} : memref<16x32xf32, #tpu.memory_space<vmem>>, vector<16x32xf32>,
    %c0_i32_8 = arith.constant 0 : i32
    %9 = arith.cmpi eq, %arg2, %c0_i32_8 : i32
    %10 = arith.extui %9 : i1 to i32
    %c0_i32_9 = arith.constant 0 : i32
    %11 = arith.cmpi ne, %10, %c0_i32_9 : i32
    scf.if %11 {
      %c0_10 = arith.constant 0 : index
      %c0_11 = arith.constant 0 : index
      %12 = vector.load %arg7[%c0_10, %c0_11] : memref<16x32xf32, #tpu.memory_space<vmem>>, vector<16x32xf32>
      %c0_12 = arith.constant 0 : index
      %c0_13 = arith.constant 0 : index
      %13 = vector.load %arg5[%c0_12, %c0_13] : memref<1x32xf32, #tpu.memory_space<vmem>>, vector<1x32xf32>
      %14 = vector.broadcast %13 : vector<1x32xf32> to vector<16x32xf32>
      %15 = arith.addf %12, %14 : vector<16x32xf32>
      %c0_14 = arith.constant 0 : index
      %c0_15 = arith.constant 0 : index
      %16 = vector.load %arg6[%c0_14, %c0_15] : memref<16x32xf32, #tpu.memory_space<vmem>>, vector<16x32xf32>
      tpu.vector_store %arg6[%c0_14, %c0_15], %15 {strides = array<i32>} : memref<16x32xf32, #tpu.memory_space<vmem>>, vector<16x32xf32>,
    } else {
    }
    return
  }
  func.func @transform_0(%arg0: i32, %arg1: i32, %arg2: i32) -> (i32, i32) {
    %c0_i32 = arith.constant 0 : i32
    return %arg0, %arg2 : i32, i32
  }
  func.func @transform_1(%arg0: i32, %arg1: i32, %arg2: i32) -> (i32, i32) {
    %c0_i32 = arith.constant 0 : i32
    return %arg2, %arg1 : i32, i32
  }
  func.func @transform_2(%arg0: i32, %arg1: i32, %arg2: i32) -> (i32, i32) {
    %c0_i32 = arith.constant 0 : i32
    %c0_i32_0 = arith.constant 0 : i32
    return %c0_i32, %arg1 : i32, i32
  }
  func.func @transform_3(%arg0: i32, %arg1: i32, %arg2: i32) -> (i32, i32) {
    %c0_i32 = arith.constant 0 : i32
    return %arg0, %arg1 : i32, i32
  }
}

module attributes {stable_mosaic.version = 11 : i64} {
  func.func @_add_double_ln_kernel(%arg0: i32, %arg1: memref<16x32xf32, #tpu.memory_space<vmem>>, %arg2: memref<16x32xf32, #tpu.memory_space<vmem>>, %arg3: memref<1x32xf32, #tpu.memory_space<vmem>>, %arg4: memref<1x32xf32, #tpu.memory_space<vmem>>, %arg5: memref<1x32xf32, #tpu.memory_space<vmem>>, %arg6: memref<1x32xf32, #tpu.memory_space<vmem>>, %arg7: memref<16x32xf32, #tpu.memory_space<vmem>>) attributes {dimension_semantics = [#tpu.dimension_semantics<parallel>], iteration_bounds = array<i64: 1>, scalar_prefetch = 0 : i64, scratch_operands = 0 : i64, tpu.core_type = #tpu.core_type<tc>, window_params = [{transform_indices = @transform_0, window_bounds = array<i64: 16, 32>}, {transform_indices = @transform_1, window_bounds = array<i64: 16, 32>}, {pipeline_mode = #tpu.pipeline_mode<synchronous>, transform_indices = @transform_2, window_bounds = array<i64: 1, 32>}, {pipeline_mode = #tpu.pipeline_mode<synchronous>, transform_indices = @transform_3, window_bounds = array<i64: 1, 32>}, {pipeline_mode = #tpu.pipeline_mode<synchronous>, transform_indices = @transform_4, window_bounds = array<i64: 1, 32>}, {pipeline_mode = #tpu.pipeline_mode<synchronous>, transform_indices = @transform_5, window_bounds = array<i64: 1, 32>}, {transform_indices = @transform_6, window_bounds = array<i64: 16, 32>}]} {
    %c0 = arith.constant 0 : index
    %c0_0 = arith.constant 0 : index
    %0 = vector.load %arg1[%c0, %c0_0] : memref<16x32xf32, #tpu.memory_space<vmem>>, vector<16x32xf32>
    %c0_1 = arith.constant 0 : index
    %c0_2 = arith.constant 0 : index
    %1 = vector.load %arg2[%c0_1, %c0_2] : memref<16x32xf32, #tpu.memory_space<vmem>>, vector<16x32xf32>
    %2 = arith.addf %0, %1 : vector<16x32xf32>
    %cst = arith.constant dense<0.000000e+00> : vector<16xf32>
    %3 = vector.multi_reduction <add>, %2, %cst [1] : vector<16x32xf32> to vector<16xf32>
    %4 = vector.shape_cast %3 : vector<16xf32> to vector<16x1xf32>
    %5 = arith.mulf %2, %2 : vector<16x32xf32>
    %cst_3 = arith.constant dense<0.000000e+00> : vector<16xf32>
    %6 = vector.multi_reduction <add>, %5, %cst_3 [1] : vector<16x32xf32> to vector<16xf32>
    %7 = vector.shape_cast %6 : vector<16xf32> to vector<16x1xf32>
    %cst_4 = arith.constant 3.125000e-02 : f32
    %8 = vector.broadcast %cst_4 : f32 to vector<16x1xf32>
    %9 = arith.mulf %4, %8 : vector<16x1xf32>
    %cst_5 = arith.constant 3.125000e-02 : f32
    %10 = vector.broadcast %cst_5 : f32 to vector<16x1xf32>
    %11 = arith.mulf %7, %10 : vector<16x1xf32>
    %12 = arith.mulf %9, %9 : vector<16x1xf32>
    %13 = arith.subf %11, %12 : vector<16x1xf32>
    %cst_6 = arith.constant 0.000000e+00 : f32
    %14 = vector.broadcast %cst_6 : f32 to vector<16x1xf32>
    %15 = arith.maximumf %13, %14 : vector<16x1xf32>
    %cst_7 = arith.constant 9.99999974E-6 : f32
    %16 = vector.broadcast %cst_7 : f32 to vector<16x1xf32>
    %17 = arith.addf %15, %16 : vector<16x1xf32>
    %18 = math.rsqrt %17 : vector<16x1xf32>
    %19 = vector.broadcast %9 : vector<16x1xf32> to vector<16x32xf32>
    %20 = arith.subf %2, %19 : vector<16x32xf32>
    %21 = vector.broadcast %18 : vector<16x1xf32> to vector<16x32xf32>
    %22 = arith.mulf %20, %21 : vector<16x32xf32>
    %c0_8 = arith.constant 0 : index
    %c0_9 = arith.constant 0 : index
    %23 = vector.load %arg3[%c0_8, %c0_9] : memref<1x32xf32, #tpu.memory_space<vmem>>, vector<1x32xf32>
    %24 = vector.broadcast %23 : vector<1x32xf32> to vector<16x32xf32>
    %25 = arith.mulf %22, %24 : vector<16x32xf32>
    %c0_10 = arith.constant 0 : index
    %c0_11 = arith.constant 0 : index
    %26 = vector.load %arg4[%c0_10, %c0_11] : memref<1x32xf32, #tpu.memory_space<vmem>>, vector<1x32xf32>
    %27 = vector.broadcast %26 : vector<1x32xf32> to vector<16x32xf32>
    %28 = arith.addf %25, %27 : vector<16x32xf32>
    %cst_12 = arith.constant dense<0.000000e+00> : vector<16xf32>
    %29 = vector.multi_reduction <add>, %28, %cst_12 [1] : vector<16x32xf32> to vector<16xf32>
    %30 = vector.shape_cast %29 : vector<16xf32> to vector<16x1xf32>
    %31 = arith.mulf %28, %28 : vector<16x32xf32>
    %cst_13 = arith.constant dense<0.000000e+00> : vector<16xf32>
    %32 = vector.multi_reduction <add>, %31, %cst_13 [1] : vector<16x32xf32> to vector<16xf32>
    %33 = vector.shape_cast %32 : vector<16xf32> to vector<16x1xf32>
    %cst_14 = arith.constant 3.125000e-02 : f32
    %34 = vector.broadcast %cst_14 : f32 to vector<16x1xf32>
    %35 = arith.mulf %30, %34 : vector<16x1xf32>
    %cst_15 = arith.constant 3.125000e-02 : f32
    %36 = vector.broadcast %cst_15 : f32 to vector<16x1xf32>
    %37 = arith.mulf %33, %36 : vector<16x1xf32>
    %38 = arith.mulf %35, %35 : vector<16x1xf32>
    %39 = arith.subf %37, %38 : vector<16x1xf32>
    %cst_16 = arith.constant 0.000000e+00 : f32
    %40 = vector.broadcast %cst_16 : f32 to vector<16x1xf32>
    %41 = arith.maximumf %39, %40 : vector<16x1xf32>
    %cst_17 = arith.constant 9.99999974E-6 : f32
    %42 = vector.broadcast %cst_17 : f32 to vector<16x1xf32>
    %43 = arith.addf %41, %42 : vector<16x1xf32>
    %44 = math.rsqrt %43 : vector<16x1xf32>
    %45 = vector.broadcast %35 : vector<16x1xf32> to vector<16x32xf32>
    %46 = arith.subf %28, %45 : vector<16x32xf32>
    %47 = vector.broadcast %44 : vector<16x1xf32> to vector<16x32xf32>
    %48 = arith.mulf %46, %47 : vector<16x32xf32>
    %c0_18 = arith.constant 0 : index
    %c0_19 = arith.constant 0 : index
    %49 = vector.load %arg5[%c0_18, %c0_19] : memref<1x32xf32, #tpu.memory_space<vmem>>, vector<1x32xf32>
    %50 = vector.broadcast %49 : vector<1x32xf32> to vector<16x32xf32>
    %51 = arith.mulf %48, %50 : vector<16x32xf32>
    %c0_20 = arith.constant 0 : index
    %c0_21 = arith.constant 0 : index
    %52 = vector.load %arg6[%c0_20, %c0_21] : memref<1x32xf32, #tpu.memory_space<vmem>>, vector<1x32xf32>
    %53 = vector.broadcast %52 : vector<1x32xf32> to vector<16x32xf32>
    %54 = arith.addf %51, %53 : vector<16x32xf32>
    %c0_22 = arith.constant 0 : index
    %c0_23 = arith.constant 0 : index
    %55 = vector.load %arg7[%c0_22, %c0_23] : memref<16x32xf32, #tpu.memory_space<vmem>>, vector<16x32xf32>
    tpu.vector_store %arg7[%c0_22, %c0_23], %54 {strides = array<i32>} : memref<16x32xf32, #tpu.memory_space<vmem>>, vector<16x32xf32>,
    return
  }
  func.func @transform_0(%arg0: i32) -> (i32, i32) {
    %c0_i32 = arith.constant 0 : i32
    %c0_i32_0 = arith.constant 0 : i32
    return %arg0, %c0_i32 : i32, i32
  }
  func.func @transform_1(%arg0: i32) -> (i32, i32) {
    %c0_i32 = arith.constant 0 : i32
    %c0_i32_0 = arith.constant 0 : i32
    return %arg0, %c0_i32 : i32, i32
  }
  func.func @transform_2(%arg0: i32) -> (i32, i32) {
    %c0_i32 = arith.constant 0 : i32
    %c0_i32_0 = arith.constant 0 : i32
    %c0_i32_1 = arith.constant 0 : i32
    return %c0_i32, %c0_i32_0 : i32, i32
  }
  func.func @transform_3(%arg0: i32) -> (i32, i32) {
    %c0_i32 = arith.constant 0 : i32
    %c0_i32_0 = arith.constant 0 : i32
    %c0_i32_1 = arith.constant 0 : i32
    return %c0_i32, %c0_i32_0 : i32, i32
  }
  func.func @transform_4(%arg0: i32) -> (i32, i32) {
    %c0_i32 = arith.constant 0 : i32
    %c0_i32_0 = arith.constant 0 : i32
    %c0_i32_1 = arith.constant 0 : i32
    return %c0_i32, %c0_i32_0 : i32, i32
  }
  func.func @transform_5(%arg0: i32) -> (i32, i32) {
    %c0_i32 = arith.constant 0 : i32
    %c0_i32_0 = arith.constant 0 : i32
    %c0_i32_1 = arith.constant 0 : i32
    return %c0_i32, %c0_i32_0 : i32, i32
  }
  func.func @transform_6(%arg0: i32) -> (i32, i32) {
    %c0_i32 = arith.constant 0 : i32
    %c0_i32_0 = arith.constant 0 : i32
    return %arg0, %c0_i32 : i32, i32
  }
}

module attributes {stable_mosaic.version = 11 : i64} {
  func.func @_matmul_bias_kernel(%arg0: i32, %arg1: i32, %arg2: i32, %arg3: memref<16x32xbf16, #tpu.memory_space<vmem>>, %arg4: memref<32x32xbf16, #tpu.memory_space<vmem>>, %arg5: memref<1x32xf32, #tpu.memory_space<vmem>>, %arg6: memref<16x32xf32, #tpu.memory_space<vmem>>, %arg7: memref<16x32xf32, #tpu.memory_space<vmem>>) attributes {dimension_semantics = [#tpu.dimension_semantics<parallel>, #tpu.dimension_semantics<parallel>, #tpu.dimension_semantics<arbitrary>], iteration_bounds = array<i64: 1, 1, 1>, scalar_prefetch = 0 : i64, scratch_operands = 1 : i64, tpu.core_type = #tpu.core_type<tc>, window_params = [{transform_indices = @transform_0, window_bounds = array<i64: 16, 32>}, {transform_indices = @transform_1, window_bounds = array<i64: 32, 32>}, {transform_indices = @transform_2, window_bounds = array<i64: 1, 32>}, {transform_indices = @transform_3, window_bounds = array<i64: 16, 32>}]} {
    %c0_i32 = arith.constant 0 : i32
    %0 = arith.cmpi eq, %arg2, %c0_i32 : i32
    %1 = arith.extui %0 : i1 to i32
    %c0_i32_0 = arith.constant 0 : i32
    %2 = arith.cmpi ne, %1, %c0_i32_0 : i32
    scf.if %2 {
      %cst_10 = arith.constant 0.000000e+00 : f32
      %12 = vector.broadcast %cst_10 : f32 to vector<16x32xf32>
      %c0_11 = arith.constant 0 : index
      %c0_12 = arith.constant 0 : index
      %13 = vector.load %arg7[%c0_11, %c0_12] : memref<16x32xf32, #tpu.memory_space<vmem>>, vector<16x32xf32>
      tpu.vector_store %arg7[%c0_11, %c0_12], %12 {strides = array<i32>} : memref<16x32xf32, #tpu.memory_space<vmem>>, vector<16x32xf32>,
    } else {
    }
    %c0 = arith.constant 0 : index
    %c0_1 = arith.constant 0 : index
    %3 = vector.load %arg7[%c0, %c0_1] : memref<16x32xf32, #tpu.memory_space<vmem>>, vector<16x32xf32>
    %c0_2 = arith.constant 0 : index
    %c0_3 = arith.constant 0 : index
    %4 = vector.load %arg3[%c0_2, %c0_3] : memref<16x32xbf16, #tpu.memory_space<vmem>>, vector<16x32xbf16>
    %c0_4 = arith.constant 0 : index
    %c0_5 = arith.constant 0 : index
    %5 = vector.load %arg4[%c0_4, %c0_5] : memref<32x32xbf16, #tpu.memory_space<vmem>>, vector<32x32xbf16>
    %cst = arith.constant dense<0.000000e+00> : vector<16x32xf32>
    %6 = tpu.matmul %4, %5, %cst {dimension_numbers = #tpu.dot_dimension_numbers<[1], [0], [0], [1], [0, 0, 1, 1], [], []>} : vector<16x32xbf16>, vector<32x32xbf16>, vector<16x32xf32> -> vector<16x32xf32>
    %7 = arith.addf %3, %6 : vector<16x32xf32>
    %c0_6 = arith.constant 0 : index
    %c0_7 = arith.constant 0 : index
    %8 = vector.load %arg7[%c0_6, %c0_7] : memref<16x32xf32, #tpu.memory_space<vmem>>, vector<16x32xf32>
    tpu.vector_store %arg7[%c0_6, %c0_7], %7 {strides = array<i32>} : memref<16x32xf32, #tpu.memory_space<vmem>>, vector<16x32xf32>,
    %c0_i32_8 = arith.constant 0 : i32
    %9 = arith.cmpi eq, %arg2, %c0_i32_8 : i32
    %10 = arith.extui %9 : i1 to i32
    %c0_i32_9 = arith.constant 0 : i32
    %11 = arith.cmpi ne, %10, %c0_i32_9 : i32
    scf.if %11 {
      %c0_10 = arith.constant 0 : index
      %c0_11 = arith.constant 0 : index
      %12 = vector.load %arg7[%c0_10, %c0_11] : memref<16x32xf32, #tpu.memory_space<vmem>>, vector<16x32xf32>
      %c0_12 = arith.constant 0 : index
      %c0_13 = arith.constant 0 : index
      %13 = vector.load %arg5[%c0_12, %c0_13] : memref<1x32xf32, #tpu.memory_space<vmem>>, vector<1x32xf32>
      %14 = vector.broadcast %13 : vector<1x32xf32> to vector<16x32xf32>
      %15 = arith.addf %12, %14 : vector<16x32xf32>
      %c0_14 = arith.constant 0 : index
      %c0_15 = arith.constant 0 : index
      %16 = vector.load %arg6[%c0_14, %c0_15] : memref<16x32xf32, #tpu.memory_space<vmem>>, vector<16x32xf32>
      tpu.vector_store %arg6[%c0_14, %c0_15], %15 {strides = array<i32>} : memref<16x32xf32, #tpu.memory_space<vmem>>, vector<16x32xf32>,
    } else {
    }
    return
  }
  func.func @transform_0(%arg0: i32, %arg1: i32, %arg2: i32) -> (i32, i32) {
    %c0_i32 = arith.constant 0 : i32
    return %arg0, %arg2 : i32, i32
  }
  func.func @transform_1(%arg0: i32, %arg1: i32, %arg2: i32) -> (i32, i32) {
    %c0_i32 = arith.constant 0 : i32
    return %arg2, %arg1 : i32, i32
  }
  func.func @transform_2(%arg0: i32, %arg1: i32, %arg2: i32) -> (i32, i32) {
    %c0_i32 = arith.constant 0 : i32
    %c0_i32_0 = arith.constant 0 : i32
    return %c0_i32, %arg1 : i32, i32
  }
  func.func @transform_3(%arg0: i32, %arg1: i32, %arg2: i32) -> (i32, i32) {
    %c0_i32 = arith.constant 0 : i32
    return %arg0, %arg1 : i32, i32
  }
}

module attributes {stable_mosaic.version = 11 : i64} {
  func.func @_ln_kernel(%arg0: i32, %arg1: memref<16x32xf32, #tpu.memory_space<vmem>>, %arg2: memref<1x32xf32, #tpu.memory_space<vmem>>, %arg3: memref<1x32xf32, #tpu.memory_space<vmem>>, %arg4: memref<16x32xf32, #tpu.memory_space<vmem>>) attributes {dimension_semantics = [#tpu.dimension_semantics<parallel>], iteration_bounds = array<i64: 1>, scalar_prefetch = 0 : i64, scratch_operands = 0 : i64, tpu.core_type = #tpu.core_type<tc>, window_params = [{transform_indices = @transform_0, window_bounds = array<i64: 16, 32>}, {pipeline_mode = #tpu.pipeline_mode<synchronous>, transform_indices = @transform_1, window_bounds = array<i64: 1, 32>}, {pipeline_mode = #tpu.pipeline_mode<synchronous>, transform_indices = @transform_2, window_bounds = array<i64: 1, 32>}, {transform_indices = @transform_3, window_bounds = array<i64: 16, 32>}]} {
    %c0 = arith.constant 0 : index
    %c0_0 = arith.constant 0 : index
    %0 = vector.load %arg1[%c0, %c0_0] : memref<16x32xf32, #tpu.memory_space<vmem>>, vector<16x32xf32>
    %cst = arith.constant dense<0.000000e+00> : vector<16xf32>
    %1 = vector.multi_reduction <add>, %0, %cst [1] : vector<16x32xf32> to vector<16xf32>
    %2 = vector.shape_cast %1 : vector<16xf32> to vector<16x1xf32>
    %3 = arith.mulf %0, %0 : vector<16x32xf32>
    %cst_1 = arith.constant dense<0.000000e+00> : vector<16xf32>
    %4 = vector.multi_reduction <add>, %3, %cst_1 [1] : vector<16x32xf32> to vector<16xf32>
    %5 = vector.shape_cast %4 : vector<16xf32> to vector<16x1xf32>
    %cst_2 = arith.constant 3.125000e-02 : f32
    %6 = vector.broadcast %cst_2 : f32 to vector<16x1xf32>
    %7 = arith.mulf %2, %6 : vector<16x1xf32>
    %cst_3 = arith.constant 3.125000e-02 : f32
    %8 = vector.broadcast %cst_3 : f32 to vector<16x1xf32>
    %9 = arith.mulf %5, %8 : vector<16x1xf32>
    %10 = arith.mulf %7, %7 : vector<16x1xf32>
    %11 = arith.subf %9, %10 : vector<16x1xf32>
    %cst_4 = arith.constant 0.000000e+00 : f32
    %12 = vector.broadcast %cst_4 : f32 to vector<16x1xf32>
    %13 = arith.maximumf %11, %12 : vector<16x1xf32>
    %cst_5 = arith.constant 9.99999974E-6 : f32
    %14 = vector.broadcast %cst_5 : f32 to vector<16x1xf32>
    %15 = arith.addf %13, %14 : vector<16x1xf32>
    %16 = math.rsqrt %15 : vector<16x1xf32>
    %17 = vector.broadcast %7 : vector<16x1xf32> to vector<16x32xf32>
    %18 = arith.subf %0, %17 : vector<16x32xf32>
    %19 = vector.broadcast %16 : vector<16x1xf32> to vector<16x32xf32>
    %20 = arith.mulf %18, %19 : vector<16x32xf32>
    %c0_6 = arith.constant 0 : index
    %c0_7 = arith.constant 0 : index
    %21 = vector.load %arg2[%c0_6, %c0_7] : memref<1x32xf32, #tpu.memory_space<vmem>>, vector<1x32xf32>
    %22 = vector.broadcast %21 : vector<1x32xf32> to vector<16x32xf32>
    %23 = arith.mulf %20, %22 : vector<16x32xf32>
    %c0_8 = arith.constant 0 : index
    %c0_9 = arith.constant 0 : index
    %24 = vector.load %arg3[%c0_8, %c0_9] : memref<1x32xf32, #tpu.memory_space<vmem>>, vector<1x32xf32>
    %25 = vector.broadcast %24 : vector<1x32xf32> to vector<16x32xf32>
    %26 = arith.addf %23, %25 : vector<16x32xf32>
    %c0_10 = arith.constant 0 : index
    %c0_11 = arith.constant 0 : index
    %27 = vector.load %arg4[%c0_10, %c0_11] : memref<16x32xf32, #tpu.memory_space<vmem>>, vector<16x32xf32>
    tpu.vector_store %arg4[%c0_10, %c0_11], %26 {strides = array<i32>} : memref<16x32xf32, #tpu.memory_space<vmem>>, vector<16x32xf32>,
    return
  }
  func.func @transform_0(%arg0: i32) -> (i32, i32) {
    %c0_i32 = arith.constant 0 : i32
    %c0_i32_0 = arith.constant 0 : i32
    return %arg0, %c0_i32 : i32, i32
  }
  func.func @transform_1(%arg0: i32) -> (i32, i32) {
    %c0_i32 = arith.constant 0 : i32
    %c0_i32_0 = arith.constant 0 : i32
    %c0_i32_1 = arith.constant 0 : i32
    return %c0_i32, %c0_i32_0 : i32, i32
  }
  func.func @transform_2(%arg0: i32) -> (i32, i32) {
    %c0_i32 = arith.constant 0 : i32
    %c0_i32_0 = arith.constant 0 : i32
    %c0_i32_1 = arith.constant 0 : i32
    return %c0_i32, %c0_i32_0 : i32, i32
  }
  func.func @transform_3(%arg0: i32) -> (i32, i32) {
    %c0_i32 = arith.constant 0 : i32
    %c0_i32_0 = arith.constant 0 : i32
    return %arg0, %c0_i32 : i32, i32
  }
}

</mosaic_0001>

<llo_original>
// kernel: forward.21
$region0: #{forward.21}
  #allocation0 [shape = 'u32[]', space=smem, size = 0x4, offset = 0x4, fixed_abs, tag = 'smem constant byte address 0x4 - core index']
  #allocation1 [shape = 'u32[144,128]{1,0:T(1,128)}', space=vmem, size = 0x12000, scoped, tag = 'internal scratch']
  #allocation2 [shape = 'f32[16,32]{1,0:T(8,128)}', space=vmem, size = 0x2000, scoped, tag = 'scratch operand']
  %s0 = inlined_call_operand.vmem [shape: bf16[16,96], index: 0, kind: input, shape index: {}]
  %s1 = inlined_call_operand.vmem [shape: bf16[96,32], index: 1, kind: input, shape index: {}]
  %s2 = inlined_call_operand.vmem [shape: f32[16,32], index: 2, kind: output, shape index: {}]
  %s3 = sld [smem:[#allocation0]]
  $region26: #{forward.21} parent=0
    _
  %s5 = ssub.s32 1, %s3
  %s6 = scalar_select 0, %s5, %s3
  // Predicated region
  $region2: #{forward.21} parent=0 // pred_check
    _
  $region3: #{forward.21} parent=0 // pred_check_branch
    %8 = sbr.rel (0) target = $region5
  $region4: #{forward.21} parent=0 // pred_region
    _
  $region5: #{forward.21} parent=0 // pred_fallthru
    _
  // Predicated region
  $region6: #{forward.21} parent=0 // pred_check
    _
  $region7: #{forward.21} parent=0 // pred_check_branch
    %10 = sbr.rel (0) target = $region9
  $region8: #{forward.21} parent=0 // pred_region
    _
  $region9: #{forward.21} parent=0 // pred_fallthru
    _
  %p12 = scmp.eq.s32.totalorder 0, 0
  // Predicated region
  $region10: #{forward.21} parent=0 // pred_check
    %p13 = pneg %p12
  $region11: #{forward.21} parent=0 // pred_check_branch
    %15 = sbr.rel (%p13) target = $region13
  $region12: #{forward.21} parent=0 // pred_region
    %vm16 = vcmask 261120
    %17 = vst.msk [vmem:[#allocation2] sm:$0xff] %vm16, 0.0
    %18 = vst.msk [vmem:[#allocation2 + $0x8] sm:$0xff] %vm16, 0.0
  $region13: #{forward.21} parent=0 // pred_fallthru
    _
  %v19 = vld [vmem:[#allocation2] sm:$0xff]
  %v20 = vld [vmem:[#allocation2 + $0x8] sm:$0xff]
  %v21 = vld [vmem:[%s0] sm:$0xf]
  %v22 = vld [vmem:[%s0 + $0x4] sm:$0xf]
  %v23 = vld [vmem:[%s1] sm:$0xf]
  %v24 = vld [vmem:[%s1 + $0x4] sm:$0xf]
  %v25 = vld [vmem:[%s1 + $0x8] sm:$0xf]
  %v26 = vld [vmem:[%s1 + $0xc] sm:$0xf]
  %v27 = vld [vmem:[%s1 + $0x10] sm:$0xf]
  %v28 = vld [vmem:[%s1 + $0x14] sm:$0xf]
  %v29 = vld [vmem:[%s1 + $0x18] sm:$0xf]
  %v30 = vld [vmem:[%s1 + $0x1c] sm:$0xf]
  %v31 = vld [vmem:[%s1 + $0x20] sm:$0xf]
  %v32 = vld [vmem:[%s1 + $0x24] sm:$0xf]
  %v33 = vld [vmem:[%s1 + $0x28] sm:$0xf]
  %v34 = vld [vmem:[%s1 + $0x2c] sm:$0xf]
  %v37 = vunpack.c.l.b16 %v21
  %v38 = vunpack.c.l.b16 %v22
  %v39 = vpack.c.b16 %v38, %v37
  %v52 = vunpack.c.l.b16 %v23
  %v53 = vunpack.c.l.b16 %v24
  %v54 = vunpack.c.l.b16 %v25
  %v55 = vunpack.c.l.b16 %v26
  %v56 = vunpack.c.l.b16 %v27
  %v57 = vunpack.c.l.b16 %v28
  %v58 = vunpack.c.l.b16 %v29
  %v59 = vunpack.c.l.b16 %v30
  %v60 = vunpack.c.l.b16 %v31
  %v61 = vunpack.c.l.b16 %v32
  %v62 = vunpack.c.l.b16 %v33
  %v63 = vunpack.c.l.b16 %v34
  %v64 = vpack.c.b16 %v53, %v52
  %v65 = vpack.c.b16 %v55, %v54
  %v66 = vpack.c.b16 %v57, %v56
  %v67 = vpack.c.b16 %v59, %v58
  %v68 = vpack.c.b16 %v61, %v60
  %v69 = vpack.c.b16 %v63, %v62
  %vm76 = vcmask 785408
  %v78 = vsel %vm76, %v39, 0
  %80 = vmatprep.subr.bf16.mxu0 0
  %81 = vmatpush1.bf16.msra.mxu0 0
  %82 = vmatprep.subr.bf16.mxu0 0
  %83 = vmatpush1.bf16.msra.mxu0 0
  %84 = vmatprep.subr.bf16.mxu0 0
  %85 = vmatpush1.bf16.msra.mxu0 %v69
  %86 = vmatprep.subr.bf16.mxu0 0
  %87 = vmatpush1.bf16.msra.mxu0 %v68
  %88 = vmatprep.subr.bf16.mxu0 0
  %89 = vmatpush1.bf16.msra.mxu0 %v67
  %90 = vmatprep.subr.bf16.mxu0 0
  %91 = vmatpush1.bf16.msra.mxu0 %v66
  %92 = vmatprep.subr.bf16.mxu0 0
  %93 = vmatpush1.bf16.msra.mxu0 %v65
  %94 = vmatprep.subr.bf16.mxu0 0
  %95 = vmatpush1.bf16.msra.mxu0 %v64
  %96 = vmatprep.subr.bf16.mxu0 0
  %97 = vmatpush2.bf16.msra.mxu0 0
  %98 = vmatprep.subr.bf16.mxu0 0
  %99 = vmatpush2.bf16.msra.mxu0 0
  %100 = vmatprep.subr.bf16.mxu0 0
  %101 = vmatpush2.bf16.msra.mxu0 0
  %102 = vmatprep.subr.bf16.mxu0 0
  %103 = vmatpush2.bf16.msra.mxu0 0
  %104 = vmatprep.subr.bf16.mxu0 0
  %105 = vmatpush2.bf16.msra.mxu0 0
  %106 = vmatprep.subr.bf16.mxu0 0
  %107 = vmatpush2.bf16.msra.mxu0 0
  %108 = vmatprep.subr.bf16.mxu0 0
  %109 = vmatpush2.bf16.msra.mxu0 0
  %110 = vmatprep.subr.bf16.mxu0 0
  %111 = vmatpush2.bf16.msra.mxu0 0
  %112 = vmatprep.mubr.bf16.mxu0 0
  %113 = vmatmul.mubr.bf16.gmra.mxu0 %v78
  %v114 = vpop.f32.mrf.mxu0
  %v115 = vadd.f32 0.0, %v114
  %v116 = vpop.f32.mrf.mxu0
  %v117 = vpop.f32.mrf.mxu0
  %v118 = vadd.f32 0.0, %v117
  %v119 = vpop.f32.mrf.mxu0
  %120 = vdwg.mxu0
  %v121 = vadd.f32 %v19, %v115
  %v122 = vadd.f32 %v20, %v118
  %vm123 = vcmask 261120
  %124 = vst.msk [vmem:[#allocation2] sm:$0xff] %vm123, %v121
  %125 = vst.msk [vmem:[#allocation2 + $0x8] sm:$0xff] %vm123, %v122
  // Predicated region
  $region14: #{forward.21} parent=0 // pred_check
    %p126 = pneg %p12
  $region15: #{forward.21} parent=0 // pred_check_branch
    %128 = sbr.rel (%p126) target = $region17
  $region16: #{forward.21} parent=0 // pred_region
    %v129 = vld [vmem:[#allocation2] sm:$0xff]
    %v130 = vld [vmem:[#allocation2 + $0x8] sm:$0xff]
    %131 = vst.msk [vmem:[%s2] sm:$0xff] %vm123, %v129
    %132 = vst.msk [vmem:[%s2 + $0x8] sm:$0xff] %vm123, %v130
  $region17: #{forward.21} parent=0 // pred_fallthru
    _
  // Predicated region
  $region18: #{forward.21} parent=0 // pred_check
    _
  $region19: #{forward.21} parent=0 // pred_check_branch
    %134 = sbr.rel (0) target = $region21
  $region20: #{forward.21} parent=0 // pred_region
    _
  $region21: #{forward.21} parent=0 // pred_fallthru
    _
  // Predicated region
  $region22: #{forward.21} parent=0 // pred_check
    _
  $region23: #{forward.21} parent=0 // pred_check_branch
    %136 = sbr.rel (0) target = $region25
  $region24: #{forward.21} parent=0 // pred_region
    _
  $region25: #{forward.21} parent=0 // pred_fallthru
    _

// kernel: forward.18
$region0: #{forward.18}
  #allocation0 [shape = 'u32[]', space=smem, size = 0x4, offset = 0x4, fixed_abs, tag = 'smem constant byte address 0x4 - core index']
  #allocation1 [shape = 'u32[144,128]{1,0:T(1,128)}', space=vmem, size = 0x12000, scoped, tag = 'internal scratch']
  #allocation2 [shape = 'f32[16,96]{1,0:T(8,128)}', space=vmem, size = 0x2000, scoped, tag = 'scratch operand']
  %s0 = inlined_call_operand.vmem [shape: bf16[16,32], index: 0, kind: input, shape index: {}]
  %s1 = inlined_call_operand.vmem [shape: bf16[32,96], index: 1, kind: input, shape index: {}]
  %s2 = inlined_call_operand.vmem [shape: f32[1,96], index: 2, kind: input, shape index: {}]
  %s3 = inlined_call_operand.vmem [shape: bf16[16,96], index: 3, kind: output, shape index: {}]
  %s4 = sld [smem:[#allocation0]]
  $region30: #{forward.18} parent=0
    _
  %s6 = ssub.s32 1, %s4
  %s7 = scalar_select 0, %s6, %s4
  // Predicated region
  $region2: #{forward.18} parent=0 // pred_check
    _
  $region3: #{forward.18} parent=0 // pred_check_branch
    %9 = sbr.rel (0) target = $region5
  $region4: #{forward.18} parent=0 // pred_region
    _
  $region5: #{forward.18} parent=0 // pred_fallthru
    _
  // Predicated region
  $region6: #{forward.18} parent=0 // pred_check
    _
  $region7: #{forward.18} parent=0 // pred_check_branch
    %11 = sbr.rel (0) target = $region9
  $region8: #{forward.18} parent=0 // pred_region
    _
  $region9: #{forward.18} parent=0 // pred_fallthru
    _
  // Predicated region
  $region10: #{forward.18} parent=0 // pred_check
    _
  $region11: #{forward.18} parent=0 // pred_check_branch
    %13 = sbr.rel (0) target = $region13
  $region12: #{forward.18} parent=0 // pred_region
    _
  $region13: #{forward.18} parent=0 // pred_fallthru
    _
  %p15 = scmp.eq.s32.totalorder 0, 0
  // Predicated region
  $region14: #{forward.18} parent=0 // pred_check
    %p16 = pneg %p15
  $region15: #{forward.18} parent=0 // pred_check_branch
    %18 = sbr.rel (%p16) target = $region17
  $region16: #{forward.18} parent=0 // pred_region
    %vm19 = vcmask 785408
    %20 = vst.msk [vmem:[#allocation2] sm:$0xff] %vm19, 0.0
    %21 = vst.msk [vmem:[#allocation2 + $0x8] sm:$0xff] %vm19, 0.0
  $region17: #{forward.18} parent=0 // pred_fallthru
    _
  %v22 = vld [vmem:[#allocation2] sm:$0xff]
  %v23 = vld [vmem:[#allocation2 + $0x8] sm:$0xff]
  %v24 = vld [vmem:[%s0] sm:$0xf]
  %v25 = vld [vmem:[%s0 + $0x4] sm:$0xf]
  %v26 = vld [vmem:[%s1] sm:$0xf]
  %v27 = vld [vmem:[%s1 + $0x4] sm:$0xf]
  %v28 = vld [vmem:[%s1 + $0x8] sm:$0xf]
  %v29 = vld [vmem:[%s1 + $0xc] sm:$0xf]
  %v32 = vunpack.c.l.b16 %v24
  %v33 = vunpack.c.l.b16 %v25
  %v34 = vpack.c.b16 %v33, %v32
  %v39 = vunpack.c.l.b16 %v26
  %v40 = vunpack.c.l.b16 %v27
  %v41 = vunpack.c.l.b16 %v28
  %v42 = vunpack.c.l.b16 %v29
  %v43 = vpack.c.b16 %v40, %v39
  %v44 = vpack.c.b16 %v42, %v41
  %vm47 = vcmask 261120
  %v49 = vsel %vm47, %v34, 0
  %51 = vmatprep.subr.bf16.mxu0 0
  %52 = vmatpush1.bf16.msra.mxu0 0
  %53 = vmatprep.subr.bf16.mxu0 0
  %54 = vmatpush1.bf16.msra.mxu0 0
  %55 = vmatprep.subr.bf16.mxu0 0
  %56 = vmatpush1.bf16.msra.mxu0 0
  %57 = vmatprep.subr.bf16.mxu0 0
  %58 = vmatpush1.bf16.msra.mxu0 0
  %59 = vmatprep.subr.bf16.mxu0 0
  %60 = vmatpush1.bf16.msra.mxu0 0
  %61 = vmatprep.subr.bf16.mxu0 0
  %62 = vmatpush1.bf16.msra.mxu0 0
  %63 = vmatprep.subr.bf16.mxu0 0
  %64 = vmatpush1.bf16.msra.mxu0 %v44
  %65 = vmatprep.subr.bf16.mxu0 0
  %66 = vmatpush1.bf16.msra.mxu0 %v43
  %67 = vmatprep.subr.bf16.mxu0 0
  %68 = vmatpush2.bf16.msra.mxu0 0
  %69 = vmatprep.subr.bf16.mxu0 0
  %70 = vmatpush2.bf16.msra.mxu0 0
  %71 = vmatprep.subr.bf16.mxu0 0
  %72 = vmatpush2.bf16.msra.mxu0 0
  %73 = vmatprep.subr.bf16.mxu0 0
  %74 = vmatpush2.bf16.msra.mxu0 0
  %75 = vmatprep.subr.bf16.mxu0 0
  %76 = vmatpush2.bf16.msra.mxu0 0
  %77 = vmatprep.subr.bf16.mxu0 0
  %78 = vmatpush2.bf16.msra.mxu0 0
  %79 = vmatprep.subr.bf16.mxu0 0
  %80 = vmatpush2.bf16.msra.mxu0 0
  %81 = vmatprep.subr.bf16.mxu0 0
  %82 = vmatpush2.bf16.msra.mxu0 0
  %83 = vmatprep.mubr.bf16.mxu0 0
  %84 = vmatmul.mubr.bf16.gmra.mxu0 %v49
  %v85 = vpop.f32.mrf.mxu0
  %v86 = vadd.f32 0.0, %v85
  %v87 = vpop.f32.mrf.mxu0
  %v88 = vpop.f32.mrf.mxu0
  %v89 = vadd.f32 0.0, %v88
  %v90 = vpop.f32.mrf.mxu0
  %91 = vdwg.mxu0
  %v92 = vadd.f32 %v22, %v86
  %v93 = vadd.f32 %v23, %v89
  %vm94 = vcmask 785408
  %95 = vst.msk [vmem:[#allocation2] sm:$0xff] %vm94, %v92
  %96 = vst.msk [vmem:[#allocation2 + $0x8] sm:$0xff] %vm94, %v93
  // Predicated region
  $region18: #{forward.18} parent=0 // pred_check
    %p97 = pneg %p15
  $region19: #{forward.18} parent=0 // pred_check_branch
    %99 = sbr.rel (%p97) target = $region21
  $region20: #{forward.18} parent=0 // pred_region
    %v100 = vld [vmem:[#allocation2] sm:$0xff]
    %v101 = vld [vmem:[#allocation2 + $0x8] sm:$0xff]
    %v102 = vld [vmem:[%s2] sm:$0x1]
    %v104 = vlaneseq
    %v105 = vshrl.u32 %v104, 7
    %v106 = vsub.s32 0, %v105
    %v107 = vrot.slane %v102, %v106
    %v109 = vadd.f32 %v100, %v107
    %v110 = vadd.f32 %v101, %v107
    %v111 = vpack.c.bf16 %v110, %v109
    %v113 = vunpack.c.l.b16 %v111
    %v114 = vunpack.c.h.b16 %v111
    %v115 = vpack.c.b16 %v113, %v113
    %v116 = vpack.c.b16 %v114, %v114
    %vm119 = vcmask 781312
    %120 = vst.msk [vmem:[%s3] sm:$0xf] %vm119, %v115
    %121 = vst.msk [vmem:[%s3 + $0x4] sm:$0xf] %vm119, %v116
  $region21: #{forward.18} parent=0 // pred_fallthru
    _
  // Predicated region
  $region22: #{forward.18} parent=0 // pred_check
    _
  $region23: #{forward.18} parent=0 // pred_check_branch
    %123 = sbr.rel (0) target = $region25
  $region24: #{forward.18} parent=0 // pred_region
    _
  $region25: #{forward.18} parent=0 // pred_fallthru
    _
  // Predicated region
  $region26: #{forward.18} parent=0 // pred_check
    _
  $region27: #{forward.18} parent=0 // pred_check_branch
    %125 = sbr.rel (0) target = $region29
  $region28: #{forward.18} parent=0 // pred_region
    _
  $region29: #{forward.18} parent=0 // pred_fallthru
    _

// kernel: forward.19
$region0: #{forward.19}
  #allocation0 [shape = 'u32[]', space=smem, size = 0x4, offset = 0x4, fixed_abs, tag = 'smem constant byte address 0x4 - core index']
  #allocation1 [shape = 'u32[144,128]{1,0:T(1,128)}', space=vmem, size = 0x12000, scoped, tag = 'internal scratch']
  #allocation2 [shape = 'f32[16,192]{1,0:T(8,128)}', space=vmem, size = 0x4000, scoped, tag = 'scratch operand']
  %s0 = inlined_call_operand.vmem [shape: bf16[16,32], index: 0, kind: input, shape index: {}]
  %s1 = inlined_call_operand.vmem [shape: bf16[32,192], index: 1, kind: input, shape index: {}]
  %s2 = inlined_call_operand.vmem [shape: f32[1,192], index: 2, kind: input, shape index: {}]
  %s3 = inlined_call_operand.vmem [shape: bf16[16,192], index: 3, kind: output, shape index: {}]
  %s4 = sld [smem:[#allocation0]]
  $region30: #{forward.19} parent=0
    _
  %s6 = ssub.s32 1, %s4
  %s7 = scalar_select 0, %s6, %s4
  // Predicated region
  $region2: #{forward.19} parent=0 // pred_check
    _
  $region3: #{forward.19} parent=0 // pred_check_branch
    %9 = sbr.rel (0) target = $region5
  $region4: #{forward.19} parent=0 // pred_region
    _
  $region5: #{forward.19} parent=0 // pred_fallthru
    _
  // Predicated region
  $region6: #{forward.19} parent=0 // pred_check
    _
  $region7: #{forward.19} parent=0 // pred_check_branch
    %11 = sbr.rel (0) target = $region9
  $region8: #{forward.19} parent=0 // pred_region
    _
  $region9: #{forward.19} parent=0 // pred_fallthru
    _
  // Predicated region
  $region10: #{forward.19} parent=0 // pred_check
    _
  $region11: #{forward.19} parent=0 // pred_check_branch
    %13 = sbr.rel (0) target = $region13
  $region12: #{forward.19} parent=0 // pred_region
    _
  $region13: #{forward.19} parent=0 // pred_fallthru
    _
  %p15 = scmp.eq.s32.totalorder 0, 0
  // Predicated region
  $region14: #{forward.19} parent=0 // pred_check
    %p16 = pneg %p15
  $region15: #{forward.19} parent=0 // pred_check_branch
    %18 = sbr.rel (%p16) target = $region17
  $region16: #{forward.19} parent=0 // pred_region
    %19 = vst [vmem:[#allocation2] sm:$0xff] 0.0
    %vm20 = vcmask 523264
    %21 = vst.msk [vmem:[#allocation2 + $0x8] sm:$0xff] %vm20, 0.0
    %22 = vst [vmem:[#allocation2 + $0x10] sm:$0xff] 0.0
    %23 = vst.msk [vmem:[#allocation2 + $0x18] sm:$0xff] %vm20, 0.0
  $region17: #{forward.19} parent=0 // pred_fallthru
    _
  %v24 = vld [vmem:[#allocation2] sm:$0xff]
  %v25 = vld [vmem:[#allocation2 + $0x8] sm:$0xff]
  %v26 = vld [vmem:[#allocation2 + $0x10] sm:$0xff]
  %v27 = vld [vmem:[#allocation2 + $0x18] sm:$0xff]
  %v28 = vld [vmem:[%s0] sm:$0xf]
  %v29 = vld [vmem:[%s0 + $0x4] sm:$0xf]
  %v30 = vld [vmem:[%s1] sm:$0xff]
  %v31 = vld [vmem:[%s1 + $0x8] sm:$0xff]
  %v32 = vld [vmem:[%s1 + $0x10] sm:$0xff]
  %v33 = vld [vmem:[%s1 + $0x18] sm:$0xff]
  %v36 = vunpack.c.l.b16 %v28
  %v37 = vunpack.c.l.b16 %v29
  %v38 = vpack.c.b16 %v37, %v36
  %v43 = vunpack.c.l.b16 %v30
  %v44 = vunpack.c.h.b16 %v30
  %v45 = vunpack.c.l.b16 %v31
  %v46 = vunpack.c.h.b16 %v31
  %v47 = vunpack.c.l.b16 %v32
  %v48 = vunpack.c.h.b16 %v32
  %v49 = vunpack.c.l.b16 %v33
  %v50 = vunpack.c.h.b16 %v33
  %v51 = vpack.c.b16 %v45, %v43
  %v52 = vpack.c.b16 %v46, %v44
  %v53 = vpack.c.b16 %v49, %v47
  %v54 = vpack.c.b16 %v50, %v48
  %vm59 = vcmask 261120
  %v61 = vsel %vm59, %v38, 0
  %63 = vmatprep.subr.bf16.mxu0 0
  %64 = vmatpush1.bf16.msra.mxu0 0
  %65 = vmatprep.subr.bf16.mxu0 0
  %66 = vmatpush1.bf16.msra.mxu0 0
  %67 = vmatprep.subr.bf16.mxu0 0
  %68 = vmatpush1.bf16.msra.mxu0 0
  %69 = vmatprep.subr.bf16.mxu0 0
  %70 = vmatpush1.bf16.msra.mxu0 0
  %71 = vmatprep.subr.bf16.mxu0 0
  %72 = vmatpush1.bf16.msra.mxu0 0
  %73 = vmatprep.subr.bf16.mxu0 0
  %74 = vmatpush1.bf16.msra.mxu0 0
  %75 = vmatprep.subr.bf16.mxu0 %v54
  %76 = vmatpush1.bf16.msra.mxu0 %v53
  %77 = vmatprep.subr.bf16.mxu0 %v52
  %78 = vmatpush1.bf16.msra.mxu0 %v51
  %79 = vmatprep.subr.bf16.mxu0 0
  %80 = vmatpush2.bf16.msra.mxu0 0
  %81 = vmatprep.subr.bf16.mxu0 0
  %82 = vmatpush2.bf16.msra.mxu0 0
  %83 = vmatprep.subr.bf16.mxu0 0
  %84 = vmatpush2.bf16.msra.mxu0 0
  %85 = vmatprep.subr.bf16.mxu0 0
  %86 = vmatpush2.bf16.msra.mxu0 0
  %87 = vmatprep.subr.bf16.mxu0 0
  %88 = vmatpush2.bf16.msra.mxu0 0
  %89 = vmatprep.subr.bf16.mxu0 0
  %90 = vmatpush2.bf16.msra.mxu0 0
  %91 = vmatprep.subr.bf16.mxu0 0
  %92 = vmatpush2.bf16.msra.mxu0 0
  %93 = vmatprep.subr.bf16.mxu0 0
  %94 = vmatpush2.bf16.msra.mxu0 0
  %95 = vmatprep.mubr.bf16.mxu0 0
  %96 = vmatmul.mubr.bf16.gmra.mxu0 %v61
  %v97 = vpop.f32.mrf.mxu0
  %v98 = vadd.f32 0.0, %v97
  %v99 = vpop.f32.mrf.mxu0
  %v100 = vadd.f32 0.0, %v99
  %v101 = vpop.f32.mrf.mxu0
  %v102 = vadd.f32 0.0, %v101
  %v103 = vpop.f32.mrf.mxu0
  %v104 = vadd.f32 0.0, %v103
  %105 = vdwg.mxu0
  %v106 = vadd.f32 %v24, %v98
  %v107 = vadd.f32 %v25, %v100
  %v108 = vadd.f32 %v26, %v102
  %v109 = vadd.f32 %v27, %v104
  %110 = vst [vmem:[#allocation2] sm:$0xff] %v106
  %vm111 = vcmask 523264
  %112 = vst.msk [vmem:[#allocation2 + $0x8] sm:$0xff] %vm111, %v107
  %113 = vst [vmem:[#allocation2 + $0x10] sm:$0xff] %v108
  %114 = vst.msk [vmem:[#allocation2 + $0x18] sm:$0xff] %vm111, %v109
  // Predicated region
  $region18: #{forward.19} parent=0 // pred_check
    %p115 = pneg %p15
  $region19: #{forward.19} parent=0 // pred_check_branch
    %117 = sbr.rel (%p115) target = $region21
  $region20: #{forward.19} parent=0 // pred_region
    %v118 = vld [vmem:[#allocation2] sm:$0xff]
    %v119 = vld [vmem:[#allocation2 + $0x8] sm:$0xff]
    %v120 = vld [vmem:[#allocation2 + $0x10] sm:$0xff]
    %v121 = vld [vmem:[#allocation2 + $0x18] sm:$0xff]
    %v122 = vld [vmem:[%s2] sm:$0x3]
    %v124 = vlaneseq
    %v125 = vshrl.u32 %v124, 7
    %v126 = vsub.s32 0, %v125
    %v127 = vrot.slane %v122, %v126
    %v128 = vlaneseq
    %v129 = vshrl.u32 %v128, 7
    %v130 = vsub.s32 1, %v129
    %v131 = vrot.slane %v122, %v130
    %v134 = vadd.f32 %v118, %v127
    %v135 = vadd.f32 %v119, %v131
    %v136 = vadd.f32 %v120, %v127
    %v137 = vadd.f32 %v121, %v131
    %v138 = vpack.c.bf16 %v136, %v134
    %v139 = vpack.c.bf16 %v137, %v135
    %v142 = vunpack.c.l.b16 %v138
    %v143 = vunpack.c.l.b16 %v139
    %v144 = vunpack.c.h.b16 %v138
    %v145 = vunpack.c.h.b16 %v139
    %v146 = vpack.c.b16 %v143, %v142
    %v147 = vpack.c.b16 %v145, %v144
    %vm150 = vcmask 1043456
    %vm151 = vcmask 523268
    %vm152 = vmor %vm151, %vm150
    %153 = vst.msk [vmem:[%s3] sm:$0xff] %vm152, %v146
    %154 = vst.msk [vmem:[%s3 + $0x8] sm:$0xff] %vm152, %v147
  $region21: #{forward.19} parent=0 // pred_fallthru
    _
  // Predicated region
  $region22: #{forward.19} parent=0 // pred_check
    _
  $region23: #{forward.19} parent=0 // pred_check_branch
    %156 = sbr.rel (0) target = $region25
  $region24: #{forward.19} parent=0 // pred_region
    _
  $region25: #{forward.19} parent=0 // pred_fallthru
    _
  // Predicated region
  $region26: #{forward.19} parent=0 // pred_check
    _
  $region27: #{forward.19} parent=0 // pred_check_branch
    %158 = sbr.rel (0) target = $region29
  $region28: #{forward.19} parent=0 // pred_region
    _
  $region29: #{forward.19} parent=0 // pred_fallthru
    _

// kernel: forward.23
$region0: #{forward.23}
  #allocation0 [shape = 'u32[]', space=smem, size = 0x4, offset = 0x4, fixed_abs, tag = 'smem constant byte address 0x4 - core index']
  #allocation1 [shape = 'u32[144,128]{1,0:T(1,128)}', space=vmem, size = 0x12000, scoped, tag = 'internal scratch']
  #allocation2 [shape = 'f32[16,64]{1,0:T(8,128)}', space=vmem, size = 0x2000, scoped, tag = 'scratch operand']
  %s0 = inlined_call_operand.vmem [shape: bf16[16,32], index: 0, kind: input, shape index: {}]
  %s1 = inlined_call_operand.vmem [shape: bf16[32,64], index: 1, kind: input, shape index: {}]
  %s2 = inlined_call_operand.vmem [shape: f32[1,64], index: 2, kind: input, shape index: {}]
  %s3 = inlined_call_operand.vmem [shape: f32[16,64], index: 3, kind: output, shape index: {}]
  %s4 = sld [smem:[#allocation0]]
  $region30: #{forward.23} parent=0
    _
  %s6 = ssub.s32 1, %s4
  %s7 = scalar_select 0, %s6, %s4
  // Predicated region
  $region2: #{forward.23} parent=0 // pred_check
    _
  $region3: #{forward.23} parent=0 // pred_check_branch
    %9 = sbr.rel (0) target = $region5
  $region4: #{forward.23} parent=0 // pred_region
    _
  $region5: #{forward.23} parent=0 // pred_fallthru
    _
  // Predicated region
  $region6: #{forward.23} parent=0 // pred_check
    _
  $region7: #{forward.23} parent=0 // pred_check_branch
    %11 = sbr.rel (0) target = $region9
  $region8: #{forward.23} parent=0 // pred_region
    _
  $region9: #{forward.23} parent=0 // pred_fallthru
    _
  // Predicated region
  $region10: #{forward.23} parent=0 // pred_check
    _
  $region11: #{forward.23} parent=0 // pred_check_branch
    %13 = sbr.rel (0) target = $region13
  $region12: #{forward.23} parent=0 // pred_region
    _
  $region13: #{forward.23} parent=0 // pred_fallthru
    _
  %p15 = scmp.eq.s32.totalorder 0, 0
  // Predicated region
  $region14: #{forward.23} parent=0 // pred_check
    %p16 = pneg %p15
  $region15: #{forward.23} parent=0 // pred_check_branch
    %18 = sbr.rel (%p16) target = $region17
  $region16: #{forward.23} parent=0 // pred_region
    %vm19 = vcmask 523264
    %20 = vst.msk [vmem:[#allocation2] sm:$0xff] %vm19, 0.0
    %21 = vst.msk [vmem:[#allocation2 + $0x8] sm:$0xff] %vm19, 0.0
  $region17: #{forward.23} parent=0 // pred_fallthru
    _
  %v22 = vld [vmem:[#allocation2] sm:$0xff]
  %v23 = vld [vmem:[#allocation2 + $0x8] sm:$0xff]
  %v24 = vld [vmem:[%s0] sm:$0xf]
  %v25 = vld [vmem:[%s0 + $0x4] sm:$0xf]
  %v26 = vld [vmem:[%s1] sm:$0xf]
  %v27 = vld [vmem:[%s1 + $0x4] sm:$0xf]
  %v28 = vld [vmem:[%s1 + $0x8] sm:$0xf]
  %v29 = vld [vmem:[%s1 + $0xc] sm:$0xf]
  %v32 = vunpack.c.l.b16 %v24
  %v33 = vunpack.c.l.b16 %v25
  %v34 = vpack.c.b16 %v33, %v32
  %v39 = vunpack.c.l.b16 %v26
  %v40 = vunpack.c.l.b16 %v27
  %v41 = vunpack.c.l.b16 %v28
  %v42 = vunpack.c.l.b16 %v29
  %v43 = vpack.c.b16 %v40, %v39
  %v44 = vpack.c.b16 %v42, %v41
  %vm47 = vcmask 261120
  %v49 = vsel %vm47, %v34, 0
  %51 = vmatprep.subr.bf16.mxu0 0
  %52 = vmatpush1.bf16.msra.mxu0 0
  %53 = vmatprep.subr.bf16.mxu0 0
  %54 = vmatpush1.bf16.msra.mxu0 0
  %55 = vmatprep.subr.bf16.mxu0 0
  %56 = vmatpush1.bf16.msra.mxu0 0
  %57 = vmatprep.subr.bf16.mxu0 0
  %58 = vmatpush1.bf16.msra.mxu0 0
  %59 = vmatprep.subr.bf16.mxu0 0
  %60 = vmatpush1.bf16.msra.mxu0 0
  %61 = vmatprep.subr.bf16.mxu0 0
  %62 = vmatpush1.bf16.msra.mxu0 0
  %63 = vmatprep.subr.bf16.mxu0 0
  %64 = vmatpush1.bf16.msra.mxu0 %v44
  %65 = vmatprep.subr.bf16.mxu0 0
  %66 = vmatpush1.bf16.msra.mxu0 %v43
  %67 = vmatprep.subr.bf16.mxu0 0
  %68 = vmatpush2.bf16.msra.mxu0 0
  %69 = vmatprep.subr.bf16.mxu0 0
  %70 = vmatpush2.bf16.msra.mxu0 0
  %71 = vmatprep.subr.bf16.mxu0 0
  %72 = vmatpush2.bf16.msra.mxu0 0
  %73 = vmatprep.subr.bf16.mxu0 0
  %74 = vmatpush2.bf16.msra.mxu0 0
  %75 = vmatprep.subr.bf16.mxu0 0
  %76 = vmatpush2.bf16.msra.mxu0 0
  %77 = vmatprep.subr.bf16.mxu0 0
  %78 = vmatpush2.bf16.msra.mxu0 0
  %79 = vmatprep.subr.bf16.mxu0 0
  %80 = vmatpush2.bf16.msra.mxu0 0
  %81 = vmatprep.subr.bf16.mxu0 0
  %82 = vmatpush2.bf16.msra.mxu0 0
  %83 = vmatprep.mubr.bf16.mxu0 0
  %84 = vmatmul.mubr.bf16.gmra.mxu0 %v49
  %v85 = vpop.f32.mrf.mxu0
  %v86 = vadd.f32 0.0, %v85
  %v87 = vpop.f32.mrf.mxu0
  %v88 = vpop.f32.mrf.mxu0
  %v89 = vadd.f32 0.0, %v88
  %v90 = vpop.f32.mrf.mxu0
  %91 = vdwg.mxu0
  %v92 = vadd.f32 %v22, %v86
  %v93 = vadd.f32 %v23, %v89
  %vm94 = vcmask 523264
  %95 = vst.msk [vmem:[#allocation2] sm:$0xff] %vm94, %v92
  %96 = vst.msk [vmem:[#allocation2 + $0x8] sm:$0xff] %vm94, %v93
  // Predicated region
  $region18: #{forward.23} parent=0 // pred_check
    %p97 = pneg %p15
  $region19: #{forward.23} parent=0 // pred_check_branch
    %99 = sbr.rel (%p97) target = $region21
  $region20: #{forward.23} parent=0 // pred_region
    %v100 = vld [vmem:[#allocation2] sm:$0xff]
    %v101 = vld [vmem:[#allocation2 + $0x8] sm:$0xff]
    %v102 = vld [vmem:[%s2] sm:$0x1]
    %v104 = vlaneseq
    %v105 = vshrl.u32 %v104, 7
    %v106 = vsub.s32 0, %v105
    %v107 = vrot.slane %v102, %v106
    %v109 = vadd.f32 %v100, %v107
    %v110 = vadd.f32 %v101, %v107
    %111 = vst.msk [vmem:[%s3] sm:$0xff] %vm94, %v109
    %112 = vst.msk [vmem:[%s3 + $0x8] sm:$0xff] %vm94, %v110
  $region21: #{forward.23} parent=0 // pred_fallthru
    _
  // Predicated region
  $region22: #{forward.23} parent=0 // pred_check
    _
  $region23: #{forward.23} parent=0 // pred_check_branch
    %114 = sbr.rel (0) target = $region25
  $region24: #{forward.23} parent=0 // pred_region
    _
  $region25: #{forward.23} parent=0 // pred_fallthru
    _
  // Predicated region
  $region26: #{forward.23} parent=0 // pred_check
    _
  $region27: #{forward.23} parent=0 // pred_check_branch
    %116 = sbr.rel (0) target = $region29
  $region28: #{forward.23} parent=0 // pred_region
    _
  $region29: #{forward.23} parent=0 // pred_fallthru
    _

// kernel: forward.22
$region0: #{forward.22}
  #allocation0 [shape = 'u32[]', space=smem, size = 0x4, offset = 0x4, fixed_abs, tag = 'smem constant byte address 0x4 - core index']
  #allocation1 [shape = 'u32[144,128]{1,0:T(1,128)}', space=vmem, size = 0x12000, scoped, tag = 'internal scratch']
  %s0 = inlined_call_operand.vmem [shape: f32[16,32], index: 0, kind: input, shape index: {}]
  %s1 = inlined_call_operand.vmem [shape: f32[16,32], index: 1, kind: input, shape index: {}]
  %s2 = inlined_call_operand.vmem [shape: f32[1,32], index: 2, kind: input, shape index: {}]
  %s3 = inlined_call_operand.vmem [shape: f32[1,32], index: 3, kind: input, shape index: {}]
  %s4 = inlined_call_operand.vmem [shape: f32[16,32], index: 4, kind: output, shape index: {}]
  %s5 = sld [smem:[#allocation0]]
  $region26: #{forward.22} parent=0
    _
  %s7 = ssub.s32 1, %s5
  %s8 = scalar_select 0, %s7, %s5
  // Predicated region
  $region2: #{forward.22} parent=0 // pred_check
    _
  $region3: #{forward.22} parent=0 // pred_check_branch
    %10 = sbr.rel (0) target = $region5
  $region4: #{forward.22} parent=0 // pred_region
    _
  $region5: #{forward.22} parent=0 // pred_fallthru
    _
  // Predicated region
  $region6: #{forward.22} parent=0 // pred_check
    _
  $region7: #{forward.22} parent=0 // pred_check_branch
    %12 = sbr.rel (0) target = $region9
  $region8: #{forward.22} parent=0 // pred_region
    _
  $region9: #{forward.22} parent=0 // pred_fallthru
    _
  // Predicated region
  $region10: #{forward.22} parent=0 // pred_check
    _
  $region11: #{forward.22} parent=0 // pred_check_branch
    %14 = sbr.rel (0) target = $region13
  $region12: #{forward.22} parent=0 // pred_region
    _
  $region13: #{forward.22} parent=0 // pred_fallthru
    _
  // Predicated region
  $region14: #{forward.22} parent=0 // pred_check
    _
  $region15: #{forward.22} parent=0 // pred_check_branch
    %16 = sbr.rel (0) target = $region17
  $region16: #{forward.22} parent=0 // pred_region
    _
  $region17: #{forward.22} parent=0 // pred_fallthru
    _
  %v17 = vld [vmem:[%s0] sm:$0xff]
  %v18 = vld [vmem:[%s0 + $0x8] sm:$0xff]
  %v19 = vld [vmem:[%s1] sm:$0xff]
  %v20 = vld [vmem:[%s1 + $0x8] sm:$0xff]
  %v21 = vadd.f32 %v17, %v19
  %v22 = vadd.f32 %v18, %v20
  %vm23 = vcmask 261120
  %v24 = vsel %vm23, %v21, 0.0
  %25 = vadd.xlane.f32.xlu0 %v24
  %v26 = vpop.xlane.xlu0 %25
  %v27 = vsel %vm23, %v22, 0.0
  %28 = vadd.xlane.f32.xlu0 %v27
  %v29 = vpop.xlane.xlu0 %28
  %v30 = vmul.f32 %v21, %v21
  %v31 = vmul.f32 %v22, %v22
  %v32 = vsel %vm23, %v30, 0.0
  %33 = vadd.xlane.f32.xlu0 %v32
  %v34 = vpop.xlane.xlu0 %33
  %v35 = vsel %vm23, %v31, 0.0
  %36 = vadd.xlane.f32.xlu0 %v35
  %v37 = vpop.xlane.xlu0 %36
  %v38 = vmul.f32 %v26, 0.03125
  %v39 = vmul.f32 %v29, 0.03125
  %v40 = vmul.f32 %v34, 0.03125
  %v41 = vmul.f32 %v37, 0.03125
  %v42 = vmul.f32 %v38, %v38
  %v43 = vmul.f32 %v39, %v39
  %v44 = vsub.f32 %v40, %v42
  %v45 = vsub.f32 %v41, %v43
  %v46 = vmax.f32 %v44, 0.0
  %v47 = vmax.f32 %v45, 0.0
  %v48 = vadd.f32 %v46, 1e-05
  %v49 = vadd.f32 %v47, 1e-05
  %v50 = vrsqrt.pop %v48
  %v51 = vrsqrt.pop %v49
  %v52 = vsub.f32 %v21, %v38
  %v53 = vsub.f32 %v22, %v39
  %v54 = vmul.f32 %v52, %v50
  %v55 = vmul.f32 %v53, %v51
  %v56 = vld [vmem:[%s2] sm:$0x1]
  %v58 = vlaneseq
  %v59 = vshrl.u32 %v58, 7
  %v60 = vsub.s32 0, %v59
  %v61 = vrot.slane %v56, %v60
  %v63 = vmul.f32 %v54, %v61
  %v64 = vmul.f32 %v55, %v61
  %v65 = vld [vmem:[%s3] sm:$0x1]
  %v67 = vlaneseq
  %v68 = vshrl.u32 %v67, 7
  %v69 = vsub.s32 0, %v68
  %v70 = vrot.slane %v65, %v69
  %v72 = vadd.f32 %v63, %v70
  %v73 = vadd.f32 %v64, %v70
  %74 = vst.msk [vmem:[%s4] sm:$0xff] %vm23, %v72
  %75 = vst.msk [vmem:[%s4 + $0x8] sm:$0xff] %vm23, %v73
  // Predicated region
  $region18: #{forward.22} parent=0 // pred_check
    _
  $region19: #{forward.22} parent=0 // pred_check_branch
    %77 = sbr.rel (0) target = $region21
  $region20: #{forward.22} parent=0 // pred_region
    _
  $region21: #{forward.22} parent=0 // pred_fallthru
    _
  // Predicated region
  $region22: #{forward.22} parent=0 // pred_check
    _
  $region23: #{forward.22} parent=0 // pred_check_branch
    %79 = sbr.rel (0) target = $region25
  $region24: #{forward.22} parent=0 // pred_region
    _
  $region25: #{forward.22} parent=0 // pred_fallthru
    _

// kernel: forward.24
$region0: #{forward.24}
  #allocation0 [shape = 'u32[]', space=smem, size = 0x4, offset = 0x4, fixed_abs, tag = 'smem constant byte address 0x4 - core index']
  #allocation1 [shape = 'u32[144,128]{1,0:T(1,128)}', space=vmem, size = 0x12000, scoped, tag = 'internal scratch']
  #allocation2 [shape = 'f32[16,32]{1,0:T(8,128)}', space=vmem, size = 0x2000, scoped, tag = 'scratch operand']
  %s0 = inlined_call_operand.vmem [shape: bf16[16,64], index: 0, kind: input, shape index: {}]
  %s1 = inlined_call_operand.vmem [shape: bf16[64,32], index: 1, kind: input, shape index: {}]
  %s2 = inlined_call_operand.vmem [shape: f32[1,32], index: 2, kind: input, shape index: {}]
  %s3 = inlined_call_operand.vmem [shape: f32[16,32], index: 3, kind: output, shape index: {}]
  %s4 = sld [smem:[#allocation0]]
  $region30: #{forward.24} parent=0
    _
  %s6 = ssub.s32 1, %s4
  %s7 = scalar_select 0, %s6, %s4
  // Predicated region
  $region2: #{forward.24} parent=0 // pred_check
    _
  $region3: #{forward.24} parent=0 // pred_check_branch
    %9 = sbr.rel (0) target = $region5
  $region4: #{forward.24} parent=0 // pred_region
    _
  $region5: #{forward.24} parent=0 // pred_fallthru
    _
  // Predicated region
  $region6: #{forward.24} parent=0 // pred_check
    _
  $region7: #{forward.24} parent=0 // pred_check_branch
    %11 = sbr.rel (0) target = $region9
  $region8: #{forward.24} parent=0 // pred_region
    _
  $region9: #{forward.24} parent=0 // pred_fallthru
    _
  // Predicated region
  $region10: #{forward.24} parent=0 // pred_check
    _
  $region11: #{forward.24} parent=0 // pred_check_branch
    %13 = sbr.rel (0) target = $region13
  $region12: #{forward.24} parent=0 // pred_region
    _
  $region13: #{forward.24} parent=0 // pred_fallthru
    _
  %p15 = scmp.eq.s32.totalorder 0, 0
  // Predicated region
  $region14: #{forward.24} parent=0 // pred_check
    %p16 = pneg %p15
  $region15: #{forward.24} parent=0 // pred_check_branch
    %18 = sbr.rel (%p16) target = $region17
  $region16: #{forward.24} parent=0 // pred_region
    %vm19 = vcmask 261120
    %20 = vst.msk [vmem:[#allocation2] sm:$0xff] %vm19, 0.0
    %21 = vst.msk [vmem:[#allocation2 + $0x8] sm:$0xff] %vm19, 0.0
  $region17: #{forward.24} parent=0 // pred_fallthru
    _
  %v22 = vld [vmem:[#allocation2] sm:$0xff]
  %v23 = vld [vmem:[#allocation2 + $0x8] sm:$0xff]
  %v24 = vld [vmem:[%s0] sm:$0xf]
  %v25 = vld [vmem:[%s0 + $0x4] sm:$0xf]
  %v26 = vld [vmem:[%s1] sm:$0xf]
  %v27 = vld [vmem:[%s1 + $0x4] sm:$0xf]
  %v28 = vld [vmem:[%s1 + $0x8] sm:$0xf]
  %v29 = vld [vmem:[%s1 + $0xc] sm:$0xf]
  %v30 = vld [vmem:[%s1 + $0x10] sm:$0xf]
  %v31 = vld [vmem:[%s1 + $0x14] sm:$0xf]
  %v32 = vld [vmem:[%s1 + $0x18] sm:$0xf]
  %v33 = vld [vmem:[%s1 + $0x1c] sm:$0xf]
  %v36 = vunpack.c.l.b16 %v24
  %v37 = vunpack.c.l.b16 %v25
  %v38 = vpack.c.b16 %v37, %v36
  %v47 = vunpack.c.l.b16 %v26
  %v48 = vunpack.c.l.b16 %v27
  %v49 = vunpack.c.l.b16 %v28
  %v50 = vunpack.c.l.b16 %v29
  %v51 = vunpack.c.l.b16 %v30
  %v52 = vunpack.c.l.b16 %v31
  %v53 = vunpack.c.l.b16 %v32
  %v54 = vunpack.c.l.b16 %v33
  %v55 = vpack.c.b16 %v48, %v47
  %v56 = vpack.c.b16 %v50, %v49
  %v57 = vpack.c.b16 %v52, %v51
  %v58 = vpack.c.b16 %v54, %v53
  %vm63 = vcmask 523264
  %v65 = vsel %vm63, %v38, 0
  %67 = vmatprep.subr.bf16.mxu0 0
  %68 = vmatpush1.bf16.msra.mxu0 0
  %69 = vmatprep.subr.bf16.mxu0 0
  %70 = vmatpush1.bf16.msra.mxu0 0
  %71 = vmatprep.subr.bf16.mxu0 0
  %72 = vmatpush1.bf16.msra.mxu0 0
  %73 = vmatprep.subr.bf16.mxu0 0
  %74 = vmatpush1.bf16.msra.mxu0 0
  %75 = vmatprep.subr.bf16.mxu0 0
  %76 = vmatpush1.bf16.msra.mxu0 %v58
  %77 = vmatprep.subr.bf16.mxu0 0
  %78 = vmatpush1.bf16.msra.mxu0 %v57
  %79 = vmatprep.subr.bf16.mxu0 0
  %80 = vmatpush1.bf16.msra.mxu0 %v56
  %81 = vmatprep.subr.bf16.mxu0 0
  %82 = vmatpush1.bf16.msra.mxu0 %v55
  %83 = vmatprep.subr.bf16.mxu0 0
  %84 = vmatpush2.bf16.msra.mxu0 0
  %85 = vmatprep.subr.bf16.mxu0 0
  %86 = vmatpush2.bf16.msra.mxu0 0
  %87 = vmatprep.subr.bf16.mxu0 0
  %88 = vmatpush2.bf16.msra.mxu0 0
  %89 = vmatprep.subr.bf16.mxu0 0
  %90 = vmatpush2.bf16.msra.mxu0 0
  %91 = vmatprep.subr.bf16.mxu0 0
  %92 = vmatpush2.bf16.msra.mxu0 0
  %93 = vmatprep.subr.bf16.mxu0 0
  %94 = vmatpush2.bf16.msra.mxu0 0
  %95 = vmatprep.subr.bf16.mxu0 0
  %96 = vmatpush2.bf16.msra.mxu0 0
  %97 = vmatprep.subr.bf16.mxu0 0
  %98 = vmatpush2.bf16.msra.mxu0 0
  %99 = vmatprep.mubr.bf16.mxu0 0
  %100 = vmatmul.mubr.bf16.gmra.mxu0 %v65
  %v101 = vpop.f32.mrf.mxu0
  %v102 = vadd.f32 0.0, %v101
  %v103 = vpop.f32.mrf.mxu0
  %v104 = vpop.f32.mrf.mxu0
  %v105 = vadd.f32 0.0, %v104
  %v106 = vpop.f32.mrf.mxu0
  %107 = vdwg.mxu0
  %v108 = vadd.f32 %v22, %v102
  %v109 = vadd.f32 %v23, %v105
  %vm110 = vcmask 261120
  %111 = vst.msk [vmem:[#allocation2] sm:$0xff] %vm110, %v108
  %112 = vst.msk [vmem:[#allocation2 + $0x8] sm:$0xff] %vm110, %v109
  // Predicated region
  $region18: #{forward.24} parent=0 // pred_check
    %p113 = pneg %p15
  $region19: #{forward.24} parent=0 // pred_check_branch
    %115 = sbr.rel (%p113) target = $region21
  $region20: #{forward.24} parent=0 // pred_region
    %v116 = vld [vmem:[#allocation2] sm:$0xff]
    %v117 = vld [vmem:[#allocation2 + $0x8] sm:$0xff]
    %v118 = vld [vmem:[%s2] sm:$0x1]
    %v120 = vlaneseq
    %v121 = vshrl.u32 %v120, 7
    %v122 = vsub.s32 0, %v121
    %v123 = vrot.slane %v118, %v122
    %v125 = vadd.f32 %v116, %v123
    %v126 = vadd.f32 %v117, %v123
    %127 = vst.msk [vmem:[%s3] sm:$0xff] %vm110, %v125
    %128 = vst.msk [vmem:[%s3 + $0x8] sm:$0xff] %vm110, %v126
  $region21: #{forward.24} parent=0 // pred_fallthru
    _
  // Predicated region
  $region22: #{forward.24} parent=0 // pred_check
    _
  $region23: #{forward.24} parent=0 // pred_check_branch
    %130 = sbr.rel (0) target = $region25
  $region24: #{forward.24} parent=0 // pred_region
    _
  $region25: #{forward.24} parent=0 // pred_fallthru
    _
  // Predicated region
  $region26: #{forward.24} parent=0 // pred_check
    _
  $region27: #{forward.24} parent=0 // pred_check_branch
    %132 = sbr.rel (0) target = $region29
  $region28: #{forward.24} parent=0 // pred_region
    _
  $region29: #{forward.24} parent=0 // pred_fallthru
    _

// kernel: forward.20
$region0: #{forward.20}
  #allocation0 [shape = 'u32[]', space=smem, size = 0x4, offset = 0x4, fixed_abs, tag = 'smem constant byte address 0x4 - core index']
  #allocation1 [shape = 'u32[144,128]{1,0:T(1,128)}', space=vmem, size = 0x12000, scoped, tag = 'internal scratch']
  #allocation2 [shape = 'f32[3,4,8,1]{3,2,1,0:T(8,128)}', space=vmem, size = 0xc000, scoped, tag = 'scratch operand']
  #allocation3 [shape = 'f32[3,4,8,1]{3,2,1,0:T(8,128)}', space=vmem, size = 0xc000, scoped, tag = 'scratch operand']
  #allocation4 [shape = 'f32[3,4,8,8]{3,2,1,0:T(8,128)}', space=vmem, size = 0xc000, scoped, tag = 'scratch operand']
  %s0 = inlined_call_operand.vmem [shape: f32[2,3], index: 0, kind: input, shape index: {}]
  %s1 = inlined_call_operand.vmem [shape: bf16[2,8,96], index: 1, kind: input, shape index: {}]
  %s2 = inlined_call_operand.vmem [shape: bf16[2,8,192], index: 2, kind: input, shape index: {}]
  %s3 = inlined_call_operand.vmem [shape: bf16[2,8,96], index: 3, kind: output, shape index: {}]
  %s4 = sld [smem:[#allocation0]]
  $region57: #{forward.20} parent=0
    _
  %s6 = ssub.s32 1, %s4
  %s7 = scalar_select 0, %s6, %s4
  $region1: #{forward.20} parent=0
    #allocation5 [shape = 'u8[1024]{0}', space=smem, size = 0x400, scoped, tag = 'input window, operand 0, single buffered']
    #allocation6 [shape = 's32[2]{0}', space=sflag, size = 0x8, scoped, tag = 'scoped memory for forward.20']
    %8 = vsyncpa [#allocation6], 0
    loop: start=0, step=1, limit=4
    $region2: #{forward.20} parent=1 // loop_pre_header
      _
    $region3: #{forward.20} parent=1 // loop_header
      %s10 = sphi 0, %s14
      %p11 = scmp.ge.s32.totalorder %s10, 4
      %s17 = sphi 0, %s36
      %s18 = sphi 0, %s32
      %s19 = sphi 0, %s28
      %s20 = sphi 0, %s17
      %s21 = sphi 0, %s18
      %s22 = sphi 0, %s19
      %s23 = sphi 0, %s20
      %s24 = sphi 0, %s21
      %s25 = sphi 0, %s22
      %s37 = sphi 0, %s37
      %s39 = sphi 0, %s37
      %s40 = sphi 0, %s39
      %s54 = sphi 0, %s40
      %s62 = sphi 0, %s64
      %s65 = sphi 0, %s62
      %s66 = sphi 0, %s65
      %s82 = sphi 0, %s66
      %s90 = sphi 0, %s92
      %s93 = sphi 0, %s90
      %s94 = sphi 0, %s93
      %s110 = sphi 0, %s94
      %s118 = sphi 0, %s120
      %s121 = sphi 0, %s118
      %s122 = sphi 0, %s121
      %s138 = sphi 0, %s122
    $region4: #{forward.20} parent=1 // loop_header_branch
      %13 = sbr.rel (%p11) target = $region8
    $region5: #{forward.20} parent=1 // loop_body
      %s15 = ssub.s32 %s10, 1
      %s16 = ssub.s32 %s10, 2
      %s26 = sadd.s32 1, %s19
      %p27 = scmp.ge.s32.totalorder %s26, 1
      %s28 = scalar_select %p27, 0, %s26
      %s29 = sadd.s32 1, %s18
      %s30 = scalar_select %p27, %s29, %s18
      %p31 = scmp.ge.s32.totalorder %s30, 1
      %s32 = scalar_select %p31, 0, %s30
      %s33 = sadd.s32 1, %s17
      %s34 = scalar_select %p31, %s33, %s17
      %p35 = scmp.ge.s32.totalorder %s34, 2
      %s36 = scalar_select %p35, 0, %s34
      %s38 = sadd.s32 %s37, 1
      %p41 = scmp.eq.s32.totalorder %s10, 1
      %p42 = scmp.ne.s32.totalorder %s37, %s39
      %p43 = scmp.eq.s32.totalorder %s10, 0
      %p44 = por %p42, %p43
      %p45 = scmp.ne.s32.totalorder %s37, %s39
      %p46 = scmp.eq.s32.totalorder %s15, 1
      %p47 = por %p45, %p46
      %p48 = scmp.ne.s32.totalorder %s39, %s40
      %p49 = scmp.eq.s32.totalorder %s15, 0
      %p50 = por %p48, %p49
      %p51 = scmp.ne.s32.totalorder %s39, %s40
      %p52 = scmp.eq.s32.totalorder %s16, 1
      %p53 = por %p51, %p52
      %p55 = scmp.ne.s32.totalorder %s40, %s54
      %p56 = scmp.eq.s32.totalorder %s16, 0
      %p57 = por %p55, %p56
      %s58 = ssub.s32 %s17, %s36
      %s59 = ssub.s32 %s18, %s32
      %s60 = sor.u32 %s58, %s59
      %p61 = scmp.eq.s32.totalorder %s60, 0
      %s63 = sadd.s32 %s62, 1
      %s64 = scalar_select %p61, %s62, %s63
      %p67 = pneg %p61
      %p68 = scmp.eq.s32.totalorder %s10, 1
      %p69 = por %p67, %p68
      %p70 = scmp.ne.s32.totalorder %s62, %s65
      %p71 = scmp.eq.s32.totalorder %s10, 0
      %p72 = por %p70, %p71
      %p73 = scmp.ne.s32.totalorder %s62, %s65
      %p74 = scmp.eq.s32.totalorder %s15, 1
      %p75 = por %p73, %p74
      %p76 = scmp.ne.s32.totalorder %s65, %s66
      %p77 = scmp.eq.s32.totalorder %s15, 0
      %p78 = por %p76, %p77
      %p79 = scmp.ne.s32.totalorder %s65, %s66
      %p80 = scmp.eq.s32.totalorder %s16, 1
      %p81 = por %p79, %p80
      %p83 = scmp.ne.s32.totalorder %s66, %s82
      %p84 = scmp.eq.s32.totalorder %s16, 0
      %p85 = por %p83, %p84
      %s86 = ssub.s32 %s17, %s36
      %s87 = ssub.s32 %s19, %s28
      %s88 = sor.u32 %s86, %s87
      %p89 = scmp.eq.s32.totalorder %s88, 0
      %s91 = sadd.s32 %s90, 1
      %s92 = scalar_select %p89, %s90, %s91
      %p95 = pneg %p89
      %p96 = scmp.eq.s32.totalorder %s10, 1
      %p97 = por %p95, %p96
      %p98 = scmp.ne.s32.totalorder %s90, %s93
      %p99 = scmp.eq.s32.totalorder %s10, 0
      %p100 = por %p98, %p99
      %p101 = scmp.ne.s32.totalorder %s90, %s93
      %p102 = scmp.eq.s32.totalorder %s15, 1
      %p103 = por %p101, %p102
      %p104 = scmp.ne.s32.totalorder %s93, %s94
      %p105 = scmp.eq.s32.totalorder %s15, 0
      %p106 = por %p104, %p105
      %p107 = scmp.ne.s32.totalorder %s93, %s94
      %p108 = scmp.eq.s32.totalorder %s16, 1
      %p109 = por %p107, %p108
      %p111 = scmp.ne.s32.totalorder %s94, %s110
      %p112 = scmp.eq.s32.totalorder %s16, 0
      %p113 = por %p111, %p112
      %s114 = ssub.s32 %s17, %s36
      %s115 = ssub.s32 %s18, %s32
      %s116 = sor.u32 %s114, %s115
      %p117 = scmp.eq.s32.totalorder %s116, 0
      %s119 = sadd.s32 %s118, 1
      %s120 = scalar_select %p117, %s118, %s119
      %p123 = pneg %p117
      %p124 = scmp.eq.s32.totalorder %s10, 1
      %p125 = por %p123, %p124
      %p126 = scmp.ne.s32.totalorder %s118, %s121
      %p127 = scmp.eq.s32.totalorder %s10, 0
      %p128 = por %p126, %p127
      %p129 = scmp.ne.s32.totalorder %s118, %s121
      %p130 = scmp.eq.s32.totalorder %s15, 1
      %p131 = por %p129, %p130
      %p132 = scmp.ne.s32.totalorder %s121, %s122
      %p133 = scmp.eq.s32.totalorder %s15, 0
      %p134 = por %p132, %p133
      %p135 = scmp.ne.s32.totalorder %s121, %s122
      %p136 = scmp.eq.s32.totalorder %s16, 1
      %p137 = por %p135, %p136
      %p139 = scmp.ne.s32.totalorder %s122, %s138
      %p140 = scmp.eq.s32.totalorder %s16, 0
      %p141 = por %p139, %p140
      %p142 = scmp.le.s32.totalorder 1, %s10
      %p143 = scmp.lt.s32.totalorder %s10, 3
      %p144 = pnand %p142, %p143
      %p145 = pneg %p144
      // Predicated region
      $region9: #{forward.20} parent=5 // pred_check
        _
      $region10: #{forward.20} parent=5 // pred_check_branch
        %147 = sbr.rel (%p144) target = $region12
      $region11: #{forward.20} parent=5 // pred_region
        %s148 = ssub.s32 %s10, 1
        // Predicated region
        $region13: #{forward.20} parent=11 // pred_check
          %p149 = pneg %p50
        $region14: #{forward.20} parent=11 // pred_check_branch
          %151 = sbr.rel (%p149) target = $region16
        $region15: #{forward.20} parent=11 // pred_region
          %s153 = ssub.s32 32, 32
          %154 = vsyncadd [#allocation6], %s153
          %s156 = sshll.u32 %s0, 4
          %s157 = int_to_ptr.vmem [resolvable:$true] %s156
          %159 = dma.vmem_to_smem %s157, 32, [#allocation5], [#allocation6]
        $region16: #{forward.20} parent=11 // pred_fallthru
          _
      $region12: #{forward.20} parent=5 // pred_fallthru
        _
      %p160 = scmp.lt.s32.totalorder %s10, 2
      // Predicated region
      $region17: #{forward.20} parent=5 // pred_check
        %p161 = pneg %p160
      $region18: #{forward.20} parent=5 // pred_check_branch
        %163 = sbr.rel (%p161) target = $region20
      $region19: #{forward.20} parent=5 // pred_region
        // Predicated region
        $region21: #{forward.20} parent=19 // pred_check
          %p164 = pneg %p72
        $region22: #{forward.20} parent=19 // pred_check_branch
          %166 = sbr.rel (%p164) target = $region24
        $region23: #{forward.20} parent=19 // pred_region
          %p167 = scmp.lt.s32.totalorder %s17, 1
          %s168 = scalar_select %p167, %s17, 1
          %p169 = scmp.lt.s32.totalorder %s18, 0
          %s170 = scalar_select %p169, %s18, 0
          %s171 = sadd.s32 %s170, %s168
          %s172 = smul.addr %s171, 4
          %s173 = scalar_lea.vmem %s1, %s172
        $region24: #{forward.20} parent=19 // pred_fallthru
          _
        // Predicated region
        $region25: #{forward.20} parent=19 // pred_check
          %p174 = pneg %p100
        $region26: #{forward.20} parent=19 // pred_check_branch
          %176 = sbr.rel (%p174) target = $region28
        $region27: #{forward.20} parent=19 // pred_region
          %p177 = scmp.lt.s32.totalorder %s17, 1
          %s178 = scalar_select %p177, %s17, 1
          %p179 = scmp.lt.s32.totalorder %s19, 0
          %s180 = scalar_select %p179, %s19, 0
          %s181 = smul.addr %s180, 2
          %s182 = smul.addr %s178, 2
          %s183 = sadd.s32 %s181, %s182
          %s184 = smul.addr %s183, 4
          %s185 = scalar_lea.vmem %s2, %s184
        $region28: #{forward.20} parent=19 // pred_fallthru
          _
      $region20: #{forward.20} parent=5 // pred_fallthru
        _
      %p186 = scmp.le.s32.totalorder 1, %s10
      %p187 = scmp.lt.s32.totalorder %s10, 3
      %p188 = pnand %p186, %p187
      %p189 = pneg %p188
      // Predicated region
      $region29: #{forward.20} parent=5 // pred_check
        _
      $region30: #{forward.20} parent=5 // pred_check_branch
        %191 = sbr.rel (%p188) target = $region32
      $region31: #{forward.20} parent=5 // pred_region
        %s192 = ssub.s32 %s10, 1
        // Predicated region
        $region33: #{forward.20} parent=31 // pred_check
          %p193 = pneg %p50
        $region34: #{forward.20} parent=31 // pred_check_branch
          %195 = sbr.rel (%p193) target = $region36
        $region35: #{forward.20} parent=31 // pred_region
          %196 = dma.done [#allocation6], 32
        $region36: #{forward.20} parent=31 // pred_fallthru
          _
        %197 = sfence
        %p198 = pneg %p50
        %p199 = pneg %p47
        %p200 = scmp.lt.s32.totalorder %s20, 1
        %s201 = scalar_select %p200, %s20, 1
        %p202 = scmp.lt.s32.totalorder %s21, 0
        %s203 = scalar_select %p202, %s21, 0
        %s204 = sadd.s32 %s203, %s201
        %s205 = smul.addr %s204, 4
        %s206 = scalar_lea.vmem %s1, %s205
        %p207 = pneg %p78
        %p208 = pneg %p75
        %p209 = scmp.lt.s32.totalorder %s20, 1
        %s210 = scalar_select %p209, %s20, 1
        %p211 = scmp.lt.s32.totalorder %s22, 0
        %s212 = scalar_select %p211, %s22, 0
        %s213 = smul.addr %s212, 2
        %s214 = smul.addr %s210, 2
        %s215 = sadd.s32 %s213, %s214
        %s216 = smul.addr %s215, 4
        %s217 = scalar_lea.vmem %s2, %s216
        %p218 = pneg %p106
        %p219 = pneg %p103
        %p220 = pneg %p134
        %p221 = pneg %p131
        %p222 = scmp.lt.s32.totalorder %s20, 1
        %s223 = scalar_select %p222, %s20, 1
        %p224 = scmp.lt.s32.totalorder %s21, 0
        %s225 = scalar_select %p224, %s21, 0
        %s226 = sadd.s32 %s225, %s223
        %s227 = smul.addr %s226, 4
        %s228 = scalar_lea.vmem %s3, %s227
        %p229 = scmp.lt.s32.totalorder %s20, 1
        %s230 = scalar_select %p229, %s20, 1
        %p231 = scmp.lt.s32.totalorder %s21, 0
        %s232 = scalar_select %p231, %s21, 0
        %s233 = sadd.s32 %s232, %s230
        %s234 = smul.addr %s233, 4
        %s235 = scalar_lea.vmem %s1, %s234
        %p236 = scmp.lt.s32.totalorder %s20, 1
        %s237 = scalar_select %p236, %s20, 1
        %p238 = scmp.lt.s32.totalorder %s22, 0
        %s239 = scalar_select %p238, %s22, 0
        %s240 = smul.addr %s239, 2
        %s241 = smul.addr %s237, 2
        %s242 = sadd.s32 %s240, %s241
        %s243 = smul.addr %s242, 4
        %s244 = scalar_lea.vmem %s2, %s243
        %p245 = scmp.lt.s32.totalorder %s20, 1
        %s246 = scalar_select %p245, %s20, 1
        %p247 = scmp.lt.s32.totalorder %s21, 0
        %s248 = scalar_select %p247, %s21, 0
        %s249 = sadd.s32 %s248, %s246
        %s250 = smul.addr %s249, 4
        %s251 = scalar_lea.vmem %s3, %s250
        %p253 = scmp.eq.s32.totalorder %s22, 0
        // Predicated region
        $region37: #{forward.20} parent=31 // pred_check
          %p254 = pneg %p253
        $region38: #{forward.20} parent=31 // pred_check_branch
          %256 = sbr.rel (%p254) target = $region40
        $region39: #{forward.20} parent=31 // pred_region
          %vm257 = vcmask 7168
          %258 = vst.msk [vmem:[#allocation2] sm:$0xff] %vm257, -inf
          %259 = vst.msk [vmem:[#allocation2 + $0x8] sm:$0xff] %vm257, -inf
          %260 = vst.msk [vmem:[#allocation2 + $0x10] sm:$0xff] %vm257, -inf
          %261 = vst.msk [vmem:[#allocation2 + $0x18] sm:$0xff] %vm257, -inf
          %262 = vst.msk [vmem:[#allocation2 + $0x20] sm:$0xff] %vm257, -inf
          %263 = vst.msk [vmem:[#allocation2 + $0x28] sm:$0xff] %vm257, -inf
          %264 = vst.msk [vmem:[#allocation2 + $0x30] sm:$0xff] %vm257, -inf
          %265 = vst.msk [vmem:[#allocation2 + $0x38] sm:$0xff] %vm257, -inf
          %266 = vst.msk [vmem:[#allocation2 + $0x40] sm:$0xff] %vm257, -inf
          %267 = vst.msk [vmem:[#allocation2 + $0x48] sm:$0xff] %vm257, -inf
          %268 = vst.msk [vmem:[#allocation2 + $0x50] sm:$0xff] %vm257, -inf
          %269 = vst.msk [vmem:[#allocation2 + $0x58] sm:$0xff] %vm257, -inf
          %270 = vst.msk [vmem:[#allocation3] sm:$0xff] %vm257, 0.0
          %271 = vst.msk [vmem:[#allocation3 + $0x8] sm:$0xff] %vm257, 0.0
          %272 = vst.msk [vmem:[#allocation3 + $0x10] sm:$0xff] %vm257, 0.0
          %273 = vst.msk [vmem:[#allocation3 + $0x18] sm:$0xff] %vm257, 0.0
          %274 = vst.msk [vmem:[#allocation3 + $0x20] sm:$0xff] %vm257, 0.0
          %275 = vst.msk [vmem:[#allocation3 + $0x28] sm:$0xff] %vm257, 0.0
          %276 = vst.msk [vmem:[#allocation3 + $0x30] sm:$0xff] %vm257, 0.0
          %277 = vst.msk [vmem:[#allocation3 + $0x38] sm:$0xff] %vm257, 0.0
          %278 = vst.msk [vmem:[#allocation3 + $0x40] sm:$0xff] %vm257, 0.0
          %279 = vst.msk [vmem:[#allocation3 + $0x48] sm:$0xff] %vm257, 0.0
          %280 = vst.msk [vmem:[#allocation3 + $0x50] sm:$0xff] %vm257, 0.0
          %281 = vst.msk [vmem:[#allocation3 + $0x58] sm:$0xff] %vm257, 0.0
          %vm282 = vcmask 64512
          %283 = vst.msk [vmem:[#allocation4] sm:$0xff] %vm282, 0.0
          %284 = vst.msk [vmem:[#allocation4 + $0x8] sm:$0xff] %vm282, 0.0
          %285 = vst.msk [vmem:[#allocation4 + $0x10] sm:$0xff] %vm282, 0.0
          %286 = vst.msk [vmem:[#allocation4 + $0x18] sm:$0xff] %vm282, 0.0
          %287 = vst.msk [vmem:[#allocation4 + $0x20] sm:$0xff] %vm282, 0.0
          %288 = vst.msk [vmem:[#allocation4 + $0x28] sm:$0xff] %vm282, 0.0
          %289 = vst.msk [vmem:[#allocation4 + $0x30] sm:$0xff] %vm282, 0.0
          %290 = vst.msk [vmem:[#allocation4 + $0x38] sm:$0xff] %vm282, 0.0
          %291 = vst.msk [vmem:[#allocation4 + $0x40] sm:$0xff] %vm282, 0.0
          %292 = vst.msk [vmem:[#allocation4 + $0x48] sm:$0xff] %vm282, 0.0
          %293 = vst.msk [vmem:[#allocation4 + $0x50] sm:$0xff] %vm282, 0.0
          %294 = vst.msk [vmem:[#allocation4 + $0x58] sm:$0xff] %vm282, 0.0
        $region40: #{forward.20} parent=31 // pred_fallthru
          _
        %v295 = vld [vmem:[%s235] sm:$0xf]
        %297 = vrot.lane.b32.xlu0 %v295, 120
        %v298 = vpop.permute.xlu0 %297
        %299 = vrot.lane.b32.xlu0 %v295, 112
        %v300 = vpop.permute.xlu0 %299
        %301 = vrot.lane.b32.xlu0 %v295, 104
        %v302 = vpop.permute.xlu0 %301
        %v305 = vpack.i.b16 %v298, %v295
        %v306 = vshrl.u32 %v295, 16
        %v307 = vshrl.u32 %v298, 16
        %v308 = vpack.i.b16 %v307, %v306
        %v311 = vpack.i.b16 %v302, %v300
        %v312 = vshrl.u32 %v300, 16
        %v313 = vshrl.u32 %v302, 16
        %v314 = vpack.i.b16 %v313, %v312
        %v317 = vunpack.c.l.s4 1983009808
        %v318 = vunpack.c.0.s8 %v317
        %v319 = vlaneseq
        %v320 = vshrl.u32 %v319, 7
        %v321 = vsub.s32 %v318, %v320
        %v322 = vrot.slane %v305, %v321
        %v325 = vunpack.c.l.s4 1983009808
        %v326 = vunpack.c.0.s8 %v325
        %v327 = vlaneseq
        %v328 = vshrl.u32 %v327, 7
        %v329 = vsub.s32 %v326, %v328
        %v330 = vrot.slane %v311, %v329
        %v331 = vcombine.low %v322, %v330
        %v332 = vcombine.high %v322, %v330
        %v334 = vunpack.c.l.s4 1934713408
        %v335 = vunpack.c.0.s8 %v334
        %v336 = vlaneseq
        %v337 = vshrl.u32 %v336, 7
        %v338 = vsub.s32 %v335, %v337
        %v339 = vrot.slane %v331, %v338
        %v341 = vunpack.c.l.s4 1934713408
        %v342 = vunpack.c.0.s8 %v341
        %v343 = vlaneseq
        %v344 = vshrl.u32 %v343, 7
        %v345 = vsub.s32 %v342, %v344
        %v346 = vrot.slane %v332, %v345
        %v347 = vcombine.high %v339, 0
        %v348 = vcombine.high %v346, 0
        %v351 = vunpack.c.l.s4 1983009808
        %v352 = vunpack.c.0.s8 %v351
        %v353 = vlaneseq
        %v354 = vshrl.u32 %v353, 7
        %v355 = vsub.s32 %v352, %v354
        %v356 = vrot.slane %v308, %v355
        %v359 = vunpack.c.l.s4 1983009808
        %v360 = vunpack.c.0.s8 %v359
        %v361 = vlaneseq
        %v362 = vshrl.u32 %v361, 7
        %v363 = vsub.s32 %v360, %v362
        %v364 = vrot.slane %v314, %v363
        %v365 = vcombine.low %v356, %v364
        %v366 = vcombine.high %v356, %v364
        %v368 = vunpack.c.l.s4 1934713408
        %v369 = vunpack.c.0.s8 %v368
        %v370 = vlaneseq
        %v371 = vshrl.u32 %v370, 7
        %v372 = vsub.s32 %v369, %v371
        %v373 = vrot.slane %v365, %v372
        %v375 = vunpack.c.l.s4 1934713408
        %v376 = vunpack.c.0.s8 %v375
        %v377 = vlaneseq
        %v378 = vshrl.u32 %v377, 7
        %v379 = vsub.s32 %v376, %v378
        %v380 = vrot.slane %v366, %v379
        %v381 = vcombine.high %v373, 0
        %v382 = vcombine.high %v380, 0
        %v383 = vcombine.low %v339, %v346
        %v385 = vunpack.c.l.s4 1983009808
        %v386 = vunpack.c.0.s8 %v385
        %v387 = vlaneseq
        %v388 = vshrl.u32 %v387, 7
        %v389 = vsub.s32 %v386, %v388
        %v390 = vrot.slane %v383, %v389
        %v391 = vcombine.low %v347, %v348
        %v393 = vunpack.c.l.s4 1983009808
        %v394 = vunpack.c.0.s8 %v393
        %v395 = vlaneseq
        %v396 = vshrl.u32 %v395, 7
        %v397 = vsub.s32 %v394, %v396
        %v398 = vrot.slane %v391, %v397
        %v399 = vcombine.low %v390, %v398
        %v401 = vunpack.c.l.s4 1934713408
        %v402 = vunpack.c.0.s8 %v401
        %v403 = vlaneseq
        %v404 = vshrl.u32 %v403, 7
        %v405 = vsub.s32 %v402, %v404
        %v406 = vrot.slane %v399, %v405
        %v407 = vcombine.high %v406, 0
        %v408 = vcombine.low %v373, %v380
        %v410 = vunpack.c.l.s4 1983009808
        %v411 = vunpack.c.0.s8 %v410
        %v412 = vlaneseq
        %v413 = vshrl.u32 %v412, 7
        %v414 = vsub.s32 %v411, %v413
        %v415 = vrot.slane %v408, %v414
        %v416 = vcombine.low %v381, %v382
        %v418 = vunpack.c.l.s4 1983009808
        %v419 = vunpack.c.0.s8 %v418
        %v420 = vlaneseq
        %v421 = vshrl.u32 %v420, 7
        %v422 = vsub.s32 %v419, %v421
        %v423 = vrot.slane %v416, %v422
        %v424 = vcombine.low %v415, %v423
        %v426 = vunpack.c.l.s4 1934713408
        %v427 = vunpack.c.0.s8 %v426
        %v428 = vlaneseq
        %v429 = vshrl.u32 %v428, 7
        %v430 = vsub.s32 %v427, %v429
        %v431 = vrot.slane %v424, %v430
        %v432 = vcombine.high %v431, 0
        %v435 = vpack.i.b16 %v431, %v406
        %v436 = vshrl.u32 %v406, 16
        %v437 = vshrl.u32 %v431, 16
        %v438 = vpack.i.b16 %v437, %v436
        %v441 = vpack.i.b16 %v432, %v407
        %v442 = vshrl.u32 %v407, 16
        %v443 = vshrl.u32 %v432, 16
        %v444 = vpack.i.b16 %v443, %v442
        %v445 = vld [vmem:[%s244] sm:$0xf]
        %447 = vrot.lane.b32.xlu0 %v445, 120
        %v448 = vpop.permute.xlu0 %447
        %449 = vrot.lane.b32.xlu0 %v445, 112
        %v450 = vpop.permute.xlu0 %449
        %451 = vrot.lane.b32.xlu0 %v445, 104
        %v452 = vpop.permute.xlu0 %451
        %v455 = vpack.i.b16 %v448, %v445
        %v456 = vshrl.u32 %v445, 16
        %v457 = vshrl.u32 %v448, 16
        %v458 = vpack.i.b16 %v457, %v456
        %v461 = vpack.i.b16 %v452, %v450
        %v462 = vshrl.u32 %v450, 16
        %v463 = vshrl.u32 %v452, 16
        %v464 = vpack.i.b16 %v463, %v462
        %v467 = vunpack.c.l.s4 1983009808
        %v468 = vunpack.c.0.s8 %v467
        %v469 = vlaneseq
        %v470 = vshrl.u32 %v469, 7
        %v471 = vsub.s32 %v468, %v470
        %v472 = vrot.slane %v455, %v471
        %v475 = vunpack.c.l.s4 1983009808
        %v476 = vunpack.c.0.s8 %v475
        %v477 = vlaneseq
        %v478 = vshrl.u32 %v477, 7
        %v479 = vsub.s32 %v476, %v478
        %v480 = vrot.slane %v461, %v479
        %v481 = vcombine.low %v472, %v480
        %v482 = vcombine.high %v472, %v480
        %v484 = vunpack.c.l.s4 1934713408
        %v485 = vunpack.c.0.s8 %v484
        %v486 = vlaneseq
        %v487 = vshrl.u32 %v486, 7
        %v488 = vsub.s32 %v485, %v487
        %v489 = vrot.slane %v481, %v488
        %v491 = vunpack.c.l.s4 1934713408
        %v492 = vunpack.c.0.s8 %v491
        %v493 = vlaneseq
        %v494 = vshrl.u32 %v493, 7
        %v495 = vsub.s32 %v492, %v494
        %v496 = vrot.slane %v482, %v495
        %v497 = vcombine.high %v489, 0
        %v498 = vcombine.high %v496, 0
        %v501 = vunpack.c.l.s4 1983009808
        %v502 = vunpack.c.0.s8 %v501
        %v503 = vlaneseq
        %v504 = vshrl.u32 %v503, 7
        %v505 = vsub.s32 %v502, %v504
        %v506 = vrot.slane %v458, %v505
        %v509 = vunpack.c.l.s4 1983009808
        %v510 = vunpack.c.0.s8 %v509
        %v511 = vlaneseq
        %v512 = vshrl.u32 %v511, 7
        %v513 = vsub.s32 %v510, %v512
        %v514 = vrot.slane %v464, %v513
        %v515 = vcombine.low %v506, %v514
        %v516 = vcombine.high %v506, %v514
        %v518 = vunpack.c.l.s4 1934713408
        %v519 = vunpack.c.0.s8 %v518
        %v520 = vlaneseq
        %v521 = vshrl.u32 %v520, 7
        %v522 = vsub.s32 %v519, %v521
        %v523 = vrot.slane %v515, %v522
        %v525 = vunpack.c.l.s4 1934713408
        %v526 = vunpack.c.0.s8 %v525
        %v527 = vlaneseq
        %v528 = vshrl.u32 %v527, 7
        %v529 = vsub.s32 %v526, %v528
        %v530 = vrot.slane %v516, %v529
        %v531 = vcombine.high %v523, 0
        %v532 = vcombine.high %v530, 0
        %v533 = vcombine.low %v489, %v496
        %v535 = vunpack.c.l.s4 1983009808
        %v536 = vunpack.c.0.s8 %v535
        %v537 = vlaneseq
        %v538 = vshrl.u32 %v537, 7
        %v539 = vsub.s32 %v536, %v538
        %v540 = vrot.slane %v533, %v539
        %v541 = vcombine.low %v497, %v498
        %v543 = vunpack.c.l.s4 1983009808
        %v544 = vunpack.c.0.s8 %v543
        %v545 = vlaneseq
        %v546 = vshrl.u32 %v545, 7
        %v547 = vsub.s32 %v544, %v546
        %v548 = vrot.slane %v541, %v547
        %v549 = vcombine.low %v540, %v548
        %v551 = vunpack.c.l.s4 1934713408
        %v552 = vunpack.c.0.s8 %v551
        %v553 = vlaneseq
        %v554 = vshrl.u32 %v553, 7
        %v555 = vsub.s32 %v552, %v554
        %v556 = vrot.slane %v549, %v555
        %v557 = vcombine.high %v556, 0
        %v558 = vcombine.low %v523, %v530
        %v560 = vunpack.c.l.s4 1983009808
        %v561 = vunpack.c.0.s8 %v560
        %v562 = vlaneseq
        %v563 = vshrl.u32 %v562, 7
        %v564 = vsub.s32 %v561, %v563
        %v565 = vrot.slane %v558, %v564
        %v566 = vcombine.low %v531, %v532
        %v568 = vunpack.c.l.s4 1983009808
        %v569 = vunpack.c.0.s8 %v568
        %v570 = vlaneseq
        %v571 = vshrl.u32 %v570, 7
        %v572 = vsub.s32 %v569, %v571
        %v573 = vrot.slane %v566, %v572
        %v574 = vcombine.low %v565, %v573
        %v576 = vunpack.c.l.s4 1934713408
        %v577 = vunpack.c.0.s8 %v576
        %v578 = vlaneseq
        %v579 = vshrl.u32 %v578, 7
        %v580 = vsub.s32 %v577, %v579
        %v581 = vrot.slane %v574, %v580
        %v582 = vcombine.high %v581, 0
        %v585 = vpack.i.b16 %v581, %v556
        %v586 = vshrl.u32 %v556, 16
        %v587 = vshrl.u32 %v581, 16
        %v588 = vpack.i.b16 %v587, %v586
        %v591 = vpack.i.b16 %v582, %v557
        %v592 = vshrl.u32 %v557, 16
        %v593 = vshrl.u32 %v582, 16
        %v594 = vpack.i.b16 %v593, %v592
        %595 = vrot.lane.b32.xlu0 %v445, 96
        %v596 = vpop.permute.xlu0 %595
        %597 = vrot.lane.b32.xlu0 %v448, 96
        %v598 = vpop.permute.xlu0 %597
        %599 = vrot.lane.b32.xlu0 %v450, 96
        %v600 = vpop.permute.xlu0 %599
        %601 = vrot.lane.b32.xlu0 %v452, 96
        %v602 = vpop.permute.xlu0 %601
        %v605 = vpack.i.b16 %v598, %v596
        %v606 = vshrl.u32 %v596, 16
        %v607 = vshrl.u32 %v598, 16
        %v608 = vpack.i.b16 %v607, %v606
        %v611 = vpack.i.b16 %v602, %v600
        %v612 = vshrl.u32 %v600, 16
        %v613 = vshrl.u32 %v602, 16
        %v614 = vpack.i.b16 %v613, %v612
        %v617 = vunpack.c.l.s4 1983009808
        %v618 = vunpack.c.0.s8 %v617
        %v619 = vlaneseq
        %v620 = vshrl.u32 %v619, 7
        %v621 = vsub.s32 %v618, %v620
        %v622 = vrot.slane %v605, %v621
        %v625 = vunpack.c.l.s4 1983009808
        %v626 = vunpack.c.0.s8 %v625
        %v627 = vlaneseq
        %v628 = vshrl.u32 %v627, 7
        %v629 = vsub.s32 %v626, %v628
        %v630 = vrot.slane %v611, %v629
        %v631 = vcombine.low %v622, %v630
        %v632 = vcombine.high %v622, %v630
        %v634 = vunpack.c.l.s4 1934713408
        %v635 = vunpack.c.0.s8 %v634
        %v636 = vlaneseq
        %v637 = vshrl.u32 %v636, 7
        %v638 = vsub.s32 %v635, %v637
        %v639 = vrot.slane %v631, %v638
        %v641 = vunpack.c.l.s4 1934713408
        %v642 = vunpack.c.0.s8 %v641
        %v643 = vlaneseq
        %v644 = vshrl.u32 %v643, 7
        %v645 = vsub.s32 %v642, %v644
        %v646 = vrot.slane %v632, %v645
        %v647 = vcombine.high %v639, 0
        %v648 = vcombine.high %v646, 0
        %v651 = vunpack.c.l.s4 1983009808
        %v652 = vunpack.c.0.s8 %v651
        %v653 = vlaneseq
        %v654 = vshrl.u32 %v653, 7
        %v655 = vsub.s32 %v652, %v654
        %v656 = vrot.slane %v608, %v655
        %v659 = vunpack.c.l.s4 1983009808
        %v660 = vunpack.c.0.s8 %v659
        %v661 = vlaneseq
        %v662 = vshrl.u32 %v661, 7
        %v663 = vsub.s32 %v660, %v662
        %v664 = vrot.slane %v614, %v663
        %v665 = vcombine.low %v656, %v664
        %v666 = vcombine.high %v656, %v664
        %v668 = vunpack.c.l.s4 1934713408
        %v669 = vunpack.c.0.s8 %v668
        %v670 = vlaneseq
        %v671 = vshrl.u32 %v670, 7
        %v672 = vsub.s32 %v669, %v671
        %v673 = vrot.slane %v665, %v672
        %v675 = vunpack.c.l.s4 1934713408
        %v676 = vunpack.c.0.s8 %v675
        %v677 = vlaneseq
        %v678 = vshrl.u32 %v677, 7
        %v679 = vsub.s32 %v676, %v678
        %v680 = vrot.slane %v666, %v679
        %v681 = vcombine.high %v673, 0
        %v682 = vcombine.high %v680, 0
        %v683 = vcombine.low %v639, %v646
        %v685 = vunpack.c.l.s4 1983009808
        %v686 = vunpack.c.0.s8 %v685
        %v687 = vlaneseq
        %v688 = vshrl.u32 %v687, 7
        %v689 = vsub.s32 %v686, %v688
        %v690 = vrot.slane %v683, %v689
        %v691 = vcombine.low %v647, %v648
        %v693 = vunpack.c.l.s4 1983009808
        %v694 = vunpack.c.0.s8 %v693
        %v695 = vlaneseq
        %v696 = vshrl.u32 %v695, 7
        %v697 = vsub.s32 %v694, %v696
        %v698 = vrot.slane %v691, %v697
        %v699 = vcombine.low %v690, %v698
        %v701 = vunpack.c.l.s4 1934713408
        %v702 = vunpack.c.0.s8 %v701
        %v703 = vlaneseq
        %v704 = vshrl.u32 %v703, 7
        %v705 = vsub.s32 %v702, %v704
        %v706 = vrot.slane %v699, %v705
        %v707 = vcombine.high %v706, 0
        %v708 = vcombine.low %v673, %v680
        %v710 = vunpack.c.l.s4 1983009808
        %v711 = vunpack.c.0.s8 %v710
        %v712 = vlaneseq
        %v713 = vshrl.u32 %v712, 7
        %v714 = vsub.s32 %v711, %v713
        %v715 = vrot.slane %v708, %v714
        %v716 = vcombine.low %v681, %v682
        %v718 = vunpack.c.l.s4 1983009808
        %v719 = vunpack.c.0.s8 %v718
        %v720 = vlaneseq
        %v721 = vshrl.u32 %v720, 7
        %v722 = vsub.s32 %v719, %v721
        %v723 = vrot.slane %v716, %v722
        %v724 = vcombine.low %v715, %v723
        %v726 = vunpack.c.l.s4 1934713408
        %v727 = vunpack.c.0.s8 %v726
        %v728 = vlaneseq
        %v729 = vshrl.u32 %v728, 7
        %v730 = vsub.s32 %v727, %v729
        %v731 = vrot.slane %v724, %v730
        %v732 = vcombine.high %v731, 0
        %v735 = vpack.i.b16 %v731, %v706
        %v736 = vshrl.u32 %v706, 16
        %v737 = vshrl.u32 %v731, 16
        %v738 = vpack.i.b16 %v737, %v736
        %v741 = vpack.i.b16 %v732, %v707
        %v742 = vshrl.u32 %v707, 16
        %v743 = vshrl.u32 %v732, 16
        %v744 = vpack.i.b16 %v743, %v742
        %vm745 = vcmask 64512
        %v747 = vsel %vm745, %v435, 0
        %v750 = vsel %vm745, %v585, 0
        %752 = vmatprep.subr.bf16.mxu0 0
        %753 = vmatpush1.bf16.xpose.msra.mxu0 0
        %754 = vmatprep.subr.bf16.mxu0 0
        %755 = vmatpush1.bf16.xpose.msra.mxu0 0
        %756 = vmatprep.subr.bf16.mxu0 0
        %757 = vmatpush1.bf16.xpose.msra.mxu0 0
        %758 = vmatprep.subr.bf16.mxu0 0
        %759 = vmatpush1.bf16.xpose.msra.mxu0 0
        %760 = vmatprep.subr.bf16.mxu0 0
        %761 = vmatpush1.bf16.xpose.msra.mxu0 0
        %762 = vmatprep.subr.bf16.mxu0 0
        %763 = vmatpush1.bf16.xpose.msra.mxu0 0
        %764 = vmatprep.subr.bf16.mxu0 0
        %765 = vmatpush1.bf16.xpose.msra.mxu0 0
        %766 = vmatprep.subr.bf16.mxu0 0
        %767 = vmatpush1.bf16.xpose.msra.mxu0 %v750
        %768 = vmatprep.subr.bf16.mxu0 0
        %769 = vmatpush2.bf16.xpose.msra.mxu0 0
        %770 = vmatprep.subr.bf16.mxu0 0
        %771 = vmatpush2.bf16.xpose.msra.mxu0 0
        %772 = vmatprep.subr.bf16.mxu0 0
        %773 = vmatpush2.bf16.xpose.msra.mxu0 0
        %774 = vmatprep.subr.bf16.mxu0 0
        %775 = vmatpush2.bf16.xpose.msra.mxu0 0
        %776 = vmatprep.subr.bf16.mxu0 0
        %777 = vmatpush2.bf16.xpose.msra.mxu0 0
        %778 = vmatprep.subr.bf16.mxu0 0
        %779 = vmatpush2.bf16.xpose.msra.mxu0 0
        %780 = vmatprep.subr.bf16.mxu0 0
        %781 = vmatpush2.bf16.xpose.msra.mxu0 0
        %782 = vmatprep.subr.bf16.mxu0 0
        %783 = vmatpush2.bf16.xpose.msra.mxu0 0
        %784 = vmatprep.mubr.bf16.mxu0 0
        %785 = vmatmul.mubr.bf16.gmra.mxu0 %v747
        %v786 = vpop.f32.mrf.mxu0
        %v787 = vadd.f32 0.0, %v786
        %v788 = vpop.f32.mrf.mxu0
        %v789 = vpop.f32.mrf.mxu0
        %v790 = vpop.f32.mrf.mxu0
        %791 = vdwg.mxu0
        %v793 = vsel %vm745, %v438, 0
        %v796 = vsel %vm745, %v588, 0
        %798 = vmatprep.subr.bf16.mxu0 0
        %799 = vmatpush1.bf16.xpose.msra.mxu0 0
        %800 = vmatprep.subr.bf16.mxu0 0
        %801 = vmatpush1.bf16.xpose.msra.mxu0 0
        %802 = vmatprep.subr.bf16.mxu0 0
        %803 = vmatpush1.bf16.xpose.msra.mxu0 0
        %804 = vmatprep.subr.bf16.mxu0 0
        %805 = vmatpush1.bf16.xpose.msra.mxu0 0
        %806 = vmatprep.subr.bf16.mxu0 0
        %807 = vmatpush1.bf16.xpose.msra.mxu0 0
        %808 = vmatprep.subr.bf16.mxu0 0
        %809 = vmatpush1.bf16.xpose.msra.mxu0 0
        %810 = vmatprep.subr.bf16.mxu0 0
        %811 = vmatpush1.bf16.xpose.msra.mxu0 0
        %812 = vmatprep.subr.bf16.mxu0 0
        %813 = vmatpush1.bf16.xpose.msra.mxu0 %v796
        %814 = vmatprep.subr.bf16.mxu0 0
        %815 = vmatpush2.bf16.xpose.msra.mxu0 0
        %816 = vmatprep.subr.bf16.mxu0 0
        %817 = vmatpush2.bf16.xpose.msra.mxu0 0
        %818 = vmatprep.subr.bf16.mxu0 0
        %819 = vmatpush2.bf16.xpose.msra.mxu0 0
        %820 = vmatprep.subr.bf16.mxu0 0
        %821 = vmatpush2.bf16.xpose.msra.mxu0 0
        %822 = vmatprep.subr.bf16.mxu0 0
        %823 = vmatpush2.bf16.xpose.msra.mxu0 0
        %824 = vmatprep.subr.bf16.mxu0 0
        %825 = vmatpush2.bf16.xpose.msra.mxu0 0
        %826 = vmatprep.subr.bf16.mxu0 0
        %827 = vmatpush2.bf16.xpose.msra.mxu0 0
        %828 = vmatprep.subr.bf16.mxu0 0
        %829 = vmatpush2.bf16.xpose.msra.mxu0 0
        %830 = vmatprep.mubr.bf16.mxu0 0
        %831 = vmatmul.mubr.bf16.gmra.mxu0 %v793
        %v832 = vpop.f32.mrf.mxu0
        %v833 = vadd.f32 0.0, %v832
        %v834 = vpop.f32.mrf.mxu0
        %v835 = vpop.f32.mrf.mxu0
        %v836 = vpop.f32.mrf.mxu0
        %837 = vdwg.mxu0
        %v839 = vsel %vm745, %v441, 0
        %v842 = vsel %vm745, %v591, 0
        %844 = vmatprep.subr.bf16.mxu0 0
        %845 = vmatpush1.bf16.xpose.msra.mxu0 0
        %846 = vmatprep.subr.bf16.mxu0 0
        %847 = vmatpush1.bf16.xpose.msra.mxu0 0
        %848 = vmatprep.subr.bf16.mxu0 0
        %849 = vmatpush1.bf16.xpose.msra.mxu0 0
        %850 = vmatprep.subr.bf16.mxu0 0
        %851 = vmatpush1.bf16.xpose.msra.mxu0 0
        %852 = vmatprep.subr.bf16.mxu0 0
        %853 = vmatpush1.bf16.xpose.msra.mxu0 0
        %854 = vmatprep.subr.bf16.mxu0 0
        %855 = vmatpush1.bf16.xpose.msra.mxu0 0
        %856 = vmatprep.subr.bf16.mxu0 0
        %857 = vmatpush1.bf16.xpose.msra.mxu0 0
        %858 = vmatprep.subr.bf16.mxu0 0
        %859 = vmatpush1.bf16.xpose.msra.mxu0 %v842
        %860 = vmatprep.subr.bf16.mxu0 0
        %861 = vmatpush2.bf16.xpose.msra.mxu0 0
        %862 = vmatprep.subr.bf16.mxu0 0
        %863 = vmatpush2.bf16.xpose.msra.mxu0 0
        %864 = vmatprep.subr.bf16.mxu0 0
        %865 = vmatpush2.bf16.xpose.msra.mxu0 0
        %866 = vmatprep.subr.bf16.mxu0 0
        %867 = vmatpush2.bf16.xpose.msra.mxu0 0
        %868 = vmatprep.subr.bf16.mxu0 0
        %869 = vmatpush2.bf16.xpose.msra.mxu0 0
        %870 = vmatprep.subr.bf16.mxu0 0
        %871 = vmatpush2.bf16.xpose.msra.mxu0 0
        %872 = vmatprep.subr.bf16.mxu0 0
        %873 = vmatpush2.bf16.xpose.msra.mxu0 0
        %874 = vmatprep.subr.bf16.mxu0 0
        %875 = vmatpush2.bf16.xpose.msra.mxu0 0
        %876 = vmatprep.mubr.bf16.mxu0 0
        %877 = vmatmul.mubr.bf16.gmra.mxu0 %v839
        %v878 = vpop.f32.mrf.mxu0
        %v879 = vadd.f32 0.0, %v878
        %v880 = vpop.f32.mrf.mxu0
        %v881 = vpop.f32.mrf.mxu0
        %v882 = vpop.f32.mrf.mxu0
        %883 = vdwg.mxu0
        %v885 = vsel %vm745, %v444, 0
        %v888 = vsel %vm745, %v594, 0
        %890 = vmatprep.subr.bf16.mxu0 0
        %891 = vmatpush1.bf16.xpose.msra.mxu0 0
        %892 = vmatprep.subr.bf16.mxu0 0
        %893 = vmatpush1.bf16.xpose.msra.mxu0 0
        %894 = vmatprep.subr.bf16.mxu0 0
        %895 = vmatpush1.bf16.xpose.msra.mxu0 0
        %896 = vmatprep.subr.bf16.mxu0 0
        %897 = vmatpush1.bf16.xpose.msra.mxu0 0
        %898 = vmatprep.subr.bf16.mxu0 0
        %899 = vmatpush1.bf16.xpose.msra.mxu0 0
        %900 = vmatprep.subr.bf16.mxu0 0
        %901 = vmatpush1.bf16.xpose.msra.mxu0 0
        %902 = vmatprep.subr.bf16.mxu0 0
        %903 = vmatpush1.bf16.xpose.msra.mxu0 0
        %904 = vmatprep.subr.bf16.mxu0 0
        %905 = vmatpush1.bf16.xpose.msra.mxu0 %v888
        %906 = vmatprep.subr.bf16.mxu0 0
        %907 = vmatpush2.bf16.xpose.msra.mxu0 0
        %908 = vmatprep.subr.bf16.mxu0 0
        %909 = vmatpush2.bf16.xpose.msra.mxu0 0
        %910 = vmatprep.subr.bf16.mxu0 0
        %911 = vmatpush2.bf16.xpose.msra.mxu0 0
        %912 = vmatprep.subr.bf16.mxu0 0
        %913 = vmatpush2.bf16.xpose.msra.mxu0 0
        %914 = vmatprep.subr.bf16.mxu0 0
        %915 = vmatpush2.bf16.xpose.msra.mxu0 0
        %916 = vmatprep.subr.bf16.mxu0 0
        %917 = vmatpush2.bf16.xpose.msra.mxu0 0
        %918 = vmatprep.subr.bf16.mxu0 0
        %919 = vmatpush2.bf16.xpose.msra.mxu0 0
        %920 = vmatprep.subr.bf16.mxu0 0
        %921 = vmatpush2.bf16.xpose.msra.mxu0 0
        %922 = vmatprep.mubr.bf16.mxu0 0
        %923 = vmatmul.mubr.bf16.gmra.mxu0 %v885
        %v924 = vpop.f32.mrf.mxu0
        %v925 = vadd.f32 0.0, %v924
        %v926 = vpop.f32.mrf.mxu0
        %v927 = vpop.f32.mrf.mxu0
        %v928 = vpop.f32.mrf.mxu0
        %929 = vdwg.mxu0
        %v930 = vmul.f32 %v787, 0.35355338
        %v931 = vmul.f32 %v833, 0.35355338
        %v932 = vmul.f32 %v879, 0.35355338
        %v933 = vmul.f32 %v925, 0.35355338
        %v934 = vld [vmem:[#allocation2] sm:$0xff]
        %v935 = vld [vmem:[#allocation2 + $0x8] sm:$0xff]
        %v936 = vld [vmem:[#allocation2 + $0x10] sm:$0xff]
        %v937 = vld [vmem:[#allocation2 + $0x18] sm:$0xff]
        %v938 = vld [vmem:[#allocation3] sm:$0xff]
        %v939 = vld [vmem:[#allocation3 + $0x8] sm:$0xff]
        %v940 = vld [vmem:[#allocation3 + $0x10] sm:$0xff]
        %v941 = vld [vmem:[#allocation3 + $0x18] sm:$0xff]
        %v942 = vld [vmem:[#allocation4] sm:$0xff]
        %v943 = vld [vmem:[#allocation4 + $0x8] sm:$0xff]
        %v944 = vld [vmem:[#allocation4 + $0x10] sm:$0xff]
        %v945 = vld [vmem:[#allocation4 + $0x18] sm:$0xff]
        %v946 = vsel %vm745, %v930, -inf
        %947 = vmax.xlane.f32.xlu0 %v946
        %v948 = vpop.xlane.xlu0 %947
        %v949 = vsel %vm745, %v931, -inf
        %950 = vmax.xlane.f32.xlu0 %v949
        %v951 = vpop.xlane.xlu0 %950
        %v952 = vsel %vm745, %v932, -inf
        %953 = vmax.xlane.f32.xlu0 %v952
        %v954 = vpop.xlane.xlu0 %953
        %v955 = vsel %vm745, %v933, -inf
        %956 = vmax.xlane.f32.xlu0 %v955
        %v957 = vpop.xlane.xlu0 %956
        %v958 = vmax.f32 %v934, %v948
        %v959 = vmax.f32 %v935, %v951
        %v960 = vmax.f32 %v936, %v954
        %v961 = vmax.f32 %v937, %v957
        %v962 = vsub.f32 %v934, %v958
        %v963 = vsub.f32 %v935, %v959
        %v964 = vsub.f32 %v936, %v960
        %v965 = vsub.f32 %v937, %v961
        %v966 = vmul.f32 %v962, 1.442695
        %v967 = vpow.pop %v966
        %v968 = vmul.f32 %v963, 1.442695
        %v969 = vpow.pop %v968
        %v970 = vmul.f32 %v964, 1.442695
        %v971 = vpow.pop %v970
        %v972 = vmul.f32 %v965, 1.442695
        %v973 = vpow.pop %v972
        %975 = vset.pattern.permute.xlu0 0
        %976 = vperm.xlu0 %975, %v958
        %v977 = vpop.permute.xlu0 %976
        %980 = vset.pattern.permute.xlu0 0
        %981 = vperm.xlu0 %980, %v959
        %v982 = vpop.permute.xlu0 %981
        %985 = vset.pattern.permute.xlu0 0
        %986 = vperm.xlu0 %985, %v960
        %v987 = vpop.permute.xlu0 %986
        %990 = vset.pattern.permute.xlu0 0
        %991 = vperm.xlu0 %990, %v961
        %v992 = vpop.permute.xlu0 %991
        %v994 = vsub.f32 %v930, %v977
        %v995 = vsub.f32 %v931, %v982
        %v996 = vsub.f32 %v932, %v987
        %v997 = vsub.f32 %v933, %v992
        %v998 = vmul.f32 %v994, 1.442695
        %v999 = vpow.pop %v998
        %v1000 = vmul.f32 %v995, 1.442695
        %v1001 = vpow.pop %v1000
        %v1002 = vmul.f32 %v996, 1.442695
        %v1003 = vpow.pop %v1002
        %v1004 = vmul.f32 %v997, 1.442695
        %v1005 = vpow.pop %v1004
        %v1006 = vmul.f32 %v967, %v938
        %v1007 = vmul.f32 %v969, %v939
        %v1008 = vmul.f32 %v971, %v940
        %v1009 = vmul.f32 %v973, %v941
        %v1010 = vsel %vm745, %v999, 0.0
        %1011 = vadd.xlane.f32.xlu0 %v1010
        %v1012 = vpop.xlane.xlu0 %1011
        %v1013 = vsel %vm745, %v1001, 0.0
        %1014 = vadd.xlane.f32.xlu0 %v1013
        %v1015 = vpop.xlane.xlu0 %1014
        %v1016 = vsel %vm745, %v1003, 0.0
        %1017 = vadd.xlane.f32.xlu0 %v1016
        %v1018 = vpop.xlane.xlu0 %1017
        %v1019 = vsel %vm745, %v1005, 0.0
        %1020 = vadd.xlane.f32.xlu0 %v1019
        %v1021 = vpop.xlane.xlu0 %1020
        %v1022 = vadd.f32 %v1006, %v1012
        %v1023 = vadd.f32 %v1007, %v1015
        %v1024 = vadd.f32 %v1008, %v1018
        %v1025 = vadd.f32 %v1009, %v1021
        %v1026 = vpack.c.bf16 %v999, %v999
        %v1027 = vpack.c.bf16 %v1001, %v1001
        %v1028 = vpack.c.bf16 %v1003, %v1003
        %v1029 = vpack.c.bf16 %v1005, %v1005
        %v1031 = vsel %vm745, %v1026, 0
        %vm1033 = vcmask 1043456
        %v1035 = vsel %vm1033, %v735, 0
        %1037 = vmatprep.subr.bf16.mxu0 0
        %1038 = vmatpush1.bf16.msra.mxu0 0
        %1039 = vmatprep.subr.bf16.mxu0 0
        %1040 = vmatpush1.bf16.msra.mxu0 0
        %1041 = vmatprep.subr.bf16.mxu0 0
        %1042 = vmatpush1.bf16.msra.mxu0 0
        %1043 = vmatprep.subr.bf16.mxu0 0
        %1044 = vmatpush1.bf16.msra.mxu0 0
        %1045 = vmatprep.subr.bf16.mxu0 0
        %1046 = vmatpush1.bf16.msra.mxu0 0
        %1047 = vmatprep.subr.bf16.mxu0 0
        %1048 = vmatpush1.bf16.msra.mxu0 0
        %1049 = vmatprep.subr.bf16.mxu0 0
        %1050 = vmatpush1.bf16.msra.mxu0 0
        %1051 = vmatprep.subr.bf16.mxu0 0
        %1052 = vmatpush1.bf16.msra.mxu0 %v1035
        %1053 = vmatprep.subr.bf16.mxu0 0
        %1054 = vmatpush2.bf16.msra.mxu0 0
        %1055 = vmatprep.subr.bf16.mxu0 0
        %1056 = vmatpush2.bf16.msra.mxu0 0
        %1057 = vmatprep.subr.bf16.mxu0 0
        %1058 = vmatpush2.bf16.msra.mxu0 0
        %1059 = vmatprep.subr.bf16.mxu0 0
        %1060 = vmatpush2.bf16.msra.mxu0 0
        %1061 = vmatprep.subr.bf16.mxu0 0
        %1062 = vmatpush2.bf16.msra.mxu0 0
        %1063 = vmatprep.subr.bf16.mxu0 0
        %1064 = vmatpush2.bf16.msra.mxu0 0
        %1065 = vmatprep.subr.bf16.mxu0 0
        %1066 = vmatpush2.bf16.msra.mxu0 0
        %1067 = vmatprep.subr.bf16.mxu0 0
        %1068 = vmatpush2.bf16.msra.mxu0 0
        %1069 = vmatprep.mubr.bf16.mxu0 0
        %1070 = vmatmul.mubr.bf16.gmra.mxu0 %v1031
        %v1071 = vpop.f32.mrf.mxu0
        %v1072 = vadd.f32 0.0, %v1071
        %v1073 = vpop.f32.mrf.mxu0
        %v1074 = vpop.f32.mrf.mxu0
        %v1075 = vpop.f32.mrf.mxu0
        %1076 = vdwg.mxu0
        %v1078 = vsel %vm745, %v1027, 0
        %v1081 = vsel %vm1033, %v738, 0
        %1083 = vmatprep.subr.bf16.mxu0 0
        %1084 = vmatpush1.bf16.msra.mxu0 0
        %1085 = vmatprep.subr.bf16.mxu0 0
        %1086 = vmatpush1.bf16.msra.mxu0 0
        %1087 = vmatprep.subr.bf16.mxu0 0
        %1088 = vmatpush1.bf16.msra.mxu0 0
        %1089 = vmatprep.subr.bf16.mxu0 0
        %1090 = vmatpush1.bf16.msra.mxu0 0
        %1091 = vmatprep.subr.bf16.mxu0 0
        %1092 = vmatpush1.bf16.msra.mxu0 0
        %1093 = vmatprep.subr.bf16.mxu0 0
        %1094 = vmatpush1.bf16.msra.mxu0 0
        %1095 = vmatprep.subr.bf16.mxu0 0
        %1096 = vmatpush1.bf16.msra.mxu0 0
        %1097 = vmatprep.subr.bf16.mxu0 0
        %1098 = vmatpush1.bf16.msra.mxu0 %v1081
        %1099 = vmatprep.subr.bf16.mxu0 0
        %1100 = vmatpush2.bf16.msra.mxu0 0
        %1101 = vmatprep.subr.bf16.mxu0 0
        %1102 = vmatpush2.bf16.msra.mxu0 0
        %1103 = vmatprep.subr.bf16.mxu0 0
        %1104 = vmatpush2.bf16.msra.mxu0 0
        %1105 = vmatprep.subr.bf16.mxu0 0
        %1106 = vmatpush2.bf16.msra.mxu0 0
        %1107 = vmatprep.subr.bf16.mxu0 0
        %1108 = vmatpush2.bf16.msra.mxu0 0
        %1109 = vmatprep.subr.bf16.mxu0 0
        %1110 = vmatpush2.bf16.msra.mxu0 0
        %1111 = vmatprep.subr.bf16.mxu0 0
        %1112 = vmatpush2.bf16.msra.mxu0 0
        %1113 = vmatprep.subr.bf16.mxu0 0
        %1114 = vmatpush2.bf16.msra.mxu0 0
        %1115 = vmatprep.mubr.bf16.mxu0 0
        %1116 = vmatmul.mubr.bf16.gmra.mxu0 %v1078
        %v1117 = vpop.f32.mrf.mxu0
        %v1118 = vadd.f32 0.0, %v1117
        %v1119 = vpop.f32.mrf.mxu0
        %v1120 = vpop.f32.mrf.mxu0
        %v1121 = vpop.f32.mrf.mxu0
        %1122 = vdwg.mxu0
        %v1124 = vsel %vm745, %v1028, 0
        %v1127 = vsel %vm1033, %v741, 0
        %1129 = vmatprep.subr.bf16.mxu0 0
        %1130 = vmatpush1.bf16.msra.mxu0 0
        %1131 = vmatprep.subr.bf16.mxu0 0
        %1132 = vmatpush1.bf16.msra.mxu0 0
        %1133 = vmatprep.subr.bf16.mxu0 0
        %1134 = vmatpush1.bf16.msra.mxu0 0
        %1135 = vmatprep.subr.bf16.mxu0 0
        %1136 = vmatpush1.bf16.msra.mxu0 0
        %1137 = vmatprep.subr.bf16.mxu0 0
        %1138 = vmatpush1.bf16.msra.mxu0 0
        %1139 = vmatprep.subr.bf16.mxu0 0
        %1140 = vmatpush1.bf16.msra.mxu0 0
        %1141 = vmatprep.subr.bf16.mxu0 0
        %1142 = vmatpush1.bf16.msra.mxu0 0
        %1143 = vmatprep.subr.bf16.mxu0 0
        %1144 = vmatpush1.bf16.msra.mxu0 %v1127
        %1145 = vmatprep.subr.bf16.mxu0 0
        %1146 = vmatpush2.bf16.msra.mxu0 0
        %1147 = vmatprep.subr.bf16.mxu0 0
        %1148 = vmatpush2.bf16.msra.mxu0 0
        %1149 = vmatprep.subr.bf16.mxu0 0
        %1150 = vmatpush2.bf16.msra.mxu0 0
        %1151 = vmatprep.subr.bf16.mxu0 0
        %1152 = vmatpush2.bf16.msra.mxu0 0
        %1153 = vmatprep.subr.bf16.mxu0 0
        %1154 = vmatpush2.bf16.msra.mxu0 0
        %1155 = vmatprep.subr.bf16.mxu0 0
        %1156 = vmatpush2.bf16.msra.mxu0 0
        %1157 = vmatprep.subr.bf16.mxu0 0
        %1158 = vmatpush2.bf16.msra.mxu0 0
        %1159 = vmatprep.subr.bf16.mxu0 0
        %1160 = vmatpush2.bf16.msra.mxu0 0
        %1161 = vmatprep.mubr.bf16.mxu0 0
        %1162 = vmatmul.mubr.bf16.gmra.mxu0 %v1124
        %v1163 = vpop.f32.mrf.mxu0
        %v1164 = vadd.f32 0.0, %v1163
        %v1165 = vpop.f32.mrf.mxu0
        %v1166 = vpop.f32.mrf.mxu0
        %v1167 = vpop.f32.mrf.mxu0
        %1168 = vdwg.mxu0
        %v1170 = vsel %vm745, %v1029, 0
        %v1173 = vsel %vm1033, %v744, 0
        %1175 = vmatprep.subr.bf16.mxu0 0
        %1176 = vmatpush1.bf16.msra.mxu0 0
        %1177 = vmatprep.subr.bf16.mxu0 0
        %1178 = vmatpush1.bf16.msra.mxu0 0
        %1179 = vmatprep.subr.bf16.mxu0 0
        %1180 = vmatpush1.bf16.msra.mxu0 0
        %1181 = vmatprep.subr.bf16.mxu0 0
        %1182 = vmatpush1.bf16.msra.mxu0 0
        %1183 = vmatprep.subr.bf16.mxu0 0
        %1184 = vmatpush1.bf16.msra.mxu0 0
        %1185 = vmatprep.subr.bf16.mxu0 0
        %1186 = vmatpush1.bf16.msra.mxu0 0
        %1187 = vmatprep.subr.bf16.mxu0 0
        %1188 = vmatpush1.bf16.msra.mxu0 0
        %1189 = vmatprep.subr.bf16.mxu0 0
        %1190 = vmatpush1.bf16.msra.mxu0 %v1173
        %1191 = vmatprep.subr.bf16.mxu0 0
        %1192 = vmatpush2.bf16.msra.mxu0 0
        %1193 = vmatprep.subr.bf16.mxu0 0
        %1194 = vmatpush2.bf16.msra.mxu0 0
        %1195 = vmatprep.subr.bf16.mxu0 0
        %1196 = vmatpush2.bf16.msra.mxu0 0
        %1197 = vmatprep.subr.bf16.mxu0 0
        %1198 = vmatpush2.bf16.msra.mxu0 0
        %1199 = vmatprep.subr.bf16.mxu0 0
        %1200 = vmatpush2.bf16.msra.mxu0 0
        %1201 = vmatprep.subr.bf16.mxu0 0
        %1202 = vmatpush2.bf16.msra.mxu0 0
        %1203 = vmatprep.subr.bf16.mxu0 0
        %1204 = vmatpush2.bf16.msra.mxu0 0
        %1205 = vmatprep.subr.bf16.mxu0 0
        %1206 = vmatpush2.bf16.msra.mxu0 0
        %1207 = vmatprep.mubr.bf16.mxu0 0
        %1208 = vmatmul.mubr.bf16.gmra.mxu0 %v1170
        %v1209 = vpop.f32.mrf.mxu0
        %v1210 = vadd.f32 0.0, %v1209
        %v1211 = vpop.f32.mrf.mxu0
        %v1212 = vpop.f32.mrf.mxu0
        %v1213 = vpop.f32.mrf.mxu0
        %1214 = vdwg.mxu0
        %vm1215 = vcmask 7168
        %1216 = vst.msk [vmem:[#allocation2] sm:$0xff] %vm1215, %v958
        %1217 = vst.msk [vmem:[#allocation2 + $0x8] sm:$0xff] %vm1215, %v959
        %1218 = vst.msk [vmem:[#allocation2 + $0x10] sm:$0xff] %vm1215, %v960
        %1219 = vst.msk [vmem:[#allocation2 + $0x18] sm:$0xff] %vm1215, %v961
        %1220 = vst.msk [vmem:[#allocation3] sm:$0xff] %vm1215, %v1022
        %1221 = vst.msk [vmem:[#allocation3 + $0x8] sm:$0xff] %vm1215, %v1023
        %1222 = vst.msk [vmem:[#allocation3 + $0x10] sm:$0xff] %vm1215, %v1024
        %1223 = vst.msk [vmem:[#allocation3 + $0x18] sm:$0xff] %vm1215, %v1025
        %1225 = vset.pattern.permute.xlu0 0
        %1226 = vperm.xlu0 %1225, %v967
        %v1227 = vpop.permute.xlu0 %1226
        %1230 = vset.pattern.permute.xlu0 0
        %1231 = vperm.xlu0 %1230, %v969
        %v1232 = vpop.permute.xlu0 %1231
        %1235 = vset.pattern.permute.xlu0 0
        %1236 = vperm.xlu0 %1235, %v971
        %v1237 = vpop.permute.xlu0 %1236
        %1240 = vset.pattern.permute.xlu0 0
        %1241 = vperm.xlu0 %1240, %v973
        %v1242 = vpop.permute.xlu0 %1241
        %v1244 = vmul.f32 %v1227, %v942
        %v1245 = vmul.f32 %v1232, %v943
        %v1246 = vmul.f32 %v1237, %v944
        %v1247 = vmul.f32 %v1242, %v945
        %v1248 = vadd.f32 %v1244, %v1072
        %v1249 = vadd.f32 %v1245, %v1118
        %v1250 = vadd.f32 %v1246, %v1164
        %v1251 = vadd.f32 %v1247, %v1210
        %1252 = vst.msk [vmem:[#allocation4] sm:$0xff] %vm745, %v1248
        %1253 = vst.msk [vmem:[#allocation4 + $0x8] sm:$0xff] %vm745, %v1249
        %1254 = vst.msk [vmem:[#allocation4 + $0x10] sm:$0xff] %vm745, %v1250
        %1255 = vst.msk [vmem:[#allocation4 + $0x18] sm:$0xff] %vm745, %v1251
        %v1256 = vld [vmem:[%s235] sm:$0xf]
        %1258 = vrot.lane.b32.xlu0 %v1256, 120
        %v1259 = vpop.permute.xlu0 %1258
        %1260 = vrot.lane.b32.xlu0 %v1256, 112
        %v1261 = vpop.permute.xlu0 %1260
        %1262 = vrot.lane.b32.xlu0 %v1256, 104
        %v1263 = vpop.permute.xlu0 %1262
        %1264 = vrot.lane.b32.xlu0 %v1256, 96
        %v1265 = vpop.permute.xlu0 %1264
        %1266 = vrot.lane.b32.xlu0 %v1259, 96
        %v1267 = vpop.permute.xlu0 %1266
        %1268 = vrot.lane.b32.xlu0 %v1261, 96
        %v1269 = vpop.permute.xlu0 %1268
        %1270 = vrot.lane.b32.xlu0 %v1263, 96
        %v1271 = vpop.permute.xlu0 %1270
        %v1274 = vpack.i.b16 %v1267, %v1265
        %v1275 = vshrl.u32 %v1265, 16
        %v1276 = vshrl.u32 %v1267, 16
        %v1277 = vpack.i.b16 %v1276, %v1275
        %v1280 = vpack.i.b16 %v1271, %v1269
        %v1281 = vshrl.u32 %v1269, 16
        %v1282 = vshrl.u32 %v1271, 16
        %v1283 = vpack.i.b16 %v1282, %v1281
        %v1286 = vunpack.c.l.s4 1983009808
        %v1287 = vunpack.c.0.s8 %v1286
        %v1288 = vlaneseq
        %v1289 = vshrl.u32 %v1288, 7
        %v1290 = vsub.s32 %v1287, %v1289
        %v1291 = vrot.slane %v1274, %v1290
        %v1294 = vunpack.c.l.s4 1983009808
        %v1295 = vunpack.c.0.s8 %v1294
        %v1296 = vlaneseq
        %v1297 = vshrl.u32 %v1296, 7
        %v1298 = vsub.s32 %v1295, %v1297
        %v1299 = vrot.slane %v1280, %v1298
        %v1300 = vcombine.low %v1291, %v1299
        %v1301 = vcombine.high %v1291, %v1299
        %v1303 = vunpack.c.l.s4 1934713408
        %v1304 = vunpack.c.0.s8 %v1303
        %v1305 = vlaneseq
        %v1306 = vshrl.u32 %v1305, 7
        %v1307 = vsub.s32 %v1304, %v1306
        %v1308 = vrot.slane %v1300, %v1307
        %v1310 = vunpack.c.l.s4 1934713408
        %v1311 = vunpack.c.0.s8 %v1310
        %v1312 = vlaneseq
        %v1313 = vshrl.u32 %v1312, 7
        %v1314 = vsub.s32 %v1311, %v1313
        %v1315 = vrot.slane %v1301, %v1314
        %v1316 = vcombine.high %v1308, 0
        %v1317 = vcombine.high %v1315, 0
        %v1320 = vunpack.c.l.s4 1983009808
        %v1321 = vunpack.c.0.s8 %v1320
        %v1322 = vlaneseq
        %v1323 = vshrl.u32 %v1322, 7
        %v1324 = vsub.s32 %v1321, %v1323
        %v1325 = vrot.slane %v1277, %v1324
        %v1328 = vunpack.c.l.s4 1983009808
        %v1329 = vunpack.c.0.s8 %v1328
        %v1330 = vlaneseq
        %v1331 = vshrl.u32 %v1330, 7
        %v1332 = vsub.s32 %v1329, %v1331
        %v1333 = vrot.slane %v1283, %v1332
        %v1334 = vcombine.low %v1325, %v1333
        %v1335 = vcombine.high %v1325, %v1333
        %v1337 = vunpack.c.l.s4 1934713408
        %v1338 = vunpack.c.0.s8 %v1337
        %v1339 = vlaneseq
        %v1340 = vshrl.u32 %v1339, 7
        %v1341 = vsub.s32 %v1338, %v1340
        %v1342 = vrot.slane %v1334, %v1341
        %v1344 = vunpack.c.l.s4 1934713408
        %v1345 = vunpack.c.0.s8 %v1344
        %v1346 = vlaneseq
        %v1347 = vshrl.u32 %v1346, 7
        %v1348 = vsub.s32 %v1345, %v1347
        %v1349 = vrot.slane %v1335, %v1348
        %v1350 = vcombine.high %v1342, 0
        %v1351 = vcombine.high %v1349, 0
        %v1352 = vcombine.low %v1308, %v1315
        %v1354 = vunpack.c.l.s4 1983009808
        %v1355 = vunpack.c.0.s8 %v1354
        %v1356 = vlaneseq
        %v1357 = vshrl.u32 %v1356, 7
        %v1358 = vsub.s32 %v1355, %v1357
        %v1359 = vrot.slane %v1352, %v1358
        %v1360 = vcombine.low %v1316, %v1317
        %v1362 = vunpack.c.l.s4 1983009808
        %v1363 = vunpack.c.0.s8 %v1362
        %v1364 = vlaneseq
        %v1365 = vshrl.u32 %v1364, 7
        %v1366 = vsub.s32 %v1363, %v1365
        %v1367 = vrot.slane %v1360, %v1366
        %v1368 = vcombine.low %v1359, %v1367
        %v1370 = vunpack.c.l.s4 1934713408
        %v1371 = vunpack.c.0.s8 %v1370
        %v1372 = vlaneseq
        %v1373 = vshrl.u32 %v1372, 7
        %v1374 = vsub.s32 %v1371, %v1373
        %v1375 = vrot.slane %v1368, %v1374
        %v1376 = vcombine.high %v1375, 0
        %v1377 = vcombine.low %v1342, %v1349
        %v1379 = vunpack.c.l.s4 1983009808
        %v1380 = vunpack.c.0.s8 %v1379
        %v1381 = vlaneseq
        %v1382 = vshrl.u32 %v1381, 7
        %v1383 = vsub.s32 %v1380, %v1382
        %v1384 = vrot.slane %v1377, %v1383
        %v1385 = vcombine.low %v1350, %v1351
        %v1387 = vunpack.c.l.s4 1983009808
        %v1388 = vunpack.c.0.s8 %v1387
        %v1389 = vlaneseq
        %v1390 = vshrl.u32 %v1389, 7
        %v1391 = vsub.s32 %v1388, %v1390
        %v1392 = vrot.slane %v1385, %v1391
        %v1393 = vcombine.low %v1384, %v1392
        %v1395 = vunpack.c.l.s4 1934713408
        %v1396 = vunpack.c.0.s8 %v1395
        %v1397 = vlaneseq
        %v1398 = vshrl.u32 %v1397, 7
        %v1399 = vsub.s32 %v1396, %v1398
        %v1400 = vrot.slane %v1393, %v1399
        %v1401 = vcombine.high %v1400, 0
        %v1404 = vpack.i.b16 %v1400, %v1375
        %v1405 = vshrl.u32 %v1375, 16
        %v1406 = vshrl.u32 %v1400, 16
        %v1407 = vpack.i.b16 %v1406, %v1405
        %v1410 = vpack.i.b16 %v1401, %v1376
        %v1411 = vshrl.u32 %v1376, 16
        %v1412 = vshrl.u32 %v1401, 16
        %v1413 = vpack.i.b16 %v1412, %v1411
        %v1414 = vld [vmem:[%s244] sm:$0xf]
        %1416 = vrot.lane.b32.xlu0 %v1414, 120
        %v1417 = vpop.permute.xlu0 %1416
        %1418 = vrot.lane.b32.xlu0 %v1414, 112
        %v1419 = vpop.permute.xlu0 %1418
        %1420 = vrot.lane.b32.xlu0 %v1414, 104
        %v1421 = vpop.permute.xlu0 %1420
        %1422 = vrot.lane.b32.xlu0 %v1414, 64
        %v1423 = vpop.permute.xlu0 %1422
        %1424 = vrot.lane.b32.xlu0 %v1417, 64
        %v1425 = vpop.permute.xlu0 %1424
        %1426 = vrot.lane.b32.xlu0 %v1419, 64
        %v1427 = vpop.permute.xlu0 %1426
        %1428 = vrot.lane.b32.xlu0 %v1421, 64
        %v1429 = vpop.permute.xlu0 %1428
        %v1432 = vpack.i.b16 %v1425, %v1423
        %v1433 = vshrl.u32 %v1423, 16
        %v1434 = vshrl.u32 %v1425, 16
        %v1435 = vpack.i.b16 %v1434, %v1433
        %v1438 = vpack.i.b16 %v1429, %v1427
        %v1439 = vshrl.u32 %v1427, 16
        %v1440 = vshrl.u32 %v1429, 16
        %v1441 = vpack.i.b16 %v1440, %v1439
        %v1444 = vunpack.c.l.s4 1983009808
        %v1445 = vunpack.c.0.s8 %v1444
        %v1446 = vlaneseq
        %v1447 = vshrl.u32 %v1446, 7
        %v1448 = vsub.s32 %v1445, %v1447
        %v1449 = vrot.slane %v1432, %v1448
        %v1452 = vunpack.c.l.s4 1983009808
        %v1453 = vunpack.c.0.s8 %v1452
        %v1454 = vlaneseq
        %v1455 = vshrl.u32 %v1454, 7
        %v1456 = vsub.s32 %v1453, %v1455
        %v1457 = vrot.slane %v1438, %v1456
        %v1458 = vcombine.low %v1449, %v1457
        %v1459 = vcombine.high %v1449, %v1457
        %v1461 = vunpack.c.l.s4 1934713408
        %v1462 = vunpack.c.0.s8 %v1461
        %v1463 = vlaneseq
        %v1464 = vshrl.u32 %v1463, 7
        %v1465 = vsub.s32 %v1462, %v1464
        %v1466 = vrot.slane %v1458, %v1465
        %v1468 = vunpack.c.l.s4 1934713408
        %v1469 = vunpack.c.0.s8 %v1468
        %v1470 = vlaneseq
        %v1471 = vshrl.u32 %v1470, 7
        %v1472 = vsub.s32 %v1469, %v1471
        %v1473 = vrot.slane %v1459, %v1472
        %v1474 = vcombine.high %v1466, 0
        %v1475 = vcombine.high %v1473, 0
        %v1478 = vunpack.c.l.s4 1983009808
        %v1479 = vunpack.c.0.s8 %v1478
        %v1480 = vlaneseq
        %v1481 = vshrl.u32 %v1480, 7
        %v1482 = vsub.s32 %v1479, %v1481
        %v1483 = vrot.slane %v1435, %v1482
        %v1486 = vunpack.c.l.s4 1983009808
        %v1487 = vunpack.c.0.s8 %v1486
        %v1488 = vlaneseq
        %v1489 = vshrl.u32 %v1488, 7
        %v1490 = vsub.s32 %v1487, %v1489
        %v1491 = vrot.slane %v1441, %v1490
        %v1492 = vcombine.low %v1483, %v1491
        %v1493 = vcombine.high %v1483, %v1491
        %v1495 = vunpack.c.l.s4 1934713408
        %v1496 = vunpack.c.0.s8 %v1495
        %v1497 = vlaneseq
        %v1498 = vshrl.u32 %v1497, 7
        %v1499 = vsub.s32 %v1496, %v1498
        %v1500 = vrot.slane %v1492, %v1499
        %v1502 = vunpack.c.l.s4 1934713408
        %v1503 = vunpack.c.0.s8 %v1502
        %v1504 = vlaneseq
        %v1505 = vshrl.u32 %v1504, 7
        %v1506 = vsub.s32 %v1503, %v1505
        %v1507 = vrot.slane %v1493, %v1506
        %v1508 = vcombine.high %v1500, 0
        %v1509 = vcombine.high %v1507, 0
        %v1510 = vcombine.low %v1466, %v1473
        %v1512 = vunpack.c.l.s4 1983009808
        %v1513 = vunpack.c.0.s8 %v1512
        %v1514 = vlaneseq
        %v1515 = vshrl.u32 %v1514, 7
        %v1516 = vsub.s32 %v1513, %v1515
        %v1517 = vrot.slane %v1510, %v1516
        %v1518 = vcombine.low %v1474, %v1475
        %v1520 = vunpack.c.l.s4 1983009808
        %v1521 = vunpack.c.0.s8 %v1520
        %v1522 = vlaneseq
        %v1523 = vshrl.u32 %v1522, 7
        %v1524 = vsub.s32 %v1521, %v1523
        %v1525 = vrot.slane %v1518, %v1524
        %v1526 = vcombine.low %v1517, %v1525
        %v1528 = vunpack.c.l.s4 1934713408
        %v1529 = vunpack.c.0.s8 %v1528
        %v1530 = vlaneseq
        %v1531 = vshrl.u32 %v1530, 7
        %v1532 = vsub.s32 %v1529, %v1531
        %v1533 = vrot.slane %v1526, %v1532
        %v1534 = vcombine.high %v1533, 0
        %v1535 = vcombine.low %v1500, %v1507
        %v1537 = vunpack.c.l.s4 1983009808
        %v1538 = vunpack.c.0.s8 %v1537
        %v1539 = vlaneseq
        %v1540 = vshrl.u32 %v1539, 7
        %v1541 = vsub.s32 %v1538, %v1540
        %v1542 = vrot.slane %v1535, %v1541
        %v1543 = vcombine.low %v1508, %v1509
        %v1545 = vunpack.c.l.s4 1983009808
        %v1546 = vunpack.c.0.s8 %v1545
        %v1547 = vlaneseq
        %v1548 = vshrl.u32 %v1547, 7
        %v1549 = vsub.s32 %v1546, %v1548
        %v1550 = vrot.slane %v1543, %v1549
        %v1551 = vcombine.low %v1542, %v1550
        %v1553 = vunpack.c.l.s4 1934713408
        %v1554 = vunpack.c.0.s8 %v1553
        %v1555 = vlaneseq
        %v1556 = vshrl.u32 %v1555, 7
        %v1557 = vsub.s32 %v1554, %v1556
        %v1558 = vrot.slane %v1551, %v1557
        %v1559 = vcombine.high %v1558, 0
        %v1562 = vpack.i.b16 %v1558, %v1533
        %v1563 = vshrl.u32 %v1533, 16
        %v1564 = vshrl.u32 %v1558, 16
        %v1565 = vpack.i.b16 %v1564, %v1563
        %v1568 = vpack.i.b16 %v1559, %v1534
        %v1569 = vshrl.u32 %v1534, 16
        %v1570 = vshrl.u32 %v1559, 16
        %v1571 = vpack.i.b16 %v1570, %v1569
        %1572 = vrot.lane.b32.xlu0 %v1414, 32
        %v1573 = vpop.permute.xlu0 %1572
        %1574 = vrot.lane.b32.xlu0 %v1417, 32
        %v1575 = vpop.permute.xlu0 %1574
        %1576 = vrot.lane.b32.xlu0 %v1419, 32
        %v1577 = vpop.permute.xlu0 %1576
        %1578 = vrot.lane.b32.xlu0 %v1421, 32
        %v1579 = vpop.permute.xlu0 %1578
        %v1582 = vpack.i.b16 %v1575, %v1573
        %v1583 = vshrl.u32 %v1573, 16
        %v1584 = vshrl.u32 %v1575, 16
        %v1585 = vpack.i.b16 %v1584, %v1583
        %v1588 = vpack.i.b16 %v1579, %v1577
        %v1589 = vshrl.u32 %v1577, 16
        %v1590 = vshrl.u32 %v1579, 16
        %v1591 = vpack.i.b16 %v1590, %v1589
        %v1594 = vunpack.c.l.s4 1983009808
        %v1595 = vunpack.c.0.s8 %v1594
        %v1596 = vlaneseq
        %v1597 = vshrl.u32 %v1596, 7
        %v1598 = vsub.s32 %v1595, %v1597
        %v1599 = vrot.slane %v1582, %v1598
        %v1602 = vunpack.c.l.s4 1983009808
        %v1603 = vunpack.c.0.s8 %v1602
        %v1604 = vlaneseq
        %v1605 = vshrl.u32 %v1604, 7
        %v1606 = vsub.s32 %v1603, %v1605
        %v1607 = vrot.slane %v1588, %v1606
        %v1608 = vcombine.low %v1599, %v1607
        %v1609 = vcombine.high %v1599, %v1607
        %v1611 = vunpack.c.l.s4 1934713408
        %v1612 = vunpack.c.0.s8 %v1611
        %v1613 = vlaneseq
        %v1614 = vshrl.u32 %v1613, 7
        %v1615 = vsub.s32 %v1612, %v1614
        %v1616 = vrot.slane %v1608, %v1615
        %v1618 = vunpack.c.l.s4 1934713408
        %v1619 = vunpack.c.0.s8 %v1618
        %v1620 = vlaneseq
        %v1621 = vshrl.u32 %v1620, 7
        %v1622 = vsub.s32 %v1619, %v1621
        %v1623 = vrot.slane %v1609, %v1622
        %v1624 = vcombine.high %v1616, 0
        %v1625 = vcombine.high %v1623, 0
        %v1628 = vunpack.c.l.s4 1983009808
        %v1629 = vunpack.c.0.s8 %v1628
        %v1630 = vlaneseq
        %v1631 = vshrl.u32 %v1630, 7
        %v1632 = vsub.s32 %v1629, %v1631
        %v1633 = vrot.slane %v1585, %v1632
        %v1636 = vunpack.c.l.s4 1983009808
        %v1637 = vunpack.c.0.s8 %v1636
        %v1638 = vlaneseq
        %v1639 = vshrl.u32 %v1638, 7
        %v1640 = vsub.s32 %v1637, %v1639
        %v1641 = vrot.slane %v1591, %v1640
        %v1642 = vcombine.low %v1633, %v1641
        %v1643 = vcombine.high %v1633, %v1641
        %v1645 = vunpack.c.l.s4 1934713408
        %v1646 = vunpack.c.0.s8 %v1645
        %v1647 = vlaneseq
        %v1648 = vshrl.u32 %v1647, 7
        %v1649 = vsub.s32 %v1646, %v1648
        %v1650 = vrot.slane %v1642, %v1649
        %v1652 = vunpack.c.l.s4 1934713408
        %v1653 = vunpack.c.0.s8 %v1652
        %v1654 = vlaneseq
        %v1655 = vshrl.u32 %v1654, 7
        %v1656 = vsub.s32 %v1653, %v1655
        %v1657 = vrot.slane %v1643, %v1656
        %v1658 = vcombine.high %v1650, 0
        %v1659 = vcombine.high %v1657, 0
        %v1660 = vcombine.low %v1616, %v1623
        %v1662 = vunpack.c.l.s4 1983009808
        %v1663 = vunpack.c.0.s8 %v1662
        %v1664 = vlaneseq
        %v1665 = vshrl.u32 %v1664, 7
        %v1666 = vsub.s32 %v1663, %v1665
        %v1667 = vrot.slane %v1660, %v1666
        %v1668 = vcombine.low %v1624, %v1625
        %v1670 = vunpack.c.l.s4 1983009808
        %v1671 = vunpack.c.0.s8 %v1670
        %v1672 = vlaneseq
        %v1673 = vshrl.u32 %v1672, 7
        %v1674 = vsub.s32 %v1671, %v1673
        %v1675 = vrot.slane %v1668, %v1674
        %v1676 = vcombine.low %v1667, %v1675
        %v1678 = vunpack.c.l.s4 1934713408
        %v1679 = vunpack.c.0.s8 %v1678
        %v1680 = vlaneseq
        %v1681 = vshrl.u32 %v1680, 7
        %v1682 = vsub.s32 %v1679, %v1681
        %v1683 = vrot.slane %v1676, %v1682
        %v1684 = vcombine.high %v1683, 0
        %v1685 = vcombine.low %v1650, %v1657
        %v1687 = vunpack.c.l.s4 1983009808
        %v1688 = vunpack.c.0.s8 %v1687
        %v1689 = vlaneseq
        %v1690 = vshrl.u32 %v1689, 7
        %v1691 = vsub.s32 %v1688, %v1690
        %v1692 = vrot.slane %v1685, %v1691
        %v1693 = vcombine.low %v1658, %v1659
        %v1695 = vunpack.c.l.s4 1983009808
        %v1696 = vunpack.c.0.s8 %v1695
        %v1697 = vlaneseq
        %v1698 = vshrl.u32 %v1697, 7
        %v1699 = vsub.s32 %v1696, %v1698
        %v1700 = vrot.slane %v1693, %v1699
        %v1701 = vcombine.low %v1692, %v1700
        %v1703 = vunpack.c.l.s4 1934713408
        %v1704 = vunpack.c.0.s8 %v1703
        %v1705 = vlaneseq
        %v1706 = vshrl.u32 %v1705, 7
        %v1707 = vsub.s32 %v1704, %v1706
        %v1708 = vrot.slane %v1701, %v1707
        %v1709 = vcombine.high %v1708, 0
        %v1712 = vpack.i.b16 %v1708, %v1683
        %v1713 = vshrl.u32 %v1683, 16
        %v1714 = vshrl.u32 %v1708, 16
        %v1715 = vpack.i.b16 %v1714, %v1713
        %v1718 = vpack.i.b16 %v1709, %v1684
        %v1719 = vshrl.u32 %v1684, 16
        %v1720 = vshrl.u32 %v1709, 16
        %v1721 = vpack.i.b16 %v1720, %v1719
        %v1723 = vsel %vm745, %v1404, 0
        %v1726 = vsel %vm745, %v1562, 0
        %1728 = vmatprep.subr.bf16.mxu0 0
        %1729 = vmatpush1.bf16.xpose.msra.mxu0 0
        %1730 = vmatprep.subr.bf16.mxu0 0
        %1731 = vmatpush1.bf16.xpose.msra.mxu0 0
        %1732 = vmatprep.subr.bf16.mxu0 0
        %1733 = vmatpush1.bf16.xpose.msra.mxu0 0
        %1734 = vmatprep.subr.bf16.mxu0 0
        %1735 = vmatpush1.bf16.xpose.msra.mxu0 0
        %1736 = vmatprep.subr.bf16.mxu0 0
        %1737 = vmatpush1.bf16.xpose.msra.mxu0 0
        %1738 = vmatprep.subr.bf16.mxu0 0
        %1739 = vmatpush1.bf16.xpose.msra.mxu0 0
        %1740 = vmatprep.subr.bf16.mxu0 0
        %1741 = vmatpush1.bf16.xpose.msra.mxu0 0
        %1742 = vmatprep.subr.bf16.mxu0 0
        %1743 = vmatpush1.bf16.xpose.msra.mxu0 %v1726
        %1744 = vmatprep.subr.bf16.mxu0 0
        %1745 = vmatpush2.bf16.xpose.msra.mxu0 0
        %1746 = vmatprep.subr.bf16.mxu0 0
        %1747 = vmatpush2.bf16.xpose.msra.mxu0 0
        %1748 = vmatprep.subr.bf16.mxu0 0
        %1749 = vmatpush2.bf16.xpose.msra.mxu0 0
        %1750 = vmatprep.subr.bf16.mxu0 0
        %1751 = vmatpush2.bf16.xpose.msra.mxu0 0
        %1752 = vmatprep.subr.bf16.mxu0 0
        %1753 = vmatpush2.bf16.xpose.msra.mxu0 0
        %1754 = vmatprep.subr.bf16.mxu0 0
        %1755 = vmatpush2.bf16.xpose.msra.mxu0 0
        %1756 = vmatprep.subr.bf16.mxu0 0
        %1757 = vmatpush2.bf16.xpose.msra.mxu0 0
        %1758 = vmatprep.subr.bf16.mxu0 0
        %1759 = vmatpush2.bf16.xpose.msra.mxu0 0
        %1760 = vmatprep.mubr.bf16.mxu0 0
        %1761 = vmatmul.mubr.bf16.gmra.mxu0 %v1723
        %v1762 = vpop.f32.mrf.mxu0
        %v1763 = vadd.f32 0.0, %v1762
        %v1764 = vpop.f32.mrf.mxu0
        %v1765 = vpop.f32.mrf.mxu0
        %v1766 = vpop.f32.mrf.mxu0
        %1767 = vdwg.mxu0
        %v1769 = vsel %vm745, %v1407, 0
        %v1772 = vsel %vm745, %v1565, 0
        %1774 = vmatprep.subr.bf16.mxu0 0
        %1775 = vmatpush1.bf16.xpose.msra.mxu0 0
        %1776 = vmatprep.subr.bf16.mxu0 0
        %1777 = vmatpush1.bf16.xpose.msra.mxu0 0
        %1778 = vmatprep.subr.bf16.mxu0 0
        %1779 = vmatpush1.bf16.xpose.msra.mxu0 0
        %1780 = vmatprep.subr.bf16.mxu0 0
        %1781 = vmatpush1.bf16.xpose.msra.mxu0 0
        %1782 = vmatprep.subr.bf16.mxu0 0
        %1783 = vmatpush1.bf16.xpose.msra.mxu0 0
        %1784 = vmatprep.subr.bf16.mxu0 0
        %1785 = vmatpush1.bf16.xpose.msra.mxu0 0
        %1786 = vmatprep.subr.bf16.mxu0 0
        %1787 = vmatpush1.bf16.xpose.msra.mxu0 0
        %1788 = vmatprep.subr.bf16.mxu0 0
        %1789 = vmatpush1.bf16.xpose.msra.mxu0 %v1772
        %1790 = vmatprep.subr.bf16.mxu0 0
        %1791 = vmatpush2.bf16.xpose.msra.mxu0 0
        %1792 = vmatprep.subr.bf16.mxu0 0
        %1793 = vmatpush2.bf16.xpose.msra.mxu0 0
        %1794 = vmatprep.subr.bf16.mxu0 0
        %1795 = vmatpush2.bf16.xpose.msra.mxu0 0
        %1796 = vmatprep.subr.bf16.mxu0 0
        %1797 = vmatpush2.bf16.xpose.msra.mxu0 0
        %1798 = vmatprep.subr.bf16.mxu0 0
        %1799 = vmatpush2.bf16.xpose.msra.mxu0 0
        %1800 = vmatprep.subr.bf16.mxu0 0
        %1801 = vmatpush2.bf16.xpose.msra.mxu0 0
        %1802 = vmatprep.subr.bf16.mxu0 0
        %1803 = vmatpush2.bf16.xpose.msra.mxu0 0
        %1804 = vmatprep.subr.bf16.mxu0 0
        %1805 = vmatpush2.bf16.xpose.msra.mxu0 0
        %1806 = vmatprep.mubr.bf16.mxu0 0
        %1807 = vmatmul.mubr.bf16.gmra.mxu0 %v1769
        %v1808 = vpop.f32.mrf.mxu0
        %v1809 = vadd.f32 0.0, %v1808
        %v1810 = vpop.f32.mrf.mxu0
        %v1811 = vpop.f32.mrf.mxu0
        %v1812 = vpop.f32.mrf.mxu0
        %1813 = vdwg.mxu0
        %v1815 = vsel %vm745, %v1410, 0
        %v1818 = vsel %vm745, %v1568, 0
        %1820 = vmatprep.subr.bf16.mxu0 0
        %1821 = vmatpush1.bf16.xpose.msra.mxu0 0
        %1822 = vmatprep.subr.bf16.mxu0 0
        %1823 = vmatpush1.bf16.xpose.msra.mxu0 0
        %1824 = vmatprep.subr.bf16.mxu0 0
        %1825 = vmatpush1.bf16.xpose.msra.mxu0 0
        %1826 = vmatprep.subr.bf16.mxu0 0
        %1827 = vmatpush1.bf16.xpose.msra.mxu0 0
        %1828 = vmatprep.subr.bf16.mxu0 0
        %1829 = vmatpush1.bf16.xpose.msra.mxu0 0
        %1830 = vmatprep.subr.bf16.mxu0 0
        %1831 = vmatpush1.bf16.xpose.msra.mxu0 0
        %1832 = vmatprep.subr.bf16.mxu0 0
        %1833 = vmatpush1.bf16.xpose.msra.mxu0 0
        %1834 = vmatprep.subr.bf16.mxu0 0
        %1835 = vmatpush1.bf16.xpose.msra.mxu0 %v1818
        %1836 = vmatprep.subr.bf16.mxu0 0
        %1837 = vmatpush2.bf16.xpose.msra.mxu0 0
        %1838 = vmatprep.subr.bf16.mxu0 0
        %1839 = vmatpush2.bf16.xpose.msra.mxu0 0
        %1840 = vmatprep.subr.bf16.mxu0 0
        %1841 = vmatpush2.bf16.xpose.msra.mxu0 0
        %1842 = vmatprep.subr.bf16.mxu0 0
        %1843 = vmatpush2.bf16.xpose.msra.mxu0 0
        %1844 = vmatprep.subr.bf16.mxu0 0
        %1845 = vmatpush2.bf16.xpose.msra.mxu0 0
        %1846 = vmatprep.subr.bf16.mxu0 0
        %1847 = vmatpush2.bf16.xpose.msra.mxu0 0
        %1848 = vmatprep.subr.bf16.mxu0 0
        %1849 = vmatpush2.bf16.xpose.msra.mxu0 0
        %1850 = vmatprep.subr.bf16.mxu0 0
        %1851 = vmatpush2.bf16.xpose.msra.mxu0 0
        %1852 = vmatprep.mubr.bf16.mxu0 0
        %1853 = vmatmul.mubr.bf16.gmra.mxu0 %v1815
        %v1854 = vpop.f32.mrf.mxu0
        %v1855 = vadd.f32 0.0, %v1854
        %v1856 = vpop.f32.mrf.mxu0
        %v1857 = vpop.f32.mrf.mxu0
        %v1858 = vpop.f32.mrf.mxu0
        %1859 = vdwg.mxu0
        %v1861 = vsel %vm745, %v1413, 0
        %v1864 = vsel %vm745, %v1571, 0
        %1866 = vmatprep.subr.bf16.mxu0 0
        %1867 = vmatpush1.bf16.xpose.msra.mxu0 0
        %1868 = vmatprep.subr.bf16.mxu0 0
        %1869 = vmatpush1.bf16.xpose.msra.mxu0 0
        %1870 = vmatprep.subr.bf16.mxu0 0
        %1871 = vmatpush1.bf16.xpose.msra.mxu0 0
        %1872 = vmatprep.subr.bf16.mxu0 0
        %1873 = vmatpush1.bf16.xpose.msra.mxu0 0
        %1874 = vmatprep.subr.bf16.mxu0 0
        %1875 = vmatpush1.bf16.xpose.msra.mxu0 0
        %1876 = vmatprep.subr.bf16.mxu0 0
        %1877 = vmatpush1.bf16.xpose.msra.mxu0 0
        %1878 = vmatprep.subr.bf16.mxu0 0
        %1879 = vmatpush1.bf16.xpose.msra.mxu0 0
        %1880 = vmatprep.subr.bf16.mxu0 0
        %1881 = vmatpush1.bf16.xpose.msra.mxu0 %v1864
        %1882 = vmatprep.subr.bf16.mxu0 0
        %1883 = vmatpush2.bf16.xpose.msra.mxu0 0
        %1884 = vmatprep.subr.bf16.mxu0 0
        %1885 = vmatpush2.bf16.xpose.msra.mxu0 0
        %1886 = vmatprep.subr.bf16.mxu0 0
        %1887 = vmatpush2.bf16.xpose.msra.mxu0 0
        %1888 = vmatprep.subr.bf16.mxu0 0
        %1889 = vmatpush2.bf16.xpose.msra.mxu0 0
        %1890 = vmatprep.subr.bf16.mxu0 0
        %1891 = vmatpush2.bf16.xpose.msra.mxu0 0
        %1892 = vmatprep.subr.bf16.mxu0 0
        %1893 = vmatpush2.bf16.xpose.msra.mxu0 0
        %1894 = vmatprep.subr.bf16.mxu0 0
        %1895 = vmatpush2.bf16.xpose.msra.mxu0 0
        %1896 = vmatprep.subr.bf16.mxu0 0
        %1897 = vmatpush2.bf16.xpose.msra.mxu0 0
        %1898 = vmatprep.mubr.bf16.mxu0 0
        %1899 = vmatmul.mubr.bf16.gmra.mxu0 %v1861
        %v1900 = vpop.f32.mrf.mxu0
        %v1901 = vadd.f32 0.0, %v1900
        %v1902 = vpop.f32.mrf.mxu0
        %v1903 = vpop.f32.mrf.mxu0
        %v1904 = vpop.f32.mrf.mxu0
        %1905 = vdwg.mxu0
        %v1906 = vmul.f32 %v1763, 0.35355338
        %v1907 = vmul.f32 %v1809, 0.35355338
        %v1908 = vmul.f32 %v1855, 0.35355338
        %v1909 = vmul.f32 %v1901, 0.35355338
        %s1910 = scalar_lea.vmem [#allocation2], 32
        %v1911 = vld [vmem:[%s1910] sm:$0xff]
        %v1912 = vld [vmem:[%s1910 + $0x8] sm:$0xff]
        %v1913 = vld [vmem:[%s1910 + $0x10] sm:$0xff]
        %v1914 = vld [vmem:[%s1910 + $0x18] sm:$0xff]
        %s1915 = scalar_lea.vmem [#allocation3], 32
        %v1916 = vld [vmem:[%s1915] sm:$0xff]
        %v1917 = vld [vmem:[%s1915 + $0x8] sm:$0xff]
        %v1918 = vld [vmem:[%s1915 + $0x10] sm:$0xff]
        %v1919 = vld [vmem:[%s1915 + $0x18] sm:$0xff]
        %s1920 = scalar_lea.vmem [#allocation4], 32
        %v1921 = vld [vmem:[%s1920] sm:$0xff]
        %v1922 = vld [vmem:[%s1920 + $0x8] sm:$0xff]
        %v1923 = vld [vmem:[%s1920 + $0x10] sm:$0xff]
        %v1924 = vld [vmem:[%s1920 + $0x18] sm:$0xff]
        %v1925 = vsel %vm745, %v1906, -inf
        %1926 = vmax.xlane.f32.xlu0 %v1925
        %v1927 = vpop.xlane.xlu0 %1926
        %v1928 = vsel %vm745, %v1907, -inf
        %1929 = vmax.xlane.f32.xlu0 %v1928
        %v1930 = vpop.xlane.xlu0 %1929
        %v1931 = vsel %vm745, %v1908, -inf
        %1932 = vmax.xlane.f32.xlu0 %v1931
        %v1933 = vpop.xlane.xlu0 %1932
        %v1934 = vsel %vm745, %v1909, -inf
        %1935 = vmax.xlane.f32.xlu0 %v1934
        %v1936 = vpop.xlane.xlu0 %1935
        %v1937 = vmax.f32 %v1911, %v1927
        %v1938 = vmax.f32 %v1912, %v1930
        %v1939 = vmax.f32 %v1913, %v1933
        %v1940 = vmax.f32 %v1914, %v1936
        %v1941 = vsub.f32 %v1911, %v1937
        %v1942 = vsub.f32 %v1912, %v1938
        %v1943 = vsub.f32 %v1913, %v1939
        %v1944 = vsub.f32 %v1914, %v1940
        %v1945 = vmul.f32 %v1941, 1.442695
        %v1946 = vpow.pop %v1945
        %v1947 = vmul.f32 %v1942, 1.442695
        %v1948 = vpow.pop %v1947
        %v1949 = vmul.f32 %v1943, 1.442695
        %v1950 = vpow.pop %v1949
        %v1951 = vmul.f32 %v1944, 1.442695
        %v1952 = vpow.pop %v1951
        %1954 = vset.pattern.permute.xlu0 0
        %1955 = vperm.xlu0 %1954, %v1937
        %v1956 = vpop.permute.xlu0 %1955
        %1959 = vset.pattern.permute.xlu0 0
        %1960 = vperm.xlu0 %1959, %v1938
        %v1961 = vpop.permute.xlu0 %1960
        %1964 = vset.pattern.permute.xlu0 0
        %1965 = vperm.xlu0 %1964, %v1939
        %v1966 = vpop.permute.xlu0 %1965
        %1969 = vset.pattern.permute.xlu0 0
        %1970 = vperm.xlu0 %1969, %v1940
        %v1971 = vpop.permute.xlu0 %1970
        %v1973 = vsub.f32 %v1906, %v1956
        %v1974 = vsub.f32 %v1907, %v1961
        %v1975 = vsub.f32 %v1908, %v1966
        %v1976 = vsub.f32 %v1909, %v1971
        %v1977 = vmul.f32 %v1973, 1.442695
        %v1978 = vpow.pop %v1977
        %v1979 = vmul.f32 %v1974, 1.442695
        %v1980 = vpow.pop %v1979
        %v1981 = vmul.f32 %v1975, 1.442695
        %v1982 = vpow.pop %v1981
        %v1983 = vmul.f32 %v1976, 1.442695
        %v1984 = vpow.pop %v1983
        %v1985 = vmul.f32 %v1946, %v1916
        %v1986 = vmul.f32 %v1948, %v1917
        %v1987 = vmul.f32 %v1950, %v1918
        %v1988 = vmul.f32 %v1952, %v1919
        %v1989 = vsel %vm745, %v1978, 0.0
        %1990 = vadd.xlane.f32.xlu0 %v1989
        %v1991 = vpop.xlane.xlu0 %1990
        %v1992 = vsel %vm745, %v1980, 0.0
        %1993 = vadd.xlane.f32.xlu0 %v1992
        %v1994 = vpop.xlane.xlu0 %1993
        %v1995 = vsel %vm745, %v1982, 0.0
        %1996 = vadd.xlane.f32.xlu0 %v1995
        %v1997 = vpop.xlane.xlu0 %1996
        %v1998 = vsel %vm745, %v1984, 0.0
        %1999 = vadd.xlane.f32.xlu0 %v1998
        %v2000 = vpop.xlane.xlu0 %1999
        %v2001 = vadd.f32 %v1985, %v1991
        %v2002 = vadd.f32 %v1986, %v1994
        %v2003 = vadd.f32 %v1987, %v1997
        %v2004 = vadd.f32 %v1988, %v2000
        %v2005 = vpack.c.bf16 %v1978, %v1978
        %v2006 = vpack.c.bf16 %v1980, %v1980
        %v2007 = vpack.c.bf16 %v1982, %v1982
        %v2008 = vpack.c.bf16 %v1984, %v1984
        %v2010 = vsel %vm745, %v2005, 0
        %v2013 = vsel %vm1033, %v1712, 0
        %2015 = vmatprep.subr.bf16.mxu0 0
        %2016 = vmatpush1.bf16.msra.mxu0 0
        %2017 = vmatprep.subr.bf16.mxu0 0
        %2018 = vmatpush1.bf16.msra.mxu0 0
        %2019 = vmatprep.subr.bf16.mxu0 0
        %2020 = vmatpush1.bf16.msra.mxu0 0
        %2021 = vmatprep.subr.bf16.mxu0 0
        %2022 = vmatpush1.bf16.msra.mxu0 0
        %2023 = vmatprep.subr.bf16.mxu0 0
        %2024 = vmatpush1.bf16.msra.mxu0 0
        %2025 = vmatprep.subr.bf16.mxu0 0
        %2026 = vmatpush1.bf16.msra.mxu0 0
        %2027 = vmatprep.subr.bf16.mxu0 0
        %2028 = vmatpush1.bf16.msra.mxu0 0
        %2029 = vmatprep.subr.bf16.mxu0 0
        %2030 = vmatpush1.bf16.msra.mxu0 %v2013
        %2031 = vmatprep.subr.bf16.mxu0 0
        %2032 = vmatpush2.bf16.msra.mxu0 0
        %2033 = vmatprep.subr.bf16.mxu0 0
        %2034 = vmatpush2.bf16.msra.mxu0 0
        %2035 = vmatprep.subr.bf16.mxu0 0
        %2036 = vmatpush2.bf16.msra.mxu0 0
        %2037 = vmatprep.subr.bf16.mxu0 0
        %2038 = vmatpush2.bf16.msra.mxu0 0
        %2039 = vmatprep.subr.bf16.mxu0 0
        %2040 = vmatpush2.bf16.msra.mxu0 0
        %2041 = vmatprep.subr.bf16.mxu0 0
        %2042 = vmatpush2.bf16.msra.mxu0 0
        %2043 = vmatprep.subr.bf16.mxu0 0
        %2044 = vmatpush2.bf16.msra.mxu0 0
        %2045 = vmatprep.subr.bf16.mxu0 0
        %2046 = vmatpush2.bf16.msra.mxu0 0
        %2047 = vmatprep.mubr.bf16.mxu0 0
        %2048 = vmatmul.mubr.bf16.gmra.mxu0 %v2010
        %v2049 = vpop.f32.mrf.mxu0
        %v2050 = vadd.f32 0.0, %v2049
        %v2051 = vpop.f32.mrf.mxu0
        %v2052 = vpop.f32.mrf.mxu0
        %v2053 = vpop.f32.mrf.mxu0
        %2054 = vdwg.mxu0
        %v2056 = vsel %vm745, %v2006, 0
        %v2059 = vsel %vm1033, %v1715, 0
        %2061 = vmatprep.subr.bf16.mxu0 0
        %2062 = vmatpush1.bf16.msra.mxu0 0
        %2063 = vmatprep.subr.bf16.mxu0 0
        %2064 = vmatpush1.bf16.msra.mxu0 0
        %2065 = vmatprep.subr.bf16.mxu0 0
        %2066 = vmatpush1.bf16.msra.mxu0 0
        %2067 = vmatprep.subr.bf16.mxu0 0
        %2068 = vmatpush1.bf16.msra.mxu0 0
        %2069 = vmatprep.subr.bf16.mxu0 0
        %2070 = vmatpush1.bf16.msra.mxu0 0
        %2071 = vmatprep.subr.bf16.mxu0 0
        %2072 = vmatpush1.bf16.msra.mxu0 0
        %2073 = vmatprep.subr.bf16.mxu0 0
        %2074 = vmatpush1.bf16.msra.mxu0 0
        %2075 = vmatprep.subr.bf16.mxu0 0
        %2076 = vmatpush1.bf16.msra.mxu0 %v2059
        %2077 = vmatprep.subr.bf16.mxu0 0
        %2078 = vmatpush2.bf16.msra.mxu0 0
        %2079 = vmatprep.subr.bf16.mxu0 0
        %2080 = vmatpush2.bf16.msra.mxu0 0
        %2081 = vmatprep.subr.bf16.mxu0 0
        %2082 = vmatpush2.bf16.msra.mxu0 0
        %2083 = vmatprep.subr.bf16.mxu0 0
        %2084 = vmatpush2.bf16.msra.mxu0 0
        %2085 = vmatprep.subr.bf16.mxu0 0
        %2086 = vmatpush2.bf16.msra.mxu0 0
        %2087 = vmatprep.subr.bf16.mxu0 0
        %2088 = vmatpush2.bf16.msra.mxu0 0
        %2089 = vmatprep.subr.bf16.mxu0 0
        %2090 = vmatpush2.bf16.msra.mxu0 0
        %2091 = vmatprep.subr.bf16.mxu0 0
        %2092 = vmatpush2.bf16.msra.mxu0 0
        %2093 = vmatprep.mubr.bf16.mxu0 0
        %2094 = vmatmul.mubr.bf16.gmra.mxu0 %v2056
        %v2095 = vpop.f32.mrf.mxu0
        %v2096 = vadd.f32 0.0, %v2095
        %v2097 = vpop.f32.mrf.mxu0
        %v2098 = vpop.f32.mrf.mxu0
        %v2099 = vpop.f32.mrf.mxu0
        %2100 = vdwg.mxu0
        %v2102 = vsel %vm745, %v2007, 0
        %v2105 = vsel %vm1033, %v1718, 0
        %2107 = vmatprep.subr.bf16.mxu0 0
        %2108 = vmatpush1.bf16.msra.mxu0 0
        %2109 = vmatprep.subr.bf16.mxu0 0
        %2110 = vmatpush1.bf16.msra.mxu0 0
        %2111 = vmatprep.subr.bf16.mxu0 0
        %2112 = vmatpush1.bf16.msra.mxu0 0
        %2113 = vmatprep.subr.bf16.mxu0 0
        %2114 = vmatpush1.bf16.msra.mxu0 0
        %2115 = vmatprep.subr.bf16.mxu0 0
        %2116 = vmatpush1.bf16.msra.mxu0 0
        %2117 = vmatprep.subr.bf16.mxu0 0
        %2118 = vmatpush1.bf16.msra.mxu0 0
        %2119 = vmatprep.subr.bf16.mxu0 0
        %2120 = vmatpush1.bf16.msra.mxu0 0
        %2121 = vmatprep.subr.bf16.mxu0 0
        %2122 = vmatpush1.bf16.msra.mxu0 %v2105
        %2123 = vmatprep.subr.bf16.mxu0 0
        %2124 = vmatpush2.bf16.msra.mxu0 0
        %2125 = vmatprep.subr.bf16.mxu0 0
        %2126 = vmatpush2.bf16.msra.mxu0 0
        %2127 = vmatprep.subr.bf16.mxu0 0
        %2128 = vmatpush2.bf16.msra.mxu0 0
        %2129 = vmatprep.subr.bf16.mxu0 0
        %2130 = vmatpush2.bf16.msra.mxu0 0
        %2131 = vmatprep.subr.bf16.mxu0 0
        %2132 = vmatpush2.bf16.msra.mxu0 0
        %2133 = vmatprep.subr.bf16.mxu0 0
        %2134 = vmatpush2.bf16.msra.mxu0 0
        %2135 = vmatprep.subr.bf16.mxu0 0
        %2136 = vmatpush2.bf16.msra.mxu0 0
        %2137 = vmatprep.subr.bf16.mxu0 0
        %2138 = vmatpush2.bf16.msra.mxu0 0
        %2139 = vmatprep.mubr.bf16.mxu0 0
        %2140 = vmatmul.mubr.bf16.gmra.mxu0 %v2102
        %v2141 = vpop.f32.mrf.mxu0
        %v2142 = vadd.f32 0.0, %v2141
        %v2143 = vpop.f32.mrf.mxu0
        %v2144 = vpop.f32.mrf.mxu0
        %v2145 = vpop.f32.mrf.mxu0
        %2146 = vdwg.mxu0
        %v2148 = vsel %vm745, %v2008, 0
        %v2151 = vsel %vm1033, %v1721, 0
        %2153 = vmatprep.subr.bf16.mxu0 0
        %2154 = vmatpush1.bf16.msra.mxu0 0
        %2155 = vmatprep.subr.bf16.mxu0 0
        %2156 = vmatpush1.bf16.msra.mxu0 0
        %2157 = vmatprep.subr.bf16.mxu0 0
        %2158 = vmatpush1.bf16.msra.mxu0 0
        %2159 = vmatprep.subr.bf16.mxu0 0
        %2160 = vmatpush1.bf16.msra.mxu0 0
        %2161 = vmatprep.subr.bf16.mxu0 0
        %2162 = vmatpush1.bf16.msra.mxu0 0
        %2163 = vmatprep.subr.bf16.mxu0 0
        %2164 = vmatpush1.bf16.msra.mxu0 0
        %2165 = vmatprep.subr.bf16.mxu0 0
        %2166 = vmatpush1.bf16.msra.mxu0 0
        %2167 = vmatprep.subr.bf16.mxu0 0
        %2168 = vmatpush1.bf16.msra.mxu0 %v2151
        %2169 = vmatprep.subr.bf16.mxu0 0
        %2170 = vmatpush2.bf16.msra.mxu0 0
        %2171 = vmatprep.subr.bf16.mxu0 0
        %2172 = vmatpush2.bf16.msra.mxu0 0
        %2173 = vmatprep.subr.bf16.mxu0 0
        %2174 = vmatpush2.bf16.msra.mxu0 0
        %2175 = vmatprep.subr.bf16.mxu0 0
        %2176 = vmatpush2.bf16.msra.mxu0 0
        %2177 = vmatprep.subr.bf16.mxu0 0
        %2178 = vmatpush2.bf16.msra.mxu0 0
        %2179 = vmatprep.subr.bf16.mxu0 0
        %2180 = vmatpush2.bf16.msra.mxu0 0
        %2181 = vmatprep.subr.bf16.mxu0 0
        %2182 = vmatpush2.bf16.msra.mxu0 0
        %2183 = vmatprep.subr.bf16.mxu0 0
        %2184 = vmatpush2.bf16.msra.mxu0 0
        %2185 = vmatprep.mubr.bf16.mxu0 0
        %2186 = vmatmul.mubr.bf16.gmra.mxu0 %v2148
        %v2187 = vpop.f32.mrf.mxu0
        %v2188 = vadd.f32 0.0, %v2187
        %v2189 = vpop.f32.mrf.mxu0
        %v2190 = vpop.f32.mrf.mxu0
        %v2191 = vpop.f32.mrf.mxu0
        %2192 = vdwg.mxu0
        %2193 = vst.msk [vmem:[%s1910] sm:$0xff] %vm1215, %v1937
        %2194 = vst.msk [vmem:[%s1910 + $0x8] sm:$0xff] %vm1215, %v1938
        %2195 = vst.msk [vmem:[%s1910 + $0x10] sm:$0xff] %vm1215, %v1939
        %2196 = vst.msk [vmem:[%s1910 + $0x18] sm:$0xff] %vm1215, %v1940
        %2197 = vst.msk [vmem:[%s1915] sm:$0xff] %vm1215, %v2001
        %2198 = vst.msk [vmem:[%s1915 + $0x8] sm:$0xff] %vm1215, %v2002
        %2199 = vst.msk [vmem:[%s1915 + $0x10] sm:$0xff] %vm1215, %v2003
        %2200 = vst.msk [vmem:[%s1915 + $0x18] sm:$0xff] %vm1215, %v2004
        %2202 = vset.pattern.permute.xlu0 0
        %2203 = vperm.xlu0 %2202, %v1946
        %v2204 = vpop.permute.xlu0 %2203
        %2207 = vset.pattern.permute.xlu0 0
        %2208 = vperm.xlu0 %2207, %v1948
        %v2209 = vpop.permute.xlu0 %2208
        %2212 = vset.pattern.permute.xlu0 0
        %2213 = vperm.xlu0 %2212, %v1950
        %v2214 = vpop.permute.xlu0 %2213
        %2217 = vset.pattern.permute.xlu0 0
        %2218 = vperm.xlu0 %2217, %v1952
        %v2219 = vpop.permute.xlu0 %2218
        %v2221 = vmul.f32 %v2204, %v1921
        %v2222 = vmul.f32 %v2209, %v1922
        %v2223 = vmul.f32 %v2214, %v1923
        %v2224 = vmul.f32 %v2219, %v1924
        %v2225 = vadd.f32 %v2221, %v2050
        %v2226 = vadd.f32 %v2222, %v2096
        %v2227 = vadd.f32 %v2223, %v2142
        %v2228 = vadd.f32 %v2224, %v2188
        %2229 = vst.msk [vmem:[%s1920] sm:$0xff] %vm745, %v2225
        %2230 = vst.msk [vmem:[%s1920 + $0x8] sm:$0xff] %vm745, %v2226
        %2231 = vst.msk [vmem:[%s1920 + $0x10] sm:$0xff] %vm745, %v2227
        %2232 = vst.msk [vmem:[%s1920 + $0x18] sm:$0xff] %vm745, %v2228
        %v2233 = vld [vmem:[%s235] sm:$0xf]
        %2235 = vrot.lane.b32.xlu0 %v2233, 120
        %v2236 = vpop.permute.xlu0 %2235
        %2237 = vrot.lane.b32.xlu0 %v2233, 112
        %v2238 = vpop.permute.xlu0 %2237
        %2239 = vrot.lane.b32.xlu0 %v2233, 104
        %v2240 = vpop.permute.xlu0 %2239
        %2241 = vrot.lane.b32.xlu0 %v2233, 64
        %v2242 = vpop.permute.xlu0 %2241
        %2243 = vrot.lane.b32.xlu0 %v2236, 64
        %v2244 = vpop.permute.xlu0 %2243
        %2245 = vrot.lane.b32.xlu0 %v2238, 64
        %v2246 = vpop.permute.xlu0 %2245
        %2247 = vrot.lane.b32.xlu0 %v2240, 64
        %v2248 = vpop.permute.xlu0 %2247
        %v2251 = vpack.i.b16 %v2244, %v2242
        %v2252 = vshrl.u32 %v2242, 16
        %v2253 = vshrl.u32 %v2244, 16
        %v2254 = vpack.i.b16 %v2253, %v2252
        %v2257 = vpack.i.b16 %v2248, %v2246
        %v2258 = vshrl.u32 %v2246, 16
        %v2259 = vshrl.u32 %v2248, 16
        %v2260 = vpack.i.b16 %v2259, %v2258
        %v2263 = vunpack.c.l.s4 1983009808
        %v2264 = vunpack.c.0.s8 %v2263
        %v2265 = vlaneseq
        %v2266 = vshrl.u32 %v2265, 7
        %v2267 = vsub.s32 %v2264, %v2266
        %v2268 = vrot.slane %v2251, %v2267
        %v2271 = vunpack.c.l.s4 1983009808
        %v2272 = vunpack.c.0.s8 %v2271
        %v2273 = vlaneseq
        %v2274 = vshrl.u32 %v2273, 7
        %v2275 = vsub.s32 %v2272, %v2274
        %v2276 = vrot.slane %v2257, %v2275
        %v2277 = vcombine.low %v2268, %v2276
        %v2278 = vcombine.high %v2268, %v2276
        %v2280 = vunpack.c.l.s4 1934713408
        %v2281 = vunpack.c.0.s8 %v2280
        %v2282 = vlaneseq
        %v2283 = vshrl.u32 %v2282, 7
        %v2284 = vsub.s32 %v2281, %v2283
        %v2285 = vrot.slane %v2277, %v2284
        %v2287 = vunpack.c.l.s4 1934713408
        %v2288 = vunpack.c.0.s8 %v2287
        %v2289 = vlaneseq
        %v2290 = vshrl.u32 %v2289, 7
        %v2291 = vsub.s32 %v2288, %v2290
        %v2292 = vrot.slane %v2278, %v2291
        %v2293 = vcombine.high %v2285, 0
        %v2294 = vcombine.high %v2292, 0
        %v2297 = vunpack.c.l.s4 1983009808
        %v2298 = vunpack.c.0.s8 %v2297
        %v2299 = vlaneseq
        %v2300 = vshrl.u32 %v2299, 7
        %v2301 = vsub.s32 %v2298, %v2300
        %v2302 = vrot.slane %v2254, %v2301
        %v2305 = vunpack.c.l.s4 1983009808
        %v2306 = vunpack.c.0.s8 %v2305
        %v2307 = vlaneseq
        %v2308 = vshrl.u32 %v2307, 7
        %v2309 = vsub.s32 %v2306, %v2308
        %v2310 = vrot.slane %v2260, %v2309
        %v2311 = vcombine.low %v2302, %v2310
        %v2312 = vcombine.high %v2302, %v2310
        %v2314 = vunpack.c.l.s4 1934713408
        %v2315 = vunpack.c.0.s8 %v2314
        %v2316 = vlaneseq
        %v2317 = vshrl.u32 %v2316, 7
        %v2318 = vsub.s32 %v2315, %v2317
        %v2319 = vrot.slane %v2311, %v2318
        %v2321 = vunpack.c.l.s4 1934713408
        %v2322 = vunpack.c.0.s8 %v2321
        %v2323 = vlaneseq
        %v2324 = vshrl.u32 %v2323, 7
        %v2325 = vsub.s32 %v2322, %v2324
        %v2326 = vrot.slane %v2312, %v2325
        %v2327 = vcombine.high %v2319, 0
        %v2328 = vcombine.high %v2326, 0
        %v2329 = vcombine.low %v2285, %v2292
        %v2331 = vunpack.c.l.s4 1983009808
        %v2332 = vunpack.c.0.s8 %v2331
        %v2333 = vlaneseq
        %v2334 = vshrl.u32 %v2333, 7
        %v2335 = vsub.s32 %v2332, %v2334
        %v2336 = vrot.slane %v2329, %v2335
        %v2337 = vcombine.low %v2293, %v2294
        %v2339 = vunpack.c.l.s4 1983009808
        %v2340 = vunpack.c.0.s8 %v2339
        %v2341 = vlaneseq
        %v2342 = vshrl.u32 %v2341, 7
        %v2343 = vsub.s32 %v2340, %v2342
        %v2344 = vrot.slane %v2337, %v2343
        %v2345 = vcombine.low %v2336, %v2344
        %v2347 = vunpack.c.l.s4 1934713408
        %v2348 = vunpack.c.0.s8 %v2347
        %v2349 = vlaneseq
        %v2350 = vshrl.u32 %v2349, 7
        %v2351 = vsub.s32 %v2348, %v2350
        %v2352 = vrot.slane %v2345, %v2351
        %v2353 = vcombine.high %v2352, 0
        %v2354 = vcombine.low %v2319, %v2326
        %v2356 = vunpack.c.l.s4 1983009808
        %v2357 = vunpack.c.0.s8 %v2356
        %v2358 = vlaneseq
        %v2359 = vshrl.u32 %v2358, 7
        %v2360 = vsub.s32 %v2357, %v2359
        %v2361 = vrot.slane %v2354, %v2360
        %v2362 = vcombine.low %v2327, %v2328
        %v2364 = vunpack.c.l.s4 1983009808
        %v2365 = vunpack.c.0.s8 %v2364
        %v2366 = vlaneseq
        %v2367 = vshrl.u32 %v2366, 7
        %v2368 = vsub.s32 %v2365, %v2367
        %v2369 = vrot.slane %v2362, %v2368
        %v2370 = vcombine.low %v2361, %v2369
        %v2372 = vunpack.c.l.s4 1934713408
        %v2373 = vunpack.c.0.s8 %v2372
        %v2374 = vlaneseq
        %v2375 = vshrl.u32 %v2374, 7
        %v2376 = vsub.s32 %v2373, %v2375
        %v2377 = vrot.slane %v2370, %v2376
        %v2378 = vcombine.high %v2377, 0
        %v2381 = vpack.i.b16 %v2377, %v2352
        %v2382 = vshrl.u32 %v2352, 16
        %v2383 = vshrl.u32 %v2377, 16
        %v2384 = vpack.i.b16 %v2383, %v2382
        %v2387 = vpack.i.b16 %v2378, %v2353
        %v2388 = vshrl.u32 %v2353, 16
        %v2389 = vshrl.u32 %v2378, 16
        %v2390 = vpack.i.b16 %v2389, %v2388
        %v2391 = vld [vmem:[%s244 + $0x4] sm:$0xf]
        %2393 = vrot.lane.b32.xlu0 %v2391, 120
        %v2394 = vpop.permute.xlu0 %2393
        %2395 = vrot.lane.b32.xlu0 %v2391, 112
        %v2396 = vpop.permute.xlu0 %2395
        %2397 = vrot.lane.b32.xlu0 %v2391, 104
        %v2398 = vpop.permute.xlu0 %2397
        %v2401 = vpack.i.b16 %v2394, %v2391
        %v2402 = vshrl.u32 %v2391, 16
        %v2403 = vshrl.u32 %v2394, 16
        %v2404 = vpack.i.b16 %v2403, %v2402
        %v2407 = vpack.i.b16 %v2398, %v2396
        %v2408 = vshrl.u32 %v2396, 16
        %v2409 = vshrl.u32 %v2398, 16
        %v2410 = vpack.i.b16 %v2409, %v2408
        %v2413 = vunpack.c.l.s4 1983009808
        %v2414 = vunpack.c.0.s8 %v2413
        %v2415 = vlaneseq
        %v2416 = vshrl.u32 %v2415, 7
        %v2417 = vsub.s32 %v2414, %v2416
        %v2418 = vrot.slane %v2401, %v2417
        %v2421 = vunpack.c.l.s4 1983009808
        %v2422 = vunpack.c.0.s8 %v2421
        %v2423 = vlaneseq
        %v2424 = vshrl.u32 %v2423, 7
        %v2425 = vsub.s32 %v2422, %v2424
        %v2426 = vrot.slane %v2407, %v2425
        %v2427 = vcombine.low %v2418, %v2426
        %v2428 = vcombine.high %v2418, %v2426
        %v2430 = vunpack.c.l.s4 1934713408
        %v2431 = vunpack.c.0.s8 %v2430
        %v2432 = vlaneseq
        %v2433 = vshrl.u32 %v2432, 7
        %v2434 = vsub.s32 %v2431, %v2433
        %v2435 = vrot.slane %v2427, %v2434
        %v2437 = vunpack.c.l.s4 1934713408
        %v2438 = vunpack.c.0.s8 %v2437
        %v2439 = vlaneseq
        %v2440 = vshrl.u32 %v2439, 7
        %v2441 = vsub.s32 %v2438, %v2440
        %v2442 = vrot.slane %v2428, %v2441
        %v2443 = vcombine.high %v2435, 0
        %v2444 = vcombine.high %v2442, 0
        %v2447 = vunpack.c.l.s4 1983009808
        %v2448 = vunpack.c.0.s8 %v2447
        %v2449 = vlaneseq
        %v2450 = vshrl.u32 %v2449, 7
        %v2451 = vsub.s32 %v2448, %v2450
        %v2452 = vrot.slane %v2404, %v2451
        %v2455 = vunpack.c.l.s4 1983009808
        %v2456 = vunpack.c.0.s8 %v2455
        %v2457 = vlaneseq
        %v2458 = vshrl.u32 %v2457, 7
        %v2459 = vsub.s32 %v2456, %v2458
        %v2460 = vrot.slane %v2410, %v2459
        %v2461 = vcombine.low %v2452, %v2460
        %v2462 = vcombine.high %v2452, %v2460
        %v2464 = vunpack.c.l.s4 1934713408
        %v2465 = vunpack.c.0.s8 %v2464
        %v2466 = vlaneseq
        %v2467 = vshrl.u32 %v2466, 7
        %v2468 = vsub.s32 %v2465, %v2467
        %v2469 = vrot.slane %v2461, %v2468
        %v2471 = vunpack.c.l.s4 1934713408
        %v2472 = vunpack.c.0.s8 %v2471
        %v2473 = vlaneseq
        %v2474 = vshrl.u32 %v2473, 7
        %v2475 = vsub.s32 %v2472, %v2474
        %v2476 = vrot.slane %v2462, %v2475
        %v2477 = vcombine.high %v2469, 0
        %v2478 = vcombine.high %v2476, 0
        %v2479 = vcombine.low %v2435, %v2442
        %v2481 = vunpack.c.l.s4 1983009808
        %v2482 = vunpack.c.0.s8 %v2481
        %v2483 = vlaneseq
        %v2484 = vshrl.u32 %v2483, 7
        %v2485 = vsub.s32 %v2482, %v2484
        %v2486 = vrot.slane %v2479, %v2485
        %v2487 = vcombine.low %v2443, %v2444
        %v2489 = vunpack.c.l.s4 1983009808
        %v2490 = vunpack.c.0.s8 %v2489
        %v2491 = vlaneseq
        %v2492 = vshrl.u32 %v2491, 7
        %v2493 = vsub.s32 %v2490, %v2492
        %v2494 = vrot.slane %v2487, %v2493
        %v2495 = vcombine.low %v2486, %v2494
        %v2497 = vunpack.c.l.s4 1934713408
        %v2498 = vunpack.c.0.s8 %v2497
        %v2499 = vlaneseq
        %v2500 = vshrl.u32 %v2499, 7
        %v2501 = vsub.s32 %v2498, %v2500
        %v2502 = vrot.slane %v2495, %v2501
        %v2503 = vcombine.high %v2502, 0
        %v2504 = vcombine.low %v2469, %v2476
        %v2506 = vunpack.c.l.s4 1983009808
        %v2507 = vunpack.c.0.s8 %v2506
        %v2508 = vlaneseq
        %v2509 = vshrl.u32 %v2508, 7
        %v2510 = vsub.s32 %v2507, %v2509
        %v2511 = vrot.slane %v2504, %v2510
        %v2512 = vcombine.low %v2477, %v2478
        %v2514 = vunpack.c.l.s4 1983009808
        %v2515 = vunpack.c.0.s8 %v2514
        %v2516 = vlaneseq
        %v2517 = vshrl.u32 %v2516, 7
        %v2518 = vsub.s32 %v2515, %v2517
        %v2519 = vrot.slane %v2512, %v2518
        %v2520 = vcombine.low %v2511, %v2519
        %v2522 = vunpack.c.l.s4 1934713408
        %v2523 = vunpack.c.0.s8 %v2522
        %v2524 = vlaneseq
        %v2525 = vshrl.u32 %v2524, 7
        %v2526 = vsub.s32 %v2523, %v2525
        %v2527 = vrot.slane %v2520, %v2526
        %v2528 = vcombine.high %v2527, 0
        %v2531 = vpack.i.b16 %v2527, %v2502
        %v2532 = vshrl.u32 %v2502, 16
        %v2533 = vshrl.u32 %v2527, 16
        %v2534 = vpack.i.b16 %v2533, %v2532
        %v2537 = vpack.i.b16 %v2528, %v2503
        %v2538 = vshrl.u32 %v2503, 16
        %v2539 = vshrl.u32 %v2528, 16
        %v2540 = vpack.i.b16 %v2539, %v2538
        %2541 = vrot.lane.b32.xlu0 %v2391, 96
        %v2542 = vpop.permute.xlu0 %2541
        %2543 = vrot.lane.b32.xlu0 %v2394, 96
        %v2544 = vpop.permute.xlu0 %2543
        %2545 = vrot.lane.b32.xlu0 %v2396, 96
        %v2546 = vpop.permute.xlu0 %2545
        %2547 = vrot.lane.b32.xlu0 %v2398, 96
        %v2548 = vpop.permute.xlu0 %2547
        %v2551 = vpack.i.b16 %v2544, %v2542
        %v2552 = vshrl.u32 %v2542, 16
        %v2553 = vshrl.u32 %v2544, 16
        %v2554 = vpack.i.b16 %v2553, %v2552
        %v2557 = vpack.i.b16 %v2548, %v2546
        %v2558 = vshrl.u32 %v2546, 16
        %v2559 = vshrl.u32 %v2548, 16
        %v2560 = vpack.i.b16 %v2559, %v2558
        %v2563 = vunpack.c.l.s4 1983009808
        %v2564 = vunpack.c.0.s8 %v2563
        %v2565 = vlaneseq
        %v2566 = vshrl.u32 %v2565, 7
        %v2567 = vsub.s32 %v2564, %v2566
        %v2568 = vrot.slane %v2551, %v2567
        %v2571 = vunpack.c.l.s4 1983009808
        %v2572 = vunpack.c.0.s8 %v2571
        %v2573 = vlaneseq
        %v2574 = vshrl.u32 %v2573, 7
        %v2575 = vsub.s32 %v2572, %v2574
        %v2576 = vrot.slane %v2557, %v2575
        %v2577 = vcombine.low %v2568, %v2576
        %v2578 = vcombine.high %v2568, %v2576
        %v2580 = vunpack.c.l.s4 1934713408
        %v2581 = vunpack.c.0.s8 %v2580
        %v2582 = vlaneseq
        %v2583 = vshrl.u32 %v2582, 7
        %v2584 = vsub.s32 %v2581, %v2583
        %v2585 = vrot.slane %v2577, %v2584
        %v2587 = vunpack.c.l.s4 1934713408
        %v2588 = vunpack.c.0.s8 %v2587
        %v2589 = vlaneseq
        %v2590 = vshrl.u32 %v2589, 7
        %v2591 = vsub.s32 %v2588, %v2590
        %v2592 = vrot.slane %v2578, %v2591
        %v2593 = vcombine.high %v2585, 0
        %v2594 = vcombine.high %v2592, 0
        %v2597 = vunpack.c.l.s4 1983009808
        %v2598 = vunpack.c.0.s8 %v2597
        %v2599 = vlaneseq
        %v2600 = vshrl.u32 %v2599, 7
        %v2601 = vsub.s32 %v2598, %v2600
        %v2602 = vrot.slane %v2554, %v2601
        %v2605 = vunpack.c.l.s4 1983009808
        %v2606 = vunpack.c.0.s8 %v2605
        %v2607 = vlaneseq
        %v2608 = vshrl.u32 %v2607, 7
        %v2609 = vsub.s32 %v2606, %v2608
        %v2610 = vrot.slane %v2560, %v2609
        %v2611 = vcombine.low %v2602, %v2610
        %v2612 = vcombine.high %v2602, %v2610
        %v2614 = vunpack.c.l.s4 1934713408
        %v2615 = vunpack.c.0.s8 %v2614
        %v2616 = vlaneseq
        %v2617 = vshrl.u32 %v2616, 7
        %v2618 = vsub.s32 %v2615, %v2617
        %v2619 = vrot.slane %v2611, %v2618
        %v2621 = vunpack.c.l.s4 1934713408
        %v2622 = vunpack.c.0.s8 %v2621
        %v2623 = vlaneseq
        %v2624 = vshrl.u32 %v2623, 7
        %v2625 = vsub.s32 %v2622, %v2624
        %v2626 = vrot.slane %v2612, %v2625
        %v2627 = vcombine.high %v2619, 0
        %v2628 = vcombine.high %v2626, 0
        %v2629 = vcombine.low %v2585, %v2592
        %v2631 = vunpack.c.l.s4 1983009808
        %v2632 = vunpack.c.0.s8 %v2631
        %v2633 = vlaneseq
        %v2634 = vshrl.u32 %v2633, 7
        %v2635 = vsub.s32 %v2632, %v2634
        %v2636 = vrot.slane %v2629, %v2635
        %v2637 = vcombine.low %v2593, %v2594
        %v2639 = vunpack.c.l.s4 1983009808
        %v2640 = vunpack.c.0.s8 %v2639
        %v2641 = vlaneseq
        %v2642 = vshrl.u32 %v2641, 7
        %v2643 = vsub.s32 %v2640, %v2642
        %v2644 = vrot.slane %v2637, %v2643
        %v2645 = vcombine.low %v2636, %v2644
        %v2647 = vunpack.c.l.s4 1934713408
        %v2648 = vunpack.c.0.s8 %v2647
        %v2649 = vlaneseq
        %v2650 = vshrl.u32 %v2649, 7
        %v2651 = vsub.s32 %v2648, %v2650
        %v2652 = vrot.slane %v2645, %v2651
        %v2653 = vcombine.high %v2652, 0
        %v2654 = vcombine.low %v2619, %v2626
        %v2656 = vunpack.c.l.s4 1983009808
        %v2657 = vunpack.c.0.s8 %v2656
        %v2658 = vlaneseq
        %v2659 = vshrl.u32 %v2658, 7
        %v2660 = vsub.s32 %v2657, %v2659
        %v2661 = vrot.slane %v2654, %v2660
        %v2662 = vcombine.low %v2627, %v2628
        %v2664 = vunpack.c.l.s4 1983009808
        %v2665 = vunpack.c.0.s8 %v2664
        %v2666 = vlaneseq
        %v2667 = vshrl.u32 %v2666, 7
        %v2668 = vsub.s32 %v2665, %v2667
        %v2669 = vrot.slane %v2662, %v2668
        %v2670 = vcombine.low %v2661, %v2669
        %v2672 = vunpack.c.l.s4 1934713408
        %v2673 = vunpack.c.0.s8 %v2672
        %v2674 = vlaneseq
        %v2675 = vshrl.u32 %v2674, 7
        %v2676 = vsub.s32 %v2673, %v2675
        %v2677 = vrot.slane %v2670, %v2676
        %v2678 = vcombine.high %v2677, 0
        %v2681 = vpack.i.b16 %v2677, %v2652
        %v2682 = vshrl.u32 %v2652, 16
        %v2683 = vshrl.u32 %v2677, 16
        %v2684 = vpack.i.b16 %v2683, %v2682
        %v2687 = vpack.i.b16 %v2678, %v2653
        %v2688 = vshrl.u32 %v2653, 16
        %v2689 = vshrl.u32 %v2678, 16
        %v2690 = vpack.i.b16 %v2689, %v2688
        %v2692 = vsel %vm745, %v2381, 0
        %v2695 = vsel %vm745, %v2531, 0
        %2697 = vmatprep.subr.bf16.mxu0 0
        %2698 = vmatpush1.bf16.xpose.msra.mxu0 0
        %2699 = vmatprep.subr.bf16.mxu0 0
        %2700 = vmatpush1.bf16.xpose.msra.mxu0 0
        %2701 = vmatprep.subr.bf16.mxu0 0
        %2702 = vmatpush1.bf16.xpose.msra.mxu0 0
        %2703 = vmatprep.subr.bf16.mxu0 0
        %2704 = vmatpush1.bf16.xpose.msra.mxu0 0
        %2705 = vmatprep.subr.bf16.mxu0 0
        %2706 = vmatpush1.bf16.xpose.msra.mxu0 0
        %2707 = vmatprep.subr.bf16.mxu0 0
        %2708 = vmatpush1.bf16.xpose.msra.mxu0 0
        %2709 = vmatprep.subr.bf16.mxu0 0
        %2710 = vmatpush1.bf16.xpose.msra.mxu0 0
        %2711 = vmatprep.subr.bf16.mxu0 0
        %2712 = vmatpush1.bf16.xpose.msra.mxu0 %v2695
        %2713 = vmatprep.subr.bf16.mxu0 0
        %2714 = vmatpush2.bf16.xpose.msra.mxu0 0
        %2715 = vmatprep.subr.bf16.mxu0 0
        %2716 = vmatpush2.bf16.xpose.msra.mxu0 0
        %2717 = vmatprep.subr.bf16.mxu0 0
        %2718 = vmatpush2.bf16.xpose.msra.mxu0 0
        %2719 = vmatprep.subr.bf16.mxu0 0
        %2720 = vmatpush2.bf16.xpose.msra.mxu0 0
        %2721 = vmatprep.subr.bf16.mxu0 0
        %2722 = vmatpush2.bf16.xpose.msra.mxu0 0
        %2723 = vmatprep.subr.bf16.mxu0 0
        %2724 = vmatpush2.bf16.xpose.msra.mxu0 0
        %2725 = vmatprep.subr.bf16.mxu0 0
        %2726 = vmatpush2.bf16.xpose.msra.mxu0 0
        %2727 = vmatprep.subr.bf16.mxu0 0
        %2728 = vmatpush2.bf16.xpose.msra.mxu0 0
        %2729 = vmatprep.mubr.bf16.mxu0 0
        %2730 = vmatmul.mubr.bf16.gmra.mxu0 %v2692
        %v2731 = vpop.f32.mrf.mxu0
        %v2732 = vadd.f32 0.0, %v2731
        %v2733 = vpop.f32.mrf.mxu0
        %v2734 = vpop.f32.mrf.mxu0
        %v2735 = vpop.f32.mrf.mxu0
        %2736 = vdwg.mxu0
        %v2738 = vsel %vm745, %v2384, 0
        %v2741 = vsel %vm745, %v2534, 0
        %2743 = vmatprep.subr.bf16.mxu0 0
        %2744 = vmatpush1.bf16.xpose.msra.mxu0 0
        %2745 = vmatprep.subr.bf16.mxu0 0
        %2746 = vmatpush1.bf16.xpose.msra.mxu0 0
        %2747 = vmatprep.subr.bf16.mxu0 0
        %2748 = vmatpush1.bf16.xpose.msra.mxu0 0
        %2749 = vmatprep.subr.bf16.mxu0 0
        %2750 = vmatpush1.bf16.xpose.msra.mxu0 0
        %2751 = vmatprep.subr.bf16.mxu0 0
        %2752 = vmatpush1.bf16.xpose.msra.mxu0 0
        %2753 = vmatprep.subr.bf16.mxu0 0
        %2754 = vmatpush1.bf16.xpose.msra.mxu0 0
        %2755 = vmatprep.subr.bf16.mxu0 0
        %2756 = vmatpush1.bf16.xpose.msra.mxu0 0
        %2757 = vmatprep.subr.bf16.mxu0 0
        %2758 = vmatpush1.bf16.xpose.msra.mxu0 %v2741
        %2759 = vmatprep.subr.bf16.mxu0 0
        %2760 = vmatpush2.bf16.xpose.msra.mxu0 0
        %2761 = vmatprep.subr.bf16.mxu0 0
        %2762 = vmatpush2.bf16.xpose.msra.mxu0 0
        %2763 = vmatprep.subr.bf16.mxu0 0
        %2764 = vmatpush2.bf16.xpose.msra.mxu0 0
        %2765 = vmatprep.subr.bf16.mxu0 0
        %2766 = vmatpush2.bf16.xpose.msra.mxu0 0
        %2767 = vmatprep.subr.bf16.mxu0 0
        %2768 = vmatpush2.bf16.xpose.msra.mxu0 0
        %2769 = vmatprep.subr.bf16.mxu0 0
        %2770 = vmatpush2.bf16.xpose.msra.mxu0 0
        %2771 = vmatprep.subr.bf16.mxu0 0
        %2772 = vmatpush2.bf16.xpose.msra.mxu0 0
        %2773 = vmatprep.subr.bf16.mxu0 0
        %2774 = vmatpush2.bf16.xpose.msra.mxu0 0
        %2775 = vmatprep.mubr.bf16.mxu0 0
        %2776 = vmatmul.mubr.bf16.gmra.mxu0 %v2738
        %v2777 = vpop.f32.mrf.mxu0
        %v2778 = vadd.f32 0.0, %v2777
        %v2779 = vpop.f32.mrf.mxu0
        %v2780 = vpop.f32.mrf.mxu0
        %v2781 = vpop.f32.mrf.mxu0
        %2782 = vdwg.mxu0
        %v2784 = vsel %vm745, %v2387, 0
        %v2787 = vsel %vm745, %v2537, 0
        %2789 = vmatprep.subr.bf16.mxu0 0
        %2790 = vmatpush1.bf16.xpose.msra.mxu0 0
        %2791 = vmatprep.subr.bf16.mxu0 0
        %2792 = vmatpush1.bf16.xpose.msra.mxu0 0
        %2793 = vmatprep.subr.bf16.mxu0 0
        %2794 = vmatpush1.bf16.xpose.msra.mxu0 0
        %2795 = vmatprep.subr.bf16.mxu0 0
        %2796 = vmatpush1.bf16.xpose.msra.mxu0 0
        %2797 = vmatprep.subr.bf16.mxu0 0
        %2798 = vmatpush1.bf16.xpose.msra.mxu0 0
        %2799 = vmatprep.subr.bf16.mxu0 0
        %2800 = vmatpush1.bf16.xpose.msra.mxu0 0
        %2801 = vmatprep.subr.bf16.mxu0 0
        %2802 = vmatpush1.bf16.xpose.msra.mxu0 0
        %2803 = vmatprep.subr.bf16.mxu0 0
        %2804 = vmatpush1.bf16.xpose.msra.mxu0 %v2787
        %2805 = vmatprep.subr.bf16.mxu0 0
        %2806 = vmatpush2.bf16.xpose.msra.mxu0 0
        %2807 = vmatprep.subr.bf16.mxu0 0
        %2808 = vmatpush2.bf16.xpose.msra.mxu0 0
        %2809 = vmatprep.subr.bf16.mxu0 0
        %2810 = vmatpush2.bf16.xpose.msra.mxu0 0
        %2811 = vmatprep.subr.bf16.mxu0 0
        %2812 = vmatpush2.bf16.xpose.msra.mxu0 0
        %2813 = vmatprep.subr.bf16.mxu0 0
        %2814 = vmatpush2.bf16.xpose.msra.mxu0 0
        %2815 = vmatprep.subr.bf16.mxu0 0
        %2816 = vmatpush2.bf16.xpose.msra.mxu0 0
        %2817 = vmatprep.subr.bf16.mxu0 0
        %2818 = vmatpush2.bf16.xpose.msra.mxu0 0
        %2819 = vmatprep.subr.bf16.mxu0 0
        %2820 = vmatpush2.bf16.xpose.msra.mxu0 0
        %2821 = vmatprep.mubr.bf16.mxu0 0
        %2822 = vmatmul.mubr.bf16.gmra.mxu0 %v2784
        %v2823 = vpop.f32.mrf.mxu0
        %v2824 = vadd.f32 0.0, %v2823
        %v2825 = vpop.f32.mrf.mxu0
        %v2826 = vpop.f32.mrf.mxu0
        %v2827 = vpop.f32.mrf.mxu0
        %2828 = vdwg.mxu0
        %v2830 = vsel %vm745, %v2390, 0
        %v2833 = vsel %vm745, %v2540, 0
        %2835 = vmatprep.subr.bf16.mxu0 0
        %2836 = vmatpush1.bf16.xpose.msra.mxu0 0
        %2837 = vmatprep.subr.bf16.mxu0 0
        %2838 = vmatpush1.bf16.xpose.msra.mxu0 0
        %2839 = vmatprep.subr.bf16.mxu0 0
        %2840 = vmatpush1.bf16.xpose.msra.mxu0 0
        %2841 = vmatprep.subr.bf16.mxu0 0
        %2842 = vmatpush1.bf16.xpose.msra.mxu0 0
        %2843 = vmatprep.subr.bf16.mxu0 0
        %2844 = vmatpush1.bf16.xpose.msra.mxu0 0
        %2845 = vmatprep.subr.bf16.mxu0 0
        %2846 = vmatpush1.bf16.xpose.msra.mxu0 0
        %2847 = vmatprep.subr.bf16.mxu0 0
        %2848 = vmatpush1.bf16.xpose.msra.mxu0 0
        %2849 = vmatprep.subr.bf16.mxu0 0
        %2850 = vmatpush1.bf16.xpose.msra.mxu0 %v2833
        %2851 = vmatprep.subr.bf16.mxu0 0
        %2852 = vmatpush2.bf16.xpose.msra.mxu0 0
        %2853 = vmatprep.subr.bf16.mxu0 0
        %2854 = vmatpush2.bf16.xpose.msra.mxu0 0
        %2855 = vmatprep.subr.bf16.mxu0 0
        %2856 = vmatpush2.bf16.xpose.msra.mxu0 0
        %2857 = vmatprep.subr.bf16.mxu0 0
        %2858 = vmatpush2.bf16.xpose.msra.mxu0 0
        %2859 = vmatprep.subr.bf16.mxu0 0
        %2860 = vmatpush2.bf16.xpose.msra.mxu0 0
        %2861 = vmatprep.subr.bf16.mxu0 0
        %2862 = vmatpush2.bf16.xpose.msra.mxu0 0
        %2863 = vmatprep.subr.bf16.mxu0 0
        %2864 = vmatpush2.bf16.xpose.msra.mxu0 0
        %2865 = vmatprep.subr.bf16.mxu0 0
        %2866 = vmatpush2.bf16.xpose.msra.mxu0 0
        %2867 = vmatprep.mubr.bf16.mxu0 0
        %2868 = vmatmul.mubr.bf16.gmra.mxu0 %v2830
        %v2869 = vpop.f32.mrf.mxu0
        %v2870 = vadd.f32 0.0, %v2869
        %v2871 = vpop.f32.mrf.mxu0
        %v2872 = vpop.f32.mrf.mxu0
        %v2873 = vpop.f32.mrf.mxu0
        %2874 = vdwg.mxu0
        %v2875 = vmul.f32 %v2732, 0.35355338
        %v2876 = vmul.f32 %v2778, 0.35355338
        %v2877 = vmul.f32 %v2824, 0.35355338
        %v2878 = vmul.f32 %v2870, 0.35355338
        %s2879 = scalar_lea.vmem [#allocation2], 64
        %v2880 = vld [vmem:[%s2879] sm:$0xff]
        %v2881 = vld [vmem:[%s2879 + $0x8] sm:$0xff]
        %v2882 = vld [vmem:[%s2879 + $0x10] sm:$0xff]
        %v2883 = vld [vmem:[%s2879 + $0x18] sm:$0xff]
        %s2884 = scalar_lea.vmem [#allocation3], 64
        %v2885 = vld [vmem:[%s2884] sm:$0xff]
        %v2886 = vld [vmem:[%s2884 + $0x8] sm:$0xff]
        %v2887 = vld [vmem:[%s2884 + $0x10] sm:$0xff]
        %v2888 = vld [vmem:[%s2884 + $0x18] sm:$0xff]
        %s2889 = scalar_lea.vmem [#allocation4], 64
        %v2890 = vld [vmem:[%s2889] sm:$0xff]
        %v2891 = vld [vmem:[%s2889 + $0x8] sm:$0xff]
        %v2892 = vld [vmem:[%s2889 + $0x10] sm:$0xff]
        %v2893 = vld [vmem:[%s2889 + $0x18] sm:$0xff]
        %v2894 = vsel %vm745, %v2875, -inf
        %2895 = vmax.xlane.f32.xlu0 %v2894
        %v2896 = vpop.xlane.xlu0 %2895
        %v2897 = vsel %vm745, %v2876, -inf
        %2898 = vmax.xlane.f32.xlu0 %v2897
        %v2899 = vpop.xlane.xlu0 %2898
        %v2900 = vsel %vm745, %v2877, -inf
        %2901 = vmax.xlane.f32.xlu0 %v2900
        %v2902 = vpop.xlane.xlu0 %2901
        %v2903 = vsel %vm745, %v2878, -inf
        %2904 = vmax.xlane.f32.xlu0 %v2903
        %v2905 = vpop.xlane.xlu0 %2904
        %v2906 = vmax.f32 %v2880, %v2896
        %v2907 = vmax.f32 %v2881, %v2899
        %v2908 = vmax.f32 %v2882, %v2902
        %v2909 = vmax.f32 %v2883, %v2905
        %v2910 = vsub.f32 %v2880, %v2906
        %v2911 = vsub.f32 %v2881, %v2907
        %v2912 = vsub.f32 %v2882, %v2908
        %v2913 = vsub.f32 %v2883, %v2909
        %v2914 = vmul.f32 %v2910, 1.442695
        %v2915 = vpow.pop %v2914
        %v2916 = vmul.f32 %v2911, 1.442695
        %v2917 = vpow.pop %v2916
        %v2918 = vmul.f32 %v2912, 1.442695
        %v2919 = vpow.pop %v2918
        %v2920 = vmul.f32 %v2913, 1.442695
        %v2921 = vpow.pop %v2920
        %2923 = vset.pattern.permute.xlu0 0
        %2924 = vperm.xlu0 %2923, %v2906
        %v2925 = vpop.permute.xlu0 %2924
        %2928 = vset.pattern.permute.xlu0 0
        %2929 = vperm.xlu0 %2928, %v2907
        %v2930 = vpop.permute.xlu0 %2929
        %2933 = vset.pattern.permute.xlu0 0
        %2934 = vperm.xlu0 %2933, %v2908
        %v2935 = vpop.permute.xlu0 %2934
        %2938 = vset.pattern.permute.xlu0 0
        %2939 = vperm.xlu0 %2938, %v2909
        %v2940 = vpop.permute.xlu0 %2939
        %v2942 = vsub.f32 %v2875, %v2925
        %v2943 = vsub.f32 %v2876, %v2930
        %v2944 = vsub.f32 %v2877, %v2935
        %v2945 = vsub.f32 %v2878, %v2940
        %v2946 = vmul.f32 %v2942, 1.442695
        %v2947 = vpow.pop %v2946
        %v2948 = vmul.f32 %v2943, 1.442695
        %v2949 = vpow.pop %v2948
        %v2950 = vmul.f32 %v2944, 1.442695
        %v2951 = vpow.pop %v2950
        %v2952 = vmul.f32 %v2945, 1.442695
        %v2953 = vpow.pop %v2952
        %v2954 = vmul.f32 %v2915, %v2885
        %v2955 = vmul.f32 %v2917, %v2886
        %v2956 = vmul.f32 %v2919, %v2887
        %v2957 = vmul.f32 %v2921, %v2888
        %v2958 = vsel %vm745, %v2947, 0.0
        %2959 = vadd.xlane.f32.xlu0 %v2958
        %v2960 = vpop.xlane.xlu0 %2959
        %v2961 = vsel %vm745, %v2949, 0.0
        %2962 = vadd.xlane.f32.xlu0 %v2961
        %v2963 = vpop.xlane.xlu0 %2962
        %v2964 = vsel %vm745, %v2951, 0.0
        %2965 = vadd.xlane.f32.xlu0 %v2964
        %v2966 = vpop.xlane.xlu0 %2965
        %v2967 = vsel %vm745, %v2953, 0.0
        %2968 = vadd.xlane.f32.xlu0 %v2967
        %v2969 = vpop.xlane.xlu0 %2968
        %v2970 = vadd.f32 %v2954, %v2960
        %v2971 = vadd.f32 %v2955, %v2963
        %v2972 = vadd.f32 %v2956, %v2966
        %v2973 = vadd.f32 %v2957, %v2969
        %v2974 = vpack.c.bf16 %v2947, %v2947
        %v2975 = vpack.c.bf16 %v2949, %v2949
        %v2976 = vpack.c.bf16 %v2951, %v2951
        %v2977 = vpack.c.bf16 %v2953, %v2953
        %v2979 = vsel %vm745, %v2974, 0
        %v2982 = vsel %vm1033, %v2681, 0
        %2984 = vmatprep.subr.bf16.mxu0 0
        %2985 = vmatpush1.bf16.msra.mxu0 0
        %2986 = vmatprep.subr.bf16.mxu0 0
        %2987 = vmatpush1.bf16.msra.mxu0 0
        %2988 = vmatprep.subr.bf16.mxu0 0
        %2989 = vmatpush1.bf16.msra.mxu0 0
        %2990 = vmatprep.subr.bf16.mxu0 0
        %2991 = vmatpush1.bf16.msra.mxu0 0
        %2992 = vmatprep.subr.bf16.mxu0 0
        %2993 = vmatpush1.bf16.msra.mxu0 0
        %2994 = vmatprep.subr.bf16.mxu0 0
        %2995 = vmatpush1.bf16.msra.mxu0 0
        %2996 = vmatprep.subr.bf16.mxu0 0
        %2997 = vmatpush1.bf16.msra.mxu0 0
        %2998 = vmatprep.subr.bf16.mxu0 0
        %2999 = vmatpush1.bf16.msra.mxu0 %v2982
        %3000 = vmatprep.subr.bf16.mxu0 0
        %3001 = vmatpush2.bf16.msra.mxu0 0
        %3002 = vmatprep.subr.bf16.mxu0 0
        %3003 = vmatpush2.bf16.msra.mxu0 0
        %3004 = vmatprep.subr.bf16.mxu0 0
        %3005 = vmatpush2.bf16.msra.mxu0 0
        %3006 = vmatprep.subr.bf16.mxu0 0
        %3007 = vmatpush2.bf16.msra.mxu0 0
        %3008 = vmatprep.subr.bf16.mxu0 0
        %3009 = vmatpush2.bf16.msra.mxu0 0
        %3010 = vmatprep.subr.bf16.mxu0 0
        %3011 = vmatpush2.bf16.msra.mxu0 0
        %3012 = vmatprep.subr.bf16.mxu0 0
        %3013 = vmatpush2.bf16.msra.mxu0 0
        %3014 = vmatprep.subr.bf16.mxu0 0
        %3015 = vmatpush2.bf16.msra.mxu0 0
        %3016 = vmatprep.mubr.bf16.mxu0 0
        %3017 = vmatmul.mubr.bf16.gmra.mxu0 %v2979
        %v3018 = vpop.f32.mrf.mxu0
        %v3019 = vadd.f32 0.0, %v3018
        %v3020 = vpop.f32.mrf.mxu0
        %v3021 = vpop.f32.mrf.mxu0
        %v3022 = vpop.f32.mrf.mxu0
        %3023 = vdwg.mxu0
        %v3025 = vsel %vm745, %v2975, 0
        %v3028 = vsel %vm1033, %v2684, 0
        %3030 = vmatprep.subr.bf16.mxu0 0
        %3031 = vmatpush1.bf16.msra.mxu0 0
        %3032 = vmatprep.subr.bf16.mxu0 0
        %3033 = vmatpush1.bf16.msra.mxu0 0
        %3034 = vmatprep.subr.bf16.mxu0 0
        %3035 = vmatpush1.bf16.msra.mxu0 0
        %3036 = vmatprep.subr.bf16.mxu0 0
        %3037 = vmatpush1.bf16.msra.mxu0 0
        %3038 = vmatprep.subr.bf16.mxu0 0
        %3039 = vmatpush1.bf16.msra.mxu0 0
        %3040 = vmatprep.subr.bf16.mxu0 0
        %3041 = vmatpush1.bf16.msra.mxu0 0
        %3042 = vmatprep.subr.bf16.mxu0 0
        %3043 = vmatpush1.bf16.msra.mxu0 0
        %3044 = vmatprep.subr.bf16.mxu0 0
        %3045 = vmatpush1.bf16.msra.mxu0 %v3028
        %3046 = vmatprep.subr.bf16.mxu0 0
        %3047 = vmatpush2.bf16.msra.mxu0 0
        %3048 = vmatprep.subr.bf16.mxu0 0
        %3049 = vmatpush2.bf16.msra.mxu0 0
        %3050 = vmatprep.subr.bf16.mxu0 0
        %3051 = vmatpush2.bf16.msra.mxu0 0
        %3052 = vmatprep.subr.bf16.mxu0 0
        %3053 = vmatpush2.bf16.msra.mxu0 0
        %3054 = vmatprep.subr.bf16.mxu0 0
        %3055 = vmatpush2.bf16.msra.mxu0 0
        %3056 = vmatprep.subr.bf16.mxu0 0
        %3057 = vmatpush2.bf16.msra.mxu0 0
        %3058 = vmatprep.subr.bf16.mxu0 0
        %3059 = vmatpush2.bf16.msra.mxu0 0
        %3060 = vmatprep.subr.bf16.mxu0 0
        %3061 = vmatpush2.bf16.msra.mxu0 0
        %3062 = vmatprep.mubr.bf16.mxu0 0
        %3063 = vmatmul.mubr.bf16.gmra.mxu0 %v3025
        %v3064 = vpop.f32.mrf.mxu0
        %v3065 = vadd.f32 0.0, %v3064
        %v3066 = vpop.f32.mrf.mxu0
        %v3067 = vpop.f32.mrf.mxu0
        %v3068 = vpop.f32.mrf.mxu0
        %3069 = vdwg.mxu0
        %v3071 = vsel %vm745, %v2976, 0
        %v3074 = vsel %vm1033, %v2687, 0
        %3076 = vmatprep.subr.bf16.mxu0 0
        %3077 = vmatpush1.bf16.msra.mxu0 0
        %3078 = vmatprep.subr.bf16.mxu0 0
        %3079 = vmatpush1.bf16.msra.mxu0 0
        %3080 = vmatprep.subr.bf16.mxu0 0
        %3081 = vmatpush1.bf16.msra.mxu0 0
        %3082 = vmatprep.subr.bf16.mxu0 0
        %3083 = vmatpush1.bf16.msra.mxu0 0
        %3084 = vmatprep.subr.bf16.mxu0 0
        %3085 = vmatpush1.bf16.msra.mxu0 0
        %3086 = vmatprep.subr.bf16.mxu0 0
        %3087 = vmatpush1.bf16.msra.mxu0 0
        %3088 = vmatprep.subr.bf16.mxu0 0
        %3089 = vmatpush1.bf16.msra.mxu0 0
        %3090 = vmatprep.subr.bf16.mxu0 0
        %3091 = vmatpush1.bf16.msra.mxu0 %v3074
        %3092 = vmatprep.subr.bf16.mxu0 0
        %3093 = vmatpush2.bf16.msra.mxu0 0
        %3094 = vmatprep.subr.bf16.mxu0 0
        %3095 = vmatpush2.bf16.msra.mxu0 0
        %3096 = vmatprep.subr.bf16.mxu0 0
        %3097 = vmatpush2.bf16.msra.mxu0 0
        %3098 = vmatprep.subr.bf16.mxu0 0
        %3099 = vmatpush2.bf16.msra.mxu0 0
        %3100 = vmatprep.subr.bf16.mxu0 0
        %3101 = vmatpush2.bf16.msra.mxu0 0
        %3102 = vmatprep.subr.bf16.mxu0 0
        %3103 = vmatpush2.bf16.msra.mxu0 0
        %3104 = vmatprep.subr.bf16.mxu0 0
        %3105 = vmatpush2.bf16.msra.mxu0 0
        %3106 = vmatprep.subr.bf16.mxu0 0
        %3107 = vmatpush2.bf16.msra.mxu0 0
        %3108 = vmatprep.mubr.bf16.mxu0 0
        %3109 = vmatmul.mubr.bf16.gmra.mxu0 %v3071
        %v3110 = vpop.f32.mrf.mxu0
        %v3111 = vadd.f32 0.0, %v3110
        %v3112 = vpop.f32.mrf.mxu0
        %v3113 = vpop.f32.mrf.mxu0
        %v3114 = vpop.f32.mrf.mxu0
        %3115 = vdwg.mxu0
        %v3117 = vsel %vm745, %v2977, 0
        %v3120 = vsel %vm1033, %v2690, 0
        %3122 = vmatprep.subr.bf16.mxu0 0
        %3123 = vmatpush1.bf16.msra.mxu0 0
        %3124 = vmatprep.subr.bf16.mxu0 0
        %3125 = vmatpush1.bf16.msra.mxu0 0
        %3126 = vmatprep.subr.bf16.mxu0 0
        %3127 = vmatpush1.bf16.msra.mxu0 0
        %3128 = vmatprep.subr.bf16.mxu0 0
        %3129 = vmatpush1.bf16.msra.mxu0 0
        %3130 = vmatprep.subr.bf16.mxu0 0
        %3131 = vmatpush1.bf16.msra.mxu0 0
        %3132 = vmatprep.subr.bf16.mxu0 0
        %3133 = vmatpush1.bf16.msra.mxu0 0
        %3134 = vmatprep.subr.bf16.mxu0 0
        %3135 = vmatpush1.bf16.msra.mxu0 0
        %3136 = vmatprep.subr.bf16.mxu0 0
        %3137 = vmatpush1.bf16.msra.mxu0 %v3120
        %3138 = vmatprep.subr.bf16.mxu0 0
        %3139 = vmatpush2.bf16.msra.mxu0 0
        %3140 = vmatprep.subr.bf16.mxu0 0
        %3141 = vmatpush2.bf16.msra.mxu0 0
        %3142 = vmatprep.subr.bf16.mxu0 0
        %3143 = vmatpush2.bf16.msra.mxu0 0
        %3144 = vmatprep.subr.bf16.mxu0 0
        %3145 = vmatpush2.bf16.msra.mxu0 0
        %3146 = vmatprep.subr.bf16.mxu0 0
        %3147 = vmatpush2.bf16.msra.mxu0 0
        %3148 = vmatprep.subr.bf16.mxu0 0
        %3149 = vmatpush2.bf16.msra.mxu0 0
        %3150 = vmatprep.subr.bf16.mxu0 0
        %3151 = vmatpush2.bf16.msra.mxu0 0
        %3152 = vmatprep.subr.bf16.mxu0 0
        %3153 = vmatpush2.bf16.msra.mxu0 0
        %3154 = vmatprep.mubr.bf16.mxu0 0
        %3155 = vmatmul.mubr.bf16.gmra.mxu0 %v3117
        %v3156 = vpop.f32.mrf.mxu0
        %v3157 = vadd.f32 0.0, %v3156
        %v3158 = vpop.f32.mrf.mxu0
        %v3159 = vpop.f32.mrf.mxu0
        %v3160 = vpop.f32.mrf.mxu0
        %3161 = vdwg.mxu0
        %3162 = vst.msk [vmem:[%s2879] sm:$0xff] %vm1215, %v2906
        %3163 = vst.msk [vmem:[%s2879 + $0x8] sm:$0xff] %vm1215, %v2907
        %3164 = vst.msk [vmem:[%s2879 + $0x10] sm:$0xff] %vm1215, %v2908
        %3165 = vst.msk [vmem:[%s2879 + $0x18] sm:$0xff] %vm1215, %v2909
        %3166 = vst.msk [vmem:[%s2884] sm:$0xff] %vm1215, %v2970
        %3167 = vst.msk [vmem:[%s2884 + $0x8] sm:$0xff] %vm1215, %v2971
        %3168 = vst.msk [vmem:[%s2884 + $0x10] sm:$0xff] %vm1215, %v2972
        %3169 = vst.msk [vmem:[%s2884 + $0x18] sm:$0xff] %vm1215, %v2973
        %3171 = vset.pattern.permute.xlu0 0
        %3172 = vperm.xlu0 %3171, %v2915
        %v3173 = vpop.permute.xlu0 %3172
        %3176 = vset.pattern.permute.xlu0 0
        %3177 = vperm.xlu0 %3176, %v2917
        %v3178 = vpop.permute.xlu0 %3177
        %3181 = vset.pattern.permute.xlu0 0
        %3182 = vperm.xlu0 %3181, %v2919
        %v3183 = vpop.permute.xlu0 %3182
        %3186 = vset.pattern.permute.xlu0 0
        %3187 = vperm.xlu0 %3186, %v2921
        %v3188 = vpop.permute.xlu0 %3187
        %v3190 = vmul.f32 %v3173, %v2890
        %v3191 = vmul.f32 %v3178, %v2891
        %v3192 = vmul.f32 %v3183, %v2892
        %v3193 = vmul.f32 %v3188, %v2893
        %v3194 = vadd.f32 %v3190, %v3019
        %v3195 = vadd.f32 %v3191, %v3065
        %v3196 = vadd.f32 %v3192, %v3111
        %v3197 = vadd.f32 %v3193, %v3157
        %3198 = vst.msk [vmem:[%s2889] sm:$0xff] %vm745, %v3194
        %3199 = vst.msk [vmem:[%s2889 + $0x8] sm:$0xff] %vm745, %v3195
        %3200 = vst.msk [vmem:[%s2889 + $0x10] sm:$0xff] %vm745, %v3196
        %3201 = vst.msk [vmem:[%s2889 + $0x18] sm:$0xff] %vm745, %v3197
        // Predicated region
        $region41: #{forward.20} parent=31 // pred_check
          %p3202 = pneg %p253
        $region42: #{forward.20} parent=31 // pred_check_branch
          %3204 = sbr.rel (%p3202) target = $region44
        $region43: #{forward.20} parent=31 // pred_region
          %s3205 = smul.u32 %s20, 128
          %s3206 = sld [smem:[#allocation5 + %s3205]]
          %v3207 = vld [vmem:[#allocation4] sm:$0xff]
          %v3208 = vld [vmem:[#allocation4 + $0x8] sm:$0xff]
          %v3209 = vld [vmem:[#allocation4 + $0x10] sm:$0xff]
          %v3210 = vld [vmem:[#allocation4 + $0x18] sm:$0xff]
          %v3211 = vld [vmem:[#allocation3] sm:$0xff]
          %v3212 = vld [vmem:[#allocation3 + $0x8] sm:$0xff]
          %v3213 = vld [vmem:[#allocation3 + $0x10] sm:$0xff]
          %v3214 = vld [vmem:[#allocation3 + $0x18] sm:$0xff]
          %v3215 = vrcp.pop %v3211
          %v3216 = vrcp.pop %v3212
          %v3217 = vrcp.pop %v3213
          %v3218 = vrcp.pop %v3214
          %3220 = vset.pattern.permute.xlu0 0
          %3221 = vperm.xlu0 %3220, %v3215
          %v3222 = vpop.permute.xlu0 %3221
          %3225 = vset.pattern.permute.xlu0 0
          %3226 = vperm.xlu0 %3225, %v3216
          %v3227 = vpop.permute.xlu0 %3226
          %3230 = vset.pattern.permute.xlu0 0
          %3231 = vperm.xlu0 %3230, %v3217
          %v3232 = vpop.permute.xlu0 %3231
          %3235 = vset.pattern.permute.xlu0 0
          %3236 = vperm.xlu0 %3235, %v3218
          %v3237 = vpop.permute.xlu0 %3236
          %v3239 = vmul.f32 %v3207, %v3222
          %v3240 = vmul.f32 %v3208, %v3227
          %v3241 = vmul.f32 %v3209, %v3232
          %v3242 = vmul.f32 %v3210, %v3237
          %v3243 = vstv %s3206
          %v3244 = vmul.f32 %v3239, %v3243
          %v3245 = vmul.f32 %v3240, %v3243
          %v3246 = vmul.f32 %v3241, %v3243
          %v3247 = vmul.f32 %v3242, %v3243
          %v3248 = vcombine.low %v3244, %v3246
          %v3249 = vcombine.high %v3244, %v3246
          %v3251 = vunpack.c.l.s4 1983009808
          %v3252 = vunpack.c.0.s8 %v3251
          %v3253 = vlaneseq
          %v3254 = vshrl.u32 %v3253, 7
          %v3255 = vsub.s32 %v3252, %v3254
          %v3256 = vrot.slane %v3248, %v3255
          %v3258 = vunpack.c.l.s4 1983009808
          %v3259 = vunpack.c.0.s8 %v3258
          %v3260 = vlaneseq
          %v3261 = vshrl.u32 %v3260, 7
          %v3262 = vsub.s32 %v3259, %v3261
          %v3263 = vrot.slane %v3249, %v3262
          %v3264 = vcombine.low %v3245, %v3247
          %v3265 = vcombine.high %v3245, %v3247
          %v3267 = vunpack.c.l.s4 1983009808
          %v3268 = vunpack.c.0.s8 %v3267
          %v3269 = vlaneseq
          %v3270 = vshrl.u32 %v3269, 7
          %v3271 = vsub.s32 %v3268, %v3270
          %v3272 = vrot.slane %v3264, %v3271
          %v3274 = vunpack.c.l.s4 1983009808
          %v3275 = vunpack.c.0.s8 %v3274
          %v3276 = vlaneseq
          %v3277 = vshrl.u32 %v3276, 7
          %v3278 = vsub.s32 %v3275, %v3277
          %v3279 = vrot.slane %v3265, %v3278
          %v3280 = vcombine.low %v3256, %v3272
          %v3281 = vcombine.high %v3256, %v3272
          %v3283 = vunpack.c.l.s4 1934713408
          %v3284 = vunpack.c.0.s8 %v3283
          %v3285 = vlaneseq
          %v3286 = vshrl.u32 %v3285, 7
          %v3287 = vsub.s32 %v3284, %v3286
          %v3288 = vrot.slane %v3280, %v3287
          %v3290 = vunpack.c.l.s4 1934713408
          %v3291 = vunpack.c.0.s8 %v3290
          %v3292 = vlaneseq
          %v3293 = vshrl.u32 %v3292, 7
          %v3294 = vsub.s32 %v3291, %v3293
          %v3295 = vrot.slane %v3281, %v3294
          %v3296 = vcombine.low %v3263, %v3279
          %v3297 = vcombine.high %v3263, %v3279
          %v3299 = vunpack.c.l.s4 1934713408
          %v3300 = vunpack.c.0.s8 %v3299
          %v3301 = vlaneseq
          %v3302 = vshrl.u32 %v3301, 7
          %v3303 = vsub.s32 %v3300, %v3302
          %v3304 = vrot.slane %v3296, %v3303
          %v3306 = vunpack.c.l.s4 1934713408
          %v3307 = vunpack.c.0.s8 %v3306
          %v3308 = vlaneseq
          %v3309 = vshrl.u32 %v3308, 7
          %v3310 = vsub.s32 %v3307, %v3309
          %v3311 = vrot.slane %v3297, %v3310
          %v3312 = vcombine.high %v3288, 0.0
          %v3313 = vcombine.high %v3295, 0.0
          %v3314 = vcombine.high %v3304, 0.0
          %v3315 = vcombine.high %v3311, 0.0
          %v3316 = vcombine.low %v3288, %v3295
          %v3318 = vunpack.c.l.s4 1983009808
          %v3319 = vunpack.c.0.s8 %v3318
          %v3320 = vlaneseq
          %v3321 = vshrl.u32 %v3320, 7
          %v3322 = vsub.s32 %v3319, %v3321
          %v3323 = vrot.slane %v3316, %v3322
          %v3324 = vcombine.low %v3312, %v3313
          %v3326 = vunpack.c.l.s4 1983009808
          %v3327 = vunpack.c.0.s8 %v3326
          %v3328 = vlaneseq
          %v3329 = vshrl.u32 %v3328, 7
          %v3330 = vsub.s32 %v3327, %v3329
          %v3331 = vrot.slane %v3324, %v3330
          %v3332 = vcombine.low %v3304, %v3311
          %v3334 = vunpack.c.l.s4 1983009808
          %v3335 = vunpack.c.0.s8 %v3334
          %v3336 = vlaneseq
          %v3337 = vshrl.u32 %v3336, 7
          %v3338 = vsub.s32 %v3335, %v3337
          %v3339 = vrot.slane %v3332, %v3338
          %v3340 = vcombine.low %v3314, %v3315
          %v3342 = vunpack.c.l.s4 1983009808
          %v3343 = vunpack.c.0.s8 %v3342
          %v3344 = vlaneseq
          %v3345 = vshrl.u32 %v3344, 7
          %v3346 = vsub.s32 %v3343, %v3345
          %v3347 = vrot.slane %v3340, %v3346
          %v3348 = vcombine.low %v3323, %v3331
          %v3349 = vcombine.high %v3323, %v3331
          %v3351 = vunpack.c.l.s4 1934713408
          %v3352 = vunpack.c.0.s8 %v3351
          %v3353 = vlaneseq
          %v3354 = vshrl.u32 %v3353, 7
          %v3355 = vsub.s32 %v3352, %v3354
          %v3356 = vrot.slane %v3348, %v3355
          %v3358 = vunpack.c.l.s4 1934713408
          %v3359 = vunpack.c.0.s8 %v3358
          %v3360 = vlaneseq
          %v3361 = vshrl.u32 %v3360, 7
          %v3362 = vsub.s32 %v3359, %v3361
          %v3363 = vrot.slane %v3349, %v3362
          %v3364 = vcombine.low %v3339, %v3347
          %v3365 = vcombine.high %v3339, %v3347
          %v3367 = vunpack.c.l.s4 1934713408
          %v3368 = vunpack.c.0.s8 %v3367
          %v3369 = vlaneseq
          %v3370 = vshrl.u32 %v3369, 7
          %v3371 = vsub.s32 %v3368, %v3370
          %v3372 = vrot.slane %v3364, %v3371
          %v3374 = vunpack.c.l.s4 1934713408
          %v3375 = vunpack.c.0.s8 %v3374
          %v3376 = vlaneseq
          %v3377 = vshrl.u32 %v3376, 7
          %v3378 = vsub.s32 %v3375, %v3377
          %v3379 = vrot.slane %v3365, %v3378
          %v3380 = vcombine.low %v3356, %v3372
          %v3381 = vcombine.high %v3356, %v3372
          %v3382 = vcombine.low %v3363, %v3379
          %v3383 = vcombine.high %v3363, %v3379
          %3385 = vrot.lane.b32.xlu0 %v3381, 8
          %v3386 = vpop.permute.xlu0 %3385
          %3389 = vrot.lane.b32.xlu0 %v3382, 16
          %v3390 = vpop.permute.xlu0 %3389
          %3393 = vrot.lane.b32.xlu0 %v3383, 24
          %v3394 = vpop.permute.xlu0 %3393
          %v3396 = vsel %vm745, %v3380, %v3386
          %vm3397 = vcmask 130048
          %v3398 = vsel %vm3397, %v3396, %v3390
          %vm3399 = vcmask 195584
          %v3400 = vsel %vm3399, %v3398, %v3394
          %s3401 = sadd.s32 %s3205, 1
          %s3402 = sld [smem:[#allocation5 + %s3401]]
          %v3403 = vld [vmem:[%s1920] sm:$0xff]
          %v3404 = vld [vmem:[%s1920 + $0x8] sm:$0xff]
          %v3405 = vld [vmem:[%s1920 + $0x10] sm:$0xff]
          %v3406 = vld [vmem:[%s1920 + $0x18] sm:$0xff]
          %v3407 = vld [vmem:[%s1915] sm:$0xff]
          %v3408 = vld [vmem:[%s1915 + $0x8] sm:$0xff]
          %v3409 = vld [vmem:[%s1915 + $0x10] sm:$0xff]
          %v3410 = vld [vmem:[%s1915 + $0x18] sm:$0xff]
          %v3411 = vrcp.pop %v3407
          %v3412 = vrcp.pop %v3408
          %v3413 = vrcp.pop %v3409
          %v3414 = vrcp.pop %v3410
          %3416 = vset.pattern.permute.xlu0 0
          %3417 = vperm.xlu0 %3416, %v3411
          %v3418 = vpop.permute.xlu0 %3417
          %3421 = vset.pattern.permute.xlu0 0
          %3422 = vperm.xlu0 %3421, %v3412
          %v3423 = vpop.permute.xlu0 %3422
          %3426 = vset.pattern.permute.xlu0 0
          %3427 = vperm.xlu0 %3426, %v3413
          %v3428 = vpop.permute.xlu0 %3427
          %3431 = vset.pattern.permute.xlu0 0
          %3432 = vperm.xlu0 %3431, %v3414
          %v3433 = vpop.permute.xlu0 %3432
          %v3435 = vmul.f32 %v3403, %v3418
          %v3436 = vmul.f32 %v3404, %v3423
          %v3437 = vmul.f32 %v3405, %v3428
          %v3438 = vmul.f32 %v3406, %v3433
          %v3439 = vstv %s3402
          %v3440 = vmul.f32 %v3435, %v3439
          %v3441 = vmul.f32 %v3436, %v3439
          %v3442 = vmul.f32 %v3437, %v3439
          %v3443 = vmul.f32 %v3438, %v3439
          %v3444 = vcombine.low %v3440, %v3442
          %v3445 = vcombine.high %v3440, %v3442
          %v3447 = vunpack.c.l.s4 1983009808
          %v3448 = vunpack.c.0.s8 %v3447
          %v3449 = vlaneseq
          %v3450 = vshrl.u32 %v3449, 7
          %v3451 = vsub.s32 %v3448, %v3450
          %v3452 = vrot.slane %v3444, %v3451
          %v3454 = vunpack.c.l.s4 1983009808
          %v3455 = vunpack.c.0.s8 %v3454
          %v3456 = vlaneseq
          %v3457 = vshrl.u32 %v3456, 7
          %v3458 = vsub.s32 %v3455, %v3457
          %v3459 = vrot.slane %v3445, %v3458
          %v3460 = vcombine.low %v3441, %v3443
          %v3461 = vcombine.high %v3441, %v3443
          %v3463 = vunpack.c.l.s4 1983009808
          %v3464 = vunpack.c.0.s8 %v3463
          %v3465 = vlaneseq
          %v3466 = vshrl.u32 %v3465, 7
          %v3467 = vsub.s32 %v3464, %v3466
          %v3468 = vrot.slane %v3460, %v3467
          %v3470 = vunpack.c.l.s4 1983009808
          %v3471 = vunpack.c.0.s8 %v3470
          %v3472 = vlaneseq
          %v3473 = vshrl.u32 %v3472, 7
          %v3474 = vsub.s32 %v3471, %v3473
          %v3475 = vrot.slane %v3461, %v3474
          %v3476 = vcombine.low %v3452, %v3468
          %v3477 = vcombine.high %v3452, %v3468
          %v3479 = vunpack.c.l.s4 1934713408
          %v3480 = vunpack.c.0.s8 %v3479
          %v3481 = vlaneseq
          %v3482 = vshrl.u32 %v3481, 7
          %v3483 = vsub.s32 %v3480, %v3482
          %v3484 = vrot.slane %v3476, %v3483
          %v3486 = vunpack.c.l.s4 1934713408
          %v3487 = vunpack.c.0.s8 %v3486
          %v3488 = vlaneseq
          %v3489 = vshrl.u32 %v3488, 7
          %v3490 = vsub.s32 %v3487, %v3489
          %v3491 = vrot.slane %v3477, %v3490
          %v3492 = vcombine.low %v3459, %v3475
          %v3493 = vcombine.high %v3459, %v3475
          %v3495 = vunpack.c.l.s4 1934713408
          %v3496 = vunpack.c.0.s8 %v3495
          %v3497 = vlaneseq
          %v3498 = vshrl.u32 %v3497, 7
          %v3499 = vsub.s32 %v3496, %v3498
          %v3500 = vrot.slane %v3492, %v3499
          %v3502 = vunpack.c.l.s4 1934713408
          %v3503 = vunpack.c.0.s8 %v3502
          %v3504 = vlaneseq
          %v3505 = vshrl.u32 %v3504, 7
          %v3506 = vsub.s32 %v3503, %v3505
          %v3507 = vrot.slane %v3493, %v3506
          %v3508 = vcombine.high %v3484, 0.0
          %v3509 = vcombine.high %v3491, 0.0
          %v3510 = vcombine.high %v3500, 0.0
          %v3511 = vcombine.high %v3507, 0.0
          %v3512 = vcombine.low %v3484, %v3491
          %v3514 = vunpack.c.l.s4 1983009808
          %v3515 = vunpack.c.0.s8 %v3514
          %v3516 = vlaneseq
          %v3517 = vshrl.u32 %v3516, 7
          %v3518 = vsub.s32 %v3515, %v3517
          %v3519 = vrot.slane %v3512, %v3518
          %v3520 = vcombine.low %v3508, %v3509
          %v3522 = vunpack.c.l.s4 1983009808
          %v3523 = vunpack.c.0.s8 %v3522
          %v3524 = vlaneseq
          %v3525 = vshrl.u32 %v3524, 7
          %v3526 = vsub.s32 %v3523, %v3525
          %v3527 = vrot.slane %v3520, %v3526
          %v3528 = vcombine.low %v3500, %v3507
          %v3530 = vunpack.c.l.s4 1983009808
          %v3531 = vunpack.c.0.s8 %v3530
          %v3532 = vlaneseq
          %v3533 = vshrl.u32 %v3532, 7
          %v3534 = vsub.s32 %v3531, %v3533
          %v3535 = vrot.slane %v3528, %v3534
          %v3536 = vcombine.low %v3510, %v3511
          %v3538 = vunpack.c.l.s4 1983009808
          %v3539 = vunpack.c.0.s8 %v3538
          %v3540 = vlaneseq
          %v3541 = vshrl.u32 %v3540, 7
          %v3542 = vsub.s32 %v3539, %v3541
          %v3543 = vrot.slane %v3536, %v3542
          %v3544 = vcombine.low %v3519, %v3527
          %v3545 = vcombine.high %v3519, %v3527
          %v3547 = vunpack.c.l.s4 1934713408
          %v3548 = vunpack.c.0.s8 %v3547
          %v3549 = vlaneseq
          %v3550 = vshrl.u32 %v3549, 7
          %v3551 = vsub.s32 %v3548, %v3550
          %v3552 = vrot.slane %v3544, %v3551
          %v3554 = vunpack.c.l.s4 1934713408
          %v3555 = vunpack.c.0.s8 %v3554
          %v3556 = vlaneseq
          %v3557 = vshrl.u32 %v3556, 7
          %v3558 = vsub.s32 %v3555, %v3557
          %v3559 = vrot.slane %v3545, %v3558
          %v3560 = vcombine.low %v3535, %v3543
          %v3561 = vcombine.high %v3535, %v3543
          %v3563 = vunpack.c.l.s4 1934713408
          %v3564 = vunpack.c.0.s8 %v3563
          %v3565 = vlaneseq
          %v3566 = vshrl.u32 %v3565, 7
          %v3567 = vsub.s32 %v3564, %v3566
          %v3568 = vrot.slane %v3560, %v3567
          %v3570 = vunpack.c.l.s4 1934713408
          %v3571 = vunpack.c.0.s8 %v3570
          %v3572 = vlaneseq
          %v3573 = vshrl.u32 %v3572, 7
          %v3574 = vsub.s32 %v3571, %v3573
          %v3575 = vrot.slane %v3561, %v3574
          %v3576 = vcombine.low %v3552, %v3568
          %v3577 = vcombine.high %v3552, %v3568
          %v3578 = vcombine.low %v3559, %v3575
          %v3579 = vcombine.high %v3559, %v3575
          %3581 = vrot.lane.b32.xlu0 %v3577, 8
          %v3582 = vpop.permute.xlu0 %3581
          %3585 = vrot.lane.b32.xlu0 %v3578, 16
          %v3586 = vpop.permute.xlu0 %3585
          %3589 = vrot.lane.b32.xlu0 %v3579, 24
          %v3590 = vpop.permute.xlu0 %3589
          %v3592 = vsel %vm745, %v3576, %v3582
          %v3593 = vsel %vm3397, %v3592, %v3586
          %v3594 = vsel %vm3399, %v3593, %v3590
          %s3595 = sadd.s32 %s3205, 2
          %s3596 = sld [smem:[#allocation5 + %s3595]]
          %v3597 = vld [vmem:[%s2889] sm:$0xff]
          %v3598 = vld [vmem:[%s2889 + $0x8] sm:$0xff]
          %v3599 = vld [vmem:[%s2889 + $0x10] sm:$0xff]
          %v3600 = vld [vmem:[%s2889 + $0x18] sm:$0xff]
          %v3601 = vld [vmem:[%s2884] sm:$0xff]
          %v3602 = vld [vmem:[%s2884 + $0x8] sm:$0xff]
          %v3603 = vld [vmem:[%s2884 + $0x10] sm:$0xff]
          %v3604 = vld [vmem:[%s2884 + $0x18] sm:$0xff]
          %v3605 = vrcp.pop %v3601
          %v3606 = vrcp.pop %v3602
          %v3607 = vrcp.pop %v3603
          %v3608 = vrcp.pop %v3604
          %3610 = vset.pattern.permute.xlu0 0
          %3611 = vperm.xlu0 %3610, %v3605
          %v3612 = vpop.permute.xlu0 %3611
          %3615 = vset.pattern.permute.xlu0 0
          %3616 = vperm.xlu0 %3615, %v3606
          %v3617 = vpop.permute.xlu0 %3616
          %3620 = vset.pattern.permute.xlu0 0
          %3621 = vperm.xlu0 %3620, %v3607
          %v3622 = vpop.permute.xlu0 %3621
          %3625 = vset.pattern.permute.xlu0 0
          %3626 = vperm.xlu0 %3625, %v3608
          %v3627 = vpop.permute.xlu0 %3626
          %v3629 = vmul.f32 %v3597, %v3612
          %v3630 = vmul.f32 %v3598, %v3617
          %v3631 = vmul.f32 %v3599, %v3622
          %v3632 = vmul.f32 %v3600, %v3627
          %v3633 = vstv %s3596
          %v3634 = vmul.f32 %v3629, %v3633
          %v3635 = vmul.f32 %v3630, %v3633
          %v3636 = vmul.f32 %v3631, %v3633
          %v3637 = vmul.f32 %v3632, %v3633
          %v3638 = vcombine.low %v3634, %v3636
          %v3639 = vcombine.high %v3634, %v3636
          %v3641 = vunpack.c.l.s4 1983009808
          %v3642 = vunpack.c.0.s8 %v3641
          %v3643 = vlaneseq
          %v3644 = vshrl.u32 %v3643, 7
          %v3645 = vsub.s32 %v3642, %v3644
          %v3646 = vrot.slane %v3638, %v3645
          %v3648 = vunpack.c.l.s4 1983009808
          %v3649 = vunpack.c.0.s8 %v3648
          %v3650 = vlaneseq
          %v3651 = vshrl.u32 %v3650, 7
          %v3652 = vsub.s32 %v3649, %v3651
          %v3653 = vrot.slane %v3639, %v3652
          %v3654 = vcombine.low %v3635, %v3637
          %v3655 = vcombine.high %v3635, %v3637
          %v3657 = vunpack.c.l.s4 1983009808
          %v3658 = vunpack.c.0.s8 %v3657
          %v3659 = vlaneseq
          %v3660 = vshrl.u32 %v3659, 7
          %v3661 = vsub.s32 %v3658, %v3660
          %v3662 = vrot.slane %v3654, %v3661
          %v3664 = vunpack.c.l.s4 1983009808
          %v3665 = vunpack.c.0.s8 %v3664
          %v3666 = vlaneseq
          %v3667 = vshrl.u32 %v3666, 7
          %v3668 = vsub.s32 %v3665, %v3667
          %v3669 = vrot.slane %v3655, %v3668
          %v3670 = vcombine.low %v3646, %v3662
          %v3671 = vcombine.high %v3646, %v3662
          %v3673 = vunpack.c.l.s4 1934713408
          %v3674 = vunpack.c.0.s8 %v3673
          %v3675 = vlaneseq
          %v3676 = vshrl.u32 %v3675, 7
          %v3677 = vsub.s32 %v3674, %v3676
          %v3678 = vrot.slane %v3670, %v3677
          %v3680 = vunpack.c.l.s4 1934713408
          %v3681 = vunpack.c.0.s8 %v3680
          %v3682 = vlaneseq
          %v3683 = vshrl.u32 %v3682, 7
          %v3684 = vsub.s32 %v3681, %v3683
          %v3685 = vrot.slane %v3671, %v3684
          %v3686 = vcombine.low %v3653, %v3669
          %v3687 = vcombine.high %v3653, %v3669
          %v3689 = vunpack.c.l.s4 1934713408
          %v3690 = vunpack.c.0.s8 %v3689
          %v3691 = vlaneseq
          %v3692 = vshrl.u32 %v3691, 7
          %v3693 = vsub.s32 %v3690, %v3692
          %v3694 = vrot.slane %v3686, %v3693
          %v3696 = vunpack.c.l.s4 1934713408
          %v3697 = vunpack.c.0.s8 %v3696
          %v3698 = vlaneseq
          %v3699 = vshrl.u32 %v3698, 7
          %v3700 = vsub.s32 %v3697, %v3699
          %v3701 = vrot.slane %v3687, %v3700
          %v3702 = vcombine.high %v3678, 0.0
          %v3703 = vcombine.high %v3685, 0.0
          %v3704 = vcombine.high %v3694, 0.0
          %v3705 = vcombine.high %v3701, 0.0
          %v3706 = vcombine.low %v3678, %v3685
          %v3708 = vunpack.c.l.s4 1983009808
          %v3709 = vunpack.c.0.s8 %v3708
          %v3710 = vlaneseq
          %v3711 = vshrl.u32 %v3710, 7
          %v3712 = vsub.s32 %v3709, %v3711
          %v3713 = vrot.slane %v3706, %v3712
          %v3714 = vcombine.low %v3702, %v3703
          %v3716 = vunpack.c.l.s4 1983009808
          %v3717 = vunpack.c.0.s8 %v3716
          %v3718 = vlaneseq
          %v3719 = vshrl.u32 %v3718, 7
          %v3720 = vsub.s32 %v3717, %v3719
          %v3721 = vrot.slane %v3714, %v3720
          %v3722 = vcombine.low %v3694, %v3701
          %v3724 = vunpack.c.l.s4 1983009808
          %v3725 = vunpack.c.0.s8 %v3724
          %v3726 = vlaneseq
          %v3727 = vshrl.u32 %v3726, 7
          %v3728 = vsub.s32 %v3725, %v3727
          %v3729 = vrot.slane %v3722, %v3728
          %v3730 = vcombine.low %v3704, %v3705
          %v3732 = vunpack.c.l.s4 1983009808
          %v3733 = vunpack.c.0.s8 %v3732
          %v3734 = vlaneseq
          %v3735 = vshrl.u32 %v3734, 7
          %v3736 = vsub.s32 %v3733, %v3735
          %v3737 = vrot.slane %v3730, %v3736
          %v3738 = vcombine.low %v3713, %v3721
          %v3739 = vcombine.high %v3713, %v3721
          %v3741 = vunpack.c.l.s4 1934713408
          %v3742 = vunpack.c.0.s8 %v3741
          %v3743 = vlaneseq
          %v3744 = vshrl.u32 %v3743, 7
          %v3745 = vsub.s32 %v3742, %v3744
          %v3746 = vrot.slane %v3738, %v3745
          %v3748 = vunpack.c.l.s4 1934713408
          %v3749 = vunpack.c.0.s8 %v3748
          %v3750 = vlaneseq
          %v3751 = vshrl.u32 %v3750, 7
          %v3752 = vsub.s32 %v3749, %v3751
          %v3753 = vrot.slane %v3739, %v3752
          %v3754 = vcombine.low %v3729, %v3737
          %v3755 = vcombine.high %v3729, %v3737
          %v3757 = vunpack.c.l.s4 1934713408
          %v3758 = vunpack.c.0.s8 %v3757
          %v3759 = vlaneseq
          %v3760 = vshrl.u32 %v3759, 7
          %v3761 = vsub.s32 %v3758, %v3760
          %v3762 = vrot.slane %v3754, %v3761
          %v3764 = vunpack.c.l.s4 1934713408
          %v3765 = vunpack.c.0.s8 %v3764
          %v3766 = vlaneseq
          %v3767 = vshrl.u32 %v3766, 7
          %v3768 = vsub.s32 %v3765, %v3767
          %v3769 = vrot.slane %v3755, %v3768
          %v3770 = vcombine.low %v3746, %v3762
          %v3771 = vcombine.high %v3746, %v3762
          %v3772 = vcombine.low %v3753, %v3769
          %v3773 = vcombine.high %v3753, %v3769
          %3775 = vrot.lane.b32.xlu0 %v3771, 8
          %v3776 = vpop.permute.xlu0 %3775
          %3779 = vrot.lane.b32.xlu0 %v3772, 16
          %v3780 = vpop.permute.xlu0 %3779
          %3783 = vrot.lane.b32.xlu0 %v3773, 24
          %v3784 = vpop.permute.xlu0 %3783
          %v3786 = vsel %vm745, %v3770, %v3776
          %v3787 = vsel %vm3397, %v3786, %v3780
          %v3788 = vsel %vm3399, %v3787, %v3784
          %3790 = vrot.lane.b32.xlu0 %v3594, 32
          %v3791 = vpop.permute.xlu0 %3790
          %3794 = vrot.lane.b32.xlu0 %v3788, 64
          %v3795 = vpop.permute.xlu0 %3794
          %vm3797 = vcmask 261120
          %v3798 = vsel %vm3797, %v3400, %v3791
          %vm3799 = vcmask 523264
          %v3800 = vsel %vm3799, %v3798, %v3795
          %v3801 = vpack.c.bf16 %v3800, %v3800
          %vm3802 = vcmask 781312
          %3803 = vst.msk [vmem:[%s251] sm:$0xf] %vm3802, %v3801
        $region44: #{forward.20} parent=31 // pred_fallthru
          _
        %p3804 = scmp.lt.s32.totalorder %s20, 1
        %s3805 = scalar_select %p3804, %s20, 1
        %p3806 = scmp.lt.s32.totalorder %s21, 0
        %s3807 = scalar_select %p3806, %s21, 0
        %s3808 = sadd.s32 %s3807, %s3805
        %s3809 = smul.addr %s3808, 4
        %s3810 = scalar_lea.vmem %s3, %s3809
        // Predicated region
        $region45: #{forward.20} parent=31 // pred_check
          %p3811 = pneg %p131
        $region46: #{forward.20} parent=31 // pred_check_branch
          %3813 = sbr.rel (%p3811) target = $region48
        $region47: #{forward.20} parent=31 // pred_region
          _
        $region48: #{forward.20} parent=31 // pred_fallthru
          _
      $region32: #{forward.20} parent=5 // pred_fallthru
        _
      %p3814 = scmp.le.s32.totalorder 2, %s10
      // Predicated region
      $region49: #{forward.20} parent=5 // pred_check
        %p3815 = pneg %p3814
      $region50: #{forward.20} parent=5 // pred_check_branch
        %3817 = sbr.rel (%p3815) target = $region52
      $region51: #{forward.20} parent=5 // pred_region
        %s3818 = ssub.s32 %s10, 2
        // Predicated region
        $region53: #{forward.20} parent=51 // pred_check
          %p3819 = pneg %p137
        $region54: #{forward.20} parent=51 // pred_check_branch
          %3821 = sbr.rel (%p3819) target = $region56
        $region55: #{forward.20} parent=51 // pred_region
          %p3822 = scmp.lt.s32.totalorder %s23, 1
          %s3823 = scalar_select %p3822, %s23, 1
          %p3824 = scmp.lt.s32.totalorder %s24, 0
          %s3825 = scalar_select %p3824, %s24, 0
          %s3826 = sadd.s32 %s3825, %s3823
          %s3827 = smul.addr %s3826, 4
          %s3828 = scalar_lea.vmem %s3, %s3827
        $region56: #{forward.20} parent=51 // pred_fallthru
          _
      $region52: #{forward.20} parent=5 // pred_fallthru
        _
    $region6: #{forward.20} parent=1 // loop_footer
      %s14 = sadd.s32 1, %s10
    $region7: #{forward.20} parent=1 // loop_footer_branch
      %9 = sbr.rel target = $region3
    $region8: #{forward.20} parent=1 // loop_exit
      _
    %3829 = vsyncpa [#allocation6], 1
    %s3830 = scalar_lea.sflag [#allocation6], 1
    %3831 = vsyncpa %s3830, 1

// kernel: forward.25
$region0: #{forward.25}
  #allocation0 [shape = 'u32[]', space=smem, size = 0x4, offset = 0x4, fixed_abs, tag = 'smem constant byte address 0x4 - core index']
  #allocation1 [shape = 'u32[144,128]{1,0:T(1,128)}', space=vmem, size = 0x12000, scoped, tag = 'internal scratch']
  %s0 = inlined_call_operand.vmem [shape: f32[16,32], index: 0, kind: input, shape index: {}]
  %s1 = inlined_call_operand.vmem [shape: f32[16,32], index: 1, kind: input, shape index: {}]
  %s2 = inlined_call_operand.vmem [shape: f32[1,32], index: 2, kind: input, shape index: {}]
  %s3 = inlined_call_operand.vmem [shape: f32[1,32], index: 3, kind: input, shape index: {}]
  %s4 = inlined_call_operand.vmem [shape: f32[1,32], index: 4, kind: input, shape index: {}]
  %s5 = inlined_call_operand.vmem [shape: f32[1,32], index: 5, kind: input, shape index: {}]
  %s6 = inlined_call_operand.vmem [shape: f32[16,32], index: 6, kind: output, shape index: {}]
  %s7 = sld [smem:[#allocation0]]
  $region34: #{forward.25} parent=0
    _
  %s9 = ssub.s32 1, %s7
  %s10 = scalar_select 0, %s9, %s7
  // Predicated region
  $region2: #{forward.25} parent=0 // pred_check
    _
  $region3: #{forward.25} parent=0 // pred_check_branch
    %12 = sbr.rel (0) target = $region5
  $region4: #{forward.25} parent=0 // pred_region
    _
  $region5: #{forward.25} parent=0 // pred_fallthru
    _
  // Predicated region
  $region6: #{forward.25} parent=0 // pred_check
    _
  $region7: #{forward.25} parent=0 // pred_check_branch
    %14 = sbr.rel (0) target = $region9
  $region8: #{forward.25} parent=0 // pred_region
    _
  $region9: #{forward.25} parent=0 // pred_fallthru
    _
  // Predicated region
  $region10: #{forward.25} parent=0 // pred_check
    _
  $region11: #{forward.25} parent=0 // pred_check_branch
    %16 = sbr.rel (0) target = $region13
  $region12: #{forward.25} parent=0 // pred_region
    _
  $region13: #{forward.25} parent=0 // pred_fallthru
    _
  // Predicated region
  $region14: #{forward.25} parent=0 // pred_check
    _
  $region15: #{forward.25} parent=0 // pred_check_branch
    %18 = sbr.rel (0) target = $region17
  $region16: #{forward.25} parent=0 // pred_region
    _
  $region17: #{forward.25} parent=0 // pred_fallthru
    _
  // Predicated region
  $region18: #{forward.25} parent=0 // pred_check
    _
  $region19: #{forward.25} parent=0 // pred_check_branch
    %20 = sbr.rel (0) target = $region21
  $region20: #{forward.25} parent=0 // pred_region
    _
  $region21: #{forward.25} parent=0 // pred_fallthru
    _
  // Predicated region
  $region22: #{forward.25} parent=0 // pred_check
    _
  $region23: #{forward.25} parent=0 // pred_check_branch
    %22 = sbr.rel (0) target = $region25
  $region24: #{forward.25} parent=0 // pred_region
    _
  $region25: #{forward.25} parent=0 // pred_fallthru
    _
  %v23 = vld [vmem:[%s0] sm:$0xff]
  %v24 = vld [vmem:[%s0 + $0x8] sm:$0xff]
  %v25 = vld [vmem:[%s1] sm:$0xff]
  %v26 = vld [vmem:[%s1 + $0x8] sm:$0xff]
  %v27 = vadd.f32 %v23, %v25
  %v28 = vadd.f32 %v24, %v26
  %vm29 = vcmask 261120
  %v30 = vsel %vm29, %v27, 0.0
  %31 = vadd.xlane.f32.xlu0 %v30
  %v32 = vpop.xlane.xlu0 %31
  %v33 = vsel %vm29, %v28, 0.0
  %34 = vadd.xlane.f32.xlu0 %v33
  %v35 = vpop.xlane.xlu0 %34
  %v36 = vmul.f32 %v27, %v27
  %v37 = vmul.f32 %v28, %v28
  %v38 = vsel %vm29, %v36, 0.0
  %39 = vadd.xlane.f32.xlu0 %v38
  %v40 = vpop.xlane.xlu0 %39
  %v41 = vsel %vm29, %v37, 0.0
  %42 = vadd.xlane.f32.xlu0 %v41
  %v43 = vpop.xlane.xlu0 %42
  %v44 = vmul.f32 %v32, 0.03125
  %v45 = vmul.f32 %v35, 0.03125
  %v46 = vmul.f32 %v40, 0.03125
  %v47 = vmul.f32 %v43, 0.03125
  %v48 = vmul.f32 %v44, %v44
  %v49 = vmul.f32 %v45, %v45
  %v50 = vsub.f32 %v46, %v48
  %v51 = vsub.f32 %v47, %v49
  %v52 = vmax.f32 %v50, 0.0
  %v53 = vmax.f32 %v51, 0.0
  %v54 = vadd.f32 %v52, 1e-05
  %v55 = vadd.f32 %v53, 1e-05
  %v56 = vrsqrt.pop %v54
  %v57 = vrsqrt.pop %v55
  %v58 = vsub.f32 %v27, %v44
  %v59 = vsub.f32 %v28, %v45
  %v60 = vmul.f32 %v58, %v56
  %v61 = vmul.f32 %v59, %v57
  %v62 = vld [vmem:[%s2] sm:$0x1]
  %v64 = vlaneseq
  %v65 = vshrl.u32 %v64, 7
  %v66 = vsub.s32 0, %v65
  %v67 = vrot.slane %v62, %v66
  %v69 = vmul.f32 %v60, %v67
  %v70 = vmul.f32 %v61, %v67
  %v71 = vld [vmem:[%s3] sm:$0x1]
  %v73 = vlaneseq
  %v74 = vshrl.u32 %v73, 7
  %v75 = vsub.s32 0, %v74
  %v76 = vrot.slane %v71, %v75
  %v78 = vadd.f32 %v69, %v76
  %v79 = vadd.f32 %v70, %v76
  %v80 = vsel %vm29, %v78, 0.0
  %81 = vadd.xlane.f32.xlu0 %v80
  %v82 = vpop.xlane.xlu0 %81
  %v83 = vsel %vm29, %v79, 0.0
  %84 = vadd.xlane.f32.xlu0 %v83
  %v85 = vpop.xlane.xlu0 %84
  %v86 = vmul.f32 %v78, %v78
  %v87 = vmul.f32 %v79, %v79
  %v88 = vsel %vm29, %v86, 0.0
  %89 = vadd.xlane.f32.xlu0 %v88
  %v90 = vpop.xlane.xlu0 %89
  %v91 = vsel %vm29, %v87, 0.0
  %92 = vadd.xlane.f32.xlu0 %v91
  %v93 = vpop.xlane.xlu0 %92
  %v94 = vmul.f32 %v82, 0.03125
  %v95 = vmul.f32 %v85, 0.03125
  %v96 = vmul.f32 %v90, 0.03125
  %v97 = vmul.f32 %v93, 0.03125
  %v98 = vmul.f32 %v94, %v94
  %v99 = vmul.f32 %v95, %v95
  %v100 = vsub.f32 %v96, %v98
  %v101 = vsub.f32 %v97, %v99
  %v102 = vmax.f32 %v100, 0.0
  %v103 = vmax.f32 %v101, 0.0
  %v104 = vadd.f32 %v102, 1e-05
  %v105 = vadd.f32 %v103, 1e-05
  %v106 = vrsqrt.pop %v104
  %v107 = vrsqrt.pop %v105
  %v108 = vsub.f32 %v78, %v94
  %v109 = vsub.f32 %v79, %v95
  %v110 = vmul.f32 %v108, %v106
  %v111 = vmul.f32 %v109, %v107
  %v112 = vld [vmem:[%s4] sm:$0x1]
  %v114 = vlaneseq
  %v115 = vshrl.u32 %v114, 7
  %v116 = vsub.s32 0, %v115
  %v117 = vrot.slane %v112, %v116
  %v119 = vmul.f32 %v110, %v117
  %v120 = vmul.f32 %v111, %v117
  %v121 = vld [vmem:[%s5] sm:$0x1]
  %v123 = vlaneseq
  %v124 = vshrl.u32 %v123, 7
  %v125 = vsub.s32 0, %v124
  %v126 = vrot.slane %v121, %v125
  %v128 = vadd.f32 %v119, %v126
  %v129 = vadd.f32 %v120, %v126
  %130 = vst.msk [vmem:[%s6] sm:$0xff] %vm29, %v128
  %131 = vst.msk [vmem:[%s6 + $0x8] sm:$0xff] %vm29, %v129
  // Predicated region
  $region26: #{forward.25} parent=0 // pred_check
    _
  $region27: #{forward.25} parent=0 // pred_check_branch
    %133 = sbr.rel (0) target = $region29
  $region28: #{forward.25} parent=0 // pred_region
    _
  $region29: #{forward.25} parent=0 // pred_fallthru
    _
  // Predicated region
  $region30: #{forward.25} parent=0 // pred_check
    _
  $region31: #{forward.25} parent=0 // pred_check_branch
    %135 = sbr.rel (0) target = $region33
  $region32: #{forward.25} parent=0 // pred_region
    _
  $region33: #{forward.25} parent=0 // pred_fallthru
    _

// kernel: forward.35
$region0: #{forward.35}
  #allocation0 [shape = 'u32[]', space=smem, size = 0x4, offset = 0x4, fixed_abs, tag = 'smem constant byte address 0x4 - core index']
  #allocation1 [shape = 'u32[144,128]{1,0:T(1,128)}', space=vmem, size = 0x12000, scoped, tag = 'internal scratch']
  #allocation2 [shape = 'f32[16,32]{1,0:T(8,128)}', space=vmem, size = 0x2000, scoped, tag = 'scratch operand']
  %s0 = inlined_call_operand.vmem [shape: bf16[16,32], index: 0, kind: input, shape index: {}]
  %s1 = inlined_call_operand.vmem [shape: bf16[32,32], index: 1, kind: input, shape index: {}]
  %s2 = inlined_call_operand.vmem [shape: f32[1,32], index: 2, kind: input, shape index: {}]
  %s3 = inlined_call_operand.hbm [shape: f32[16,32], index: 3, kind: output, shape index: {}]
  %s4 = sld [smem:[#allocation0]]
  $region30: #{forward.35} parent=0
    _
  %s6 = ssub.s32 1, %s4
  %s7 = scalar_select 0, %s6, %s4
  $region1: #{forward.35} parent=0
    #allocation3 [shape = 'u8[8192]{0}', space=vmem, size = 0x2000, scoped, tag = 'output window, operand 0, single buffered']
    #allocation4 [shape = 's32[1]{0}', space=sflag, size = 0x4, scoped, tag = 'scoped memory for forward.35']
    %8 = vsyncpa [#allocation4], 0
    // Predicated region
    $region2: #{forward.35} parent=1 // pred_check
      _
    $region3: #{forward.35} parent=1 // pred_check_branch
      %10 = sbr.rel (0) target = $region5
    $region4: #{forward.35} parent=1 // pred_region
      _
    $region5: #{forward.35} parent=1 // pred_fallthru
      _
    // Predicated region
    $region6: #{forward.35} parent=1 // pred_check
      _
    $region7: #{forward.35} parent=1 // pred_check_branch
      %12 = sbr.rel (0) target = $region9
    $region8: #{forward.35} parent=1 // pred_region
      _
    $region9: #{forward.35} parent=1 // pred_fallthru
      _
    // Predicated region
    $region10: #{forward.35} parent=1 // pred_check
      _
    $region11: #{forward.35} parent=1 // pred_check_branch
      %14 = sbr.rel (0) target = $region13
    $region12: #{forward.35} parent=1 // pred_region
      _
    $region13: #{forward.35} parent=1 // pred_fallthru
      _
    %p16 = scmp.eq.s32.totalorder 0, 0
    // Predicated region
    $region14: #{forward.35} parent=1 // pred_check
      %p17 = pneg %p16
    $region15: #{forward.35} parent=1 // pred_check_branch
      %19 = sbr.rel (%p17) target = $region17
    $region16: #{forward.35} parent=1 // pred_region
      %vm20 = vcmask 261120
      %21 = vst.msk [vmem:[#allocation2] sm:$0xff] %vm20, 0.0
      %22 = vst.msk [vmem:[#allocation2 + $0x8] sm:$0xff] %vm20, 0.0
    $region17: #{forward.35} parent=1 // pred_fallthru
      _
    %v23 = vld [vmem:[#allocation2] sm:$0xff]
    %v24 = vld [vmem:[#allocation2 + $0x8] sm:$0xff]
    %v25 = vld [vmem:[%s0] sm:$0xf]
    %v26 = vld [vmem:[%s0 + $0x4] sm:$0xf]
    %v27 = vld [vmem:[%s1] sm:$0xf]
    %v28 = vld [vmem:[%s1 + $0x4] sm:$0xf]
    %v29 = vld [vmem:[%s1 + $0x8] sm:$0xf]
    %v30 = vld [vmem:[%s1 + $0xc] sm:$0xf]
    %v33 = vunpack.c.l.b16 %v25
    %v34 = vunpack.c.l.b16 %v26
    %v35 = vpack.c.b16 %v34, %v33
    %v40 = vunpack.c.l.b16 %v27
    %v41 = vunpack.c.l.b16 %v28
    %v42 = vunpack.c.l.b16 %v29
    %v43 = vunpack.c.l.b16 %v30
    %v44 = vpack.c.b16 %v41, %v40
    %v45 = vpack.c.b16 %v43, %v42
    %vm48 = vcmask 261120
    %v50 = vsel %vm48, %v35, 0
    %52 = vmatprep.subr.bf16.mxu0 0
    %53 = vmatpush1.bf16.msra.mxu0 0
    %54 = vmatprep.subr.bf16.mxu0 0
    %55 = vmatpush1.bf16.msra.mxu0 0
    %56 = vmatprep.subr.bf16.mxu0 0
    %57 = vmatpush1.bf16.msra.mxu0 0
    %58 = vmatprep.subr.bf16.mxu0 0
    %59 = vmatpush1.bf16.msra.mxu0 0
    %60 = vmatprep.subr.bf16.mxu0 0
    %61 = vmatpush1.bf16.msra.mxu0 0
    %62 = vmatprep.subr.bf16.mxu0 0
    %63 = vmatpush1.bf16.msra.mxu0 0
    %64 = vmatprep.subr.bf16.mxu0 0
    %65 = vmatpush1.bf16.msra.mxu0 %v45
    %66 = vmatprep.subr.bf16.mxu0 0
    %67 = vmatpush1.bf16.msra.mxu0 %v44
    %68 = vmatprep.subr.bf16.mxu0 0
    %69 = vmatpush2.bf16.msra.mxu0 0
    %70 = vmatprep.subr.bf16.mxu0 0
    %71 = vmatpush2.bf16.msra.mxu0 0
    %72 = vmatprep.subr.bf16.mxu0 0
    %73 = vmatpush2.bf16.msra.mxu0 0
    %74 = vmatprep.subr.bf16.mxu0 0
    %75 = vmatpush2.bf16.msra.mxu0 0
    %76 = vmatprep.subr.bf16.mxu0 0
    %77 = vmatpush2.bf16.msra.mxu0 0
    %78 = vmatprep.subr.bf16.mxu0 0
    %79 = vmatpush2.bf16.msra.mxu0 0
    %80 = vmatprep.subr.bf16.mxu0 0
    %81 = vmatpush2.bf16.msra.mxu0 0
    %82 = vmatprep.subr.bf16.mxu0 0
    %83 = vmatpush2.bf16.msra.mxu0 0
    %84 = vmatprep.mubr.bf16.mxu0 0
    %85 = vmatmul.mubr.bf16.gmra.mxu0 %v50
    %v86 = vpop.f32.mrf.mxu0
    %v87 = vadd.f32 0.0, %v86
    %v88 = vpop.f32.mrf.mxu0
    %v89 = vpop.f32.mrf.mxu0
    %v90 = vadd.f32 0.0, %v89
    %v91 = vpop.f32.mrf.mxu0
    %92 = vdwg.mxu0
    %v93 = vadd.f32 %v23, %v87
    %v94 = vadd.f32 %v24, %v90
    %95 = vst.msk [vmem:[#allocation2] sm:$0xff] %vm48, %v93
    %96 = vst.msk [vmem:[#allocation2 + $0x8] sm:$0xff] %vm48, %v94
    // Predicated region
    $region18: #{forward.35} parent=1 // pred_check
      %p97 = pneg %p16
    $region19: #{forward.35} parent=1 // pred_check_branch
      %99 = sbr.rel (%p97) target = $region21
    $region20: #{forward.35} parent=1 // pred_region
      %v100 = vld [vmem:[#allocation2] sm:$0xff]
      %v101 = vld [vmem:[#allocation2 + $0x8] sm:$0xff]
      %v102 = vld [vmem:[%s2] sm:$0x1]
      %v104 = vlaneseq
      %v105 = vshrl.u32 %v104, 7
      %v106 = vsub.s32 0, %v105
      %v107 = vrot.slane %v102, %v106
      %v109 = vadd.f32 %v100, %v107
      %v110 = vadd.f32 %v101, %v107
      %111 = vst.msk [vmem:[#allocation3] sm:$0xff] %vm48, %v109
      %112 = vst.msk [vmem:[#allocation3 + $0x8] sm:$0xff] %vm48, %v110
    $region21: #{forward.35} parent=1 // pred_fallthru
      _
    // Predicated region
    $region22: #{forward.35} parent=1 // pred_check
      _
    $region23: #{forward.35} parent=1 // pred_check_branch
      %114 = sbr.rel (0) target = $region25
    $region24: #{forward.35} parent=1 // pred_region
      %s116 = ssub.s32 256, 256
      %117 = vsyncadd [#allocation4], %s116
      %s118 = sshll.u32 [#allocation3], 4
      %s119 = int_to_ptr.vmem [resolvable:$true] %s118
      %124 = dma.vmem_to_hbm [thread:$0]  %s119, 256, %s3, [#allocation4], 128, 128, 8
    $region25: #{forward.35} parent=1 // pred_fallthru
      _
    // Predicated region
    $region26: #{forward.35} parent=1 // pred_check
      _
    $region27: #{forward.35} parent=1 // pred_check_branch
      %126 = sbr.rel (0) target = $region29
    $region28: #{forward.35} parent=1 // pred_region
      %127 = dma.done [#allocation4], 256
    $region29: #{forward.35} parent=1 // pred_fallthru
      _
    %128 = vsyncpa [#allocation4], 1

// kernel: forward.34
$region0: #{forward.34}
  #allocation0 [shape = 'u32[]', space=smem, size = 0x4, offset = 0x4, fixed_abs, tag = 'smem constant byte address 0x4 - core index']
  #allocation1 [shape = 'u32[144,128]{1,0:T(1,128)}', space=vmem, size = 0x12000, scoped, tag = 'internal scratch']
  %s0 = inlined_call_operand.vmem [shape: f32[16,32], index: 0, kind: input, shape index: {}]
  %s1 = inlined_call_operand.vmem [shape: f32[1,32], index: 1, kind: input, shape index: {}]
  %s2 = inlined_call_operand.vmem [shape: f32[1,32], index: 2, kind: input, shape index: {}]
  %s3 = inlined_call_operand.vmem [shape: f32[16,32], index: 3, kind: output, shape index: {}]
  %s4 = sld [smem:[#allocation0]]
  $region22: #{forward.34} parent=0
    _
  %s6 = ssub.s32 1, %s4
  %s7 = scalar_select 0, %s6, %s4
  // Predicated region
  $region2: #{forward.34} parent=0 // pred_check
    _
  $region3: #{forward.34} parent=0 // pred_check_branch
    %9 = sbr.rel (0) target = $region5
  $region4: #{forward.34} parent=0 // pred_region
    _
  $region5: #{forward.34} parent=0 // pred_fallthru
    _
  // Predicated region
  $region6: #{forward.34} parent=0 // pred_check
    _
  $region7: #{forward.34} parent=0 // pred_check_branch
    %11 = sbr.rel (0) target = $region9
  $region8: #{forward.34} parent=0 // pred_region
    _
  $region9: #{forward.34} parent=0 // pred_fallthru
    _
  // Predicated region
  $region10: #{forward.34} parent=0 // pred_check
    _
  $region11: #{forward.34} parent=0 // pred_check_branch
    %13 = sbr.rel (0) target = $region13
  $region12: #{forward.34} parent=0 // pred_region
    _
  $region13: #{forward.34} parent=0 // pred_fallthru
    _
  %v14 = vld [vmem:[%s0] sm:$0xff]
  %v15 = vld [vmem:[%s0 + $0x8] sm:$0xff]
  %vm16 = vcmask 261120
  %v17 = vsel %vm16, %v14, 0.0
  %18 = vadd.xlane.f32.xlu0 %v17
  %v19 = vpop.xlane.xlu0 %18
  %v20 = vsel %vm16, %v15, 0.0
  %21 = vadd.xlane.f32.xlu0 %v20
  %v22 = vpop.xlane.xlu0 %21
  %v23 = vmul.f32 %v14, %v14
  %v24 = vmul.f32 %v15, %v15
  %v25 = vsel %vm16, %v23, 0.0
  %26 = vadd.xlane.f32.xlu0 %v25
  %v27 = vpop.xlane.xlu0 %26
  %v28 = vsel %vm16, %v24, 0.0
  %29 = vadd.xlane.f32.xlu0 %v28
  %v30 = vpop.xlane.xlu0 %29
  %v31 = vmul.f32 %v19, 0.03125
  %v32 = vmul.f32 %v22, 0.03125
  %v33 = vmul.f32 %v27, 0.03125
  %v34 = vmul.f32 %v30, 0.03125
  %v35 = vmul.f32 %v31, %v31
  %v36 = vmul.f32 %v32, %v32
  %v37 = vsub.f32 %v33, %v35
  %v38 = vsub.f32 %v34, %v36
  %v39 = vmax.f32 %v37, 0.0
  %v40 = vmax.f32 %v38, 0.0
  %v41 = vadd.f32 %v39, 1e-05
  %v42 = vadd.f32 %v40, 1e-05
  %v43 = vrsqrt.pop %v41
  %v44 = vrsqrt.pop %v42
  %v45 = vsub.f32 %v14, %v31
  %v46 = vsub.f32 %v15, %v32
  %v47 = vmul.f32 %v45, %v43
  %v48 = vmul.f32 %v46, %v44
  %v49 = vld [vmem:[%s1] sm:$0x1]
  %v51 = vlaneseq
  %v52 = vshrl.u32 %v51, 7
  %v53 = vsub.s32 0, %v52
  %v54 = vrot.slane %v49, %v53
  %v56 = vmul.f32 %v47, %v54
  %v57 = vmul.f32 %v48, %v54
  %v58 = vld [vmem:[%s2] sm:$0x1]
  %v60 = vlaneseq
  %v61 = vshrl.u32 %v60, 7
  %v62 = vsub.s32 0, %v61
  %v63 = vrot.slane %v58, %v62
  %v65 = vadd.f32 %v56, %v63
  %v66 = vadd.f32 %v57, %v63
  %67 = vst.msk [vmem:[%s3] sm:$0xff] %vm16, %v65
  %68 = vst.msk [vmem:[%s3 + $0x8] sm:$0xff] %vm16, %v66
  // Predicated region
  $region14: #{forward.34} parent=0 // pred_check
    _
  $region15: #{forward.34} parent=0 // pred_check_branch
    %70 = sbr.rel (0) target = $region17
  $region16: #{forward.34} parent=0 // pred_region
    _
  $region17: #{forward.34} parent=0 // pred_fallthru
    _
  // Predicated region
  $region18: #{forward.34} parent=0 // pred_check
    _
  $region19: #{forward.34} parent=0 // pred_check_branch
    %72 = sbr.rel (0) target = $region21
  $region20: #{forward.34} parent=0 // pred_region
    _
  $region21: #{forward.34} parent=0 // pred_fallthru
    _

</llo_original>
